<compile_context>
chip_gen: v7x
topology: tpu7x:2x2x1
jax: 0.10.0
libtpu: 0.0.40
codegen_flags: <defaults>
</compile_context>

<pallas_src>
import jax
import jax.numpy as jnp
from jax.experimental import pallas as pl
from jax.experimental.pallas import tpu as pltpu

# Small, self-consistent shapes.
B = 2            # batch
S = 8            # sequence length
D = 32           # hidden size
H = 4            # heads
HD = D // H      # head dim
DO = 128         # lane-padded output width (>= D, multiple of 128)


def _attn_kernel(bias_ref, mask_ref, x_ref, wqkv_ref, wo_ref, o_ref):
    """One batch element of T5-style self-attention.

    bias_ref: (1, H, S, S) f32  position bias (shared across the batch grid)
    mask_ref: (1, 1, 1, S) f32  additive attention-mask row for this batch
    x_ref:    (1, S, D)         hidden states for this batch element
    wqkv_ref: (D, 3*D)          packed [Wq | Wk | Wv]
    wo_ref:   (D, DO)           Wo zero-padded to DO=128 lanes
    o_ref:    (1, S, DO)        lane-dense output (first D lanes are real)
    """
    hp = jax.lax.Precision.HIGHEST
    x = x_ref[0]                                        # (S, D)
    mask = mask_ref[...].reshape(1, S)                  # (1, S), additive over keys
    bias = bias_ref[0]                                  # (H, S, S)

    # Fused QKV projection: a single MXU weight push for all of Q, K, V.
    qkv = jnp.dot(x, wqkv_ref[...], precision=hp,
                  preferred_element_type=jnp.float32)   # (S, 3D)
    # 32-lane-aligned splits — no sub-lane-group shuffles.
    q = qkv[:, 0 * D:1 * D]
    k = qkv[:, 1 * D:2 * D]
    v = qkv[:, 2 * D:3 * D]

    # Per-head attention.  At these toy dims (H=4, HD=8) the head split is an
    # unavoidable 8-lane slice; at real sizes heads become a grid axis.
    ctx_heads = []
    for h in range(H):                                  # static unroll
        qh = q[:, h * HD:(h + 1) * HD]                  # (S, HD)
        kh = k[:, h * HD:(h + 1) * HD]
        vh = v[:, h * HD:(h + 1) * HD]
        s = jnp.einsum('qd,kd->qk', qh, kh, precision=hp,
                       preferred_element_type=jnp.float32)        # (S, S)
        s = s + bias[h] + mask                          # bias + mask added in-kernel (VPU)
        m = jnp.max(s, axis=-1, keepdims=True)
        e = jnp.exp(s - m)
        p = e * pl.reciprocal(jnp.sum(e, axis=-1, keepdims=True), approx=False)
        ctx_heads.append(jnp.dot(p, vh, precision=hp,
                                 preferred_element_type=jnp.float32))  # (S, HD)

    # Concatenate heads back to (S, D); the single Wo matmul below folds the
    # head reduction into the contraction (no explicit per-head sum).
    ctx = jnp.concatenate(ctx_heads, axis=-1)           # (S, D)
    out = jnp.dot(ctx, wo_ref[...], precision=hp,
                  preferred_element_type=jnp.float32)   # (S, DO)
    o_ref[0] = out.astype(o_ref.dtype)                  # lane-dense store


@jax.jit
def _attention_pallas(hidden_states, attention_mask, position_bias,
                      wq, wk, wv, wo):
    # Host-side (XLA) layout plumbing — free relative to the kernel:
    #   * pack the projection weights flat: Wqkv = [Wq | Wk | Wv]  (D, 3D),
    #   * zero-pad Wo's output dim to DO=128 so the kernel store is lane-dense.
    # The mask is NOT pre-added to the bias — it is added in-kernel, so the
    # (1, H, S, S) bias is never duplicated B-fold in HBM.
    wqkv = jnp.concatenate([wq, wk, wv], axis=-1)                 # (D, 3D)
    wo_pad = jnp.pad(wo, ((0, 0), (0, DO - D)))                   # (D, DO)
    bias = position_bias.astype(jnp.float32)                      # (1, H, S, S)
    mask = attention_mask.astype(jnp.float32)                     # (B, 1, 1, S)

    out_padded = pl.pallas_call(
        _attn_kernel,
        out_shape=jax.ShapeDtypeStruct((B, S, DO), hidden_states.dtype),
        grid_spec=pltpu.PrefetchScalarGridSpec(
            num_scalar_prefetch=0,
            grid=(B,),   # one batch element per step; "parallel" -> both TCs on v7x
            in_specs=[
                pl.BlockSpec((1, H, S, S), lambda b: (0, 0, 0, 0)),   # bias (shared)
                pl.BlockSpec((1, 1, 1, S), lambda b: (b, 0, 0, 0)),   # mask row
                pl.BlockSpec((1, S, D), lambda b: (b, 0, 0)),         # hidden
                pl.BlockSpec((D, 3 * D), lambda b: (0, 0)),           # Wqkv
                pl.BlockSpec((D, DO), lambda b: (0, 0)),              # Wo (padded)
            ],
            out_specs=pl.BlockSpec((1, S, DO), lambda b: (b, 0, 0)),
        ),
        compiler_params=pltpu.CompilerParams(
            dimension_semantics=("parallel",)),
    )(bias, mask, hidden_states, wqkv, wo_pad)

    # Strip the lane padding (free XLA slice).
    return out_padded[..., :D]


def checkpoint_wrapper_forward(hidden_states, attention_mask, position_bias,
                               params, use_checkpoint=False, training=False):
    """Mirrors CheckpointWrapper.forward.

    The checkpoint branch only affects autodiff memory, not forward values,
    so both branches compute identically here.
    """
    print('[INFO]: checkpoint wrapper forward calling....')
    wq, wk, wv, wo = params
    attn_out = _attention_pallas(hidden_states, attention_mask, position_bias,
                                 wq, wk, wv, wo)
    # Inner T5-style module returns a tuple; None entries would be passed
    # through unchanged (the empty-tensor substitution is checkpoint-only).
    # TODO(synk): torch.utils.checkpoint rematerialization (training branch) has
    # no forward-value effect; jax.checkpoint would be applied at training time.
    return (attn_out, position_bias)


def _reference(hidden_states, attention_mask, position_bias, params):
    # Pure-JAX reference at HIGHEST matmul precision (the previous failure was
    # the reference running at DEFAULT bf16-pass precision on TPU).
    wq, wk, wv, wo = params
    hp = jax.lax.Precision.HIGHEST
    x = hidden_states.astype(jnp.float32)
    q = jnp.dot(x, wq, precision=hp).reshape(B, S, H, HD).transpose(0, 2, 1, 3)
    k = jnp.dot(x, wk, precision=hp).reshape(B, S, H, HD).transpose(0, 2, 1, 3)
    v = jnp.dot(x, wv, precision=hp).reshape(B, S, H, HD).transpose(0, 2, 1, 3)
    scores = (jnp.einsum('bhqd,bhkd->bhqk', q, k, precision=hp)
              + position_bias + attention_mask)
    p = jax.nn.softmax(scores, axis=-1)
    ctx = jnp.einsum('bhqk,bhkd->bhqd', p, v,
                     precision=hp).transpose(0, 2, 1, 3).reshape(B, S, D)
    return jnp.dot(ctx, wo, precision=hp)


if __name__ == "__main__":
    key = jax.random.PRNGKey(0)
    k0, k1, k2, k3, k4, k5 = jax.random.split(key, 6)

    hidden_states = jax.random.normal(k0, (B, S, D), dtype=jnp.float32)
    # Additive mask: last two key positions of batch 1 masked out.
    mask_keep = jnp.ones((B, S), dtype=jnp.float32).at[1, -2:].set(0.0)
    attention_mask = ((1.0 - mask_keep) * -1e9).reshape(B, 1, 1, S)
    position_bias = 0.1 * jax.random.normal(k1, (1, H, S, S), dtype=jnp.float32)

    scale = 1.0 / jnp.sqrt(jnp.float32(D))
    wq = scale * jax.random.normal(k2, (D, D), dtype=jnp.float32)
    wk = scale * jax.random.normal(k3, (D, D), dtype=jnp.float32)
    wv = scale * jax.random.normal(k4, (D, D), dtype=jnp.float32)
    wo = scale * jax.random.normal(k5, (D, D), dtype=jnp.float32)
    params = (wq, wk, wv, wo)

    out, pb_out = checkpoint_wrapper_forward(
        hidden_states, attention_mask, position_bias, params)
    out = jax.block_until_ready(out)

    ref = _reference(hidden_states, attention_mask, position_bias, params)
    assert out.shape == (B, S, D)
    err = float(jnp.max(jnp.abs(out - ref)))
    assert err < 2e-3, f"mismatch vs reference (max abs err = {err})"

    print("KERNEL_OK")
</pallas_src>

<mosaic_0001>
module attributes {stable_mosaic.version = 11 : i64} {
  func.func @_attn_kernel(%arg0: i32, %arg1: memref<1x4x8x8xf32, #tpu.memory_space<vmem>>, %arg2: memref<1x1x1x8xf32, #tpu.memory_space<vmem>>, %arg3: memref<1x8x32xf32, #tpu.memory_space<vmem>>, %arg4: memref<32x96xf32, #tpu.memory_space<vmem>>, %arg5: memref<32x128xf32, #tpu.memory_space<vmem>>, %arg6: memref<1x8x128xf32, #tpu.memory_space<vmem>>) attributes {dimension_semantics = [#tpu.dimension_semantics<parallel>], iteration_bounds = array<i64: 2>, scalar_prefetch = 0 : i64, scratch_operands = 0 : i64, tpu.core_type = #tpu.core_type<tc>, window_params = [{pipeline_mode = #tpu.pipeline_mode<synchronous>, transform_indices = @transform_0, window_bounds = array<i64: 1, 4, 8, 8>}, {transform_indices = @transform_1, window_bounds = array<i64: 1, 1, 1, 8>}, {transform_indices = @transform_2, window_bounds = array<i64: 1, 8, 32>}, {pipeline_mode = #tpu.pipeline_mode<synchronous>, transform_indices = @transform_3, window_bounds = array<i64: 32, 96>}, {pipeline_mode = #tpu.pipeline_mode<synchronous>, transform_indices = @transform_4, window_bounds = array<i64: 32, 128>}, {transform_indices = @transform_5, window_bounds = array<i64: 1, 8, 128>}]} {
    %c0 = arith.constant 0 : index
    %c0_0 = arith.constant 0 : index
    %c0_1 = arith.constant 0 : index
    %0 = vector.load %arg3[%c0, %c0_0, %c0_1] : memref<1x8x32xf32, #tpu.memory_space<vmem>>, vector<1x8x32xf32>
    %1 = vector.shape_cast %0 : vector<1x8x32xf32> to vector<8x32xf32>
    %c0_2 = arith.constant 0 : index
    %c0_3 = arith.constant 0 : index
    %c0_4 = arith.constant 0 : index
    %c0_5 = arith.constant 0 : index
    %2 = vector.load %arg2[%c0_2, %c0_3, %c0_4, %c0_5] : memref<1x1x1x8xf32, #tpu.memory_space<vmem>>, vector<1x1x1x8xf32>
    %3 = vector.shape_cast %2 : vector<1x1x1x8xf32> to vector<1x8xf32>
    %c0_6 = arith.constant 0 : index
    %c0_7 = arith.constant 0 : index
    %c0_8 = arith.constant 0 : index
    %c0_9 = arith.constant 0 : index
    %4 = vector.load %arg1[%c0_6, %c0_7, %c0_8, %c0_9] : memref<1x4x8x8xf32, #tpu.memory_space<vmem>>, vector<1x4x8x8xf32>
    %5 = vector.shape_cast %4 : vector<1x4x8x8xf32> to vector<4x8x8xf32>
    %c0_10 = arith.constant 0 : index
    %c0_11 = arith.constant 0 : index
    %6 = vector.load %arg4[%c0_10, %c0_11] : memref<32x96xf32, #tpu.memory_space<vmem>>, vector<32x96xf32>
    %cst = arith.constant dense<0.000000e+00> : vector<8x96xf32>
    %7 = tpu.matmul %1, %6, %cst {dimension_numbers = #tpu.dot_dimension_numbers<[1], [0], [0], [1], [0, 0, 1, 1], [], []>, precision = #tpu.contract_precision<fp32>} : vector<8x32xf32>, vector<32x96xf32>, vector<8x96xf32> -> vector<8x96xf32>
    %8 = vector.extract_strided_slice %7 {offsets = [0, 0], sizes = [8, 32], strides = [1, 1]} : vector<8x96xf32> to vector<8x32xf32>
    %9 = vector.extract_strided_slice %7 {offsets = [0, 32], sizes = [8, 32], strides = [1, 1]} : vector<8x96xf32> to vector<8x32xf32>
    %10 = vector.extract_strided_slice %7 {offsets = [0, 64], sizes = [8, 32], strides = [1, 1]} : vector<8x96xf32> to vector<8x32xf32>
    %11 = vector.extract_strided_slice %8 {offsets = [0, 0], sizes = [8, 8], strides = [1, 1]} : vector<8x32xf32> to vector<8x8xf32>
    %12 = vector.extract_strided_slice %9 {offsets = [0, 0], sizes = [8, 8], strides = [1, 1]} : vector<8x32xf32> to vector<8x8xf32>
    %13 = vector.extract_strided_slice %10 {offsets = [0, 0], sizes = [8, 8], strides = [1, 1]} : vector<8x32xf32> to vector<8x8xf32>
    "tpu.trace_start"() <{level = 10 : i32, message = "qd,kd->qk"}> : () -> ()
    %cst_12 = arith.constant dense<0.000000e+00> : vector<8x8xf32>
    %14 = tpu.matmul %11, %12, %cst_12 {dimension_numbers = #tpu.dot_dimension_numbers<[1], [1], [0], [0], [0, 0, 1, 0], [], []>, precision = #tpu.contract_precision<fp32>} : vector<8x8xf32>, vector<8x8xf32>, vector<8x8xf32> -> vector<8x8xf32>
    "tpu.trace_stop"() : () -> ()
    %15 = vector.extract_strided_slice %5 {offsets = [0, 0, 0], sizes = [1, 8, 8], strides = [1, 1, 1]} : vector<4x8x8xf32> to vector<1x8x8xf32>
    %16 = vector.shape_cast %15 : vector<1x8x8xf32> to vector<8x8xf32>
    %17 = arith.addf %14, %16 : vector<8x8xf32>
    %18 = vector.broadcast %3 : vector<1x8xf32> to vector<8x8xf32>
    %19 = arith.addf %17, %18 : vector<8x8xf32>
    %cst_13 = arith.constant dense<0xFF800000> : vector<8xf32>
    %20 = vector.multi_reduction <maximumf>, %19, %cst_13 [1] : vector<8x8xf32> to vector<8xf32>
    %21 = vector.shape_cast %20 : vector<8xf32> to vector<8x1xf32>
    %22 = vector.broadcast %21 : vector<8x1xf32> to vector<8x8xf32>
    %23 = arith.subf %19, %22 : vector<8x8xf32>
    %24 = math.exp %23 : vector<8x8xf32>
    %cst_14 = arith.constant dense<0.000000e+00> : vector<8xf32>
    %25 = vector.multi_reduction <add>, %24, %cst_14 [1] : vector<8x8xf32> to vector<8xf32>
    %26 = vector.shape_cast %25 : vector<8xf32> to vector<8x1xf32>
    %27 = tpu.reciprocal %26 : vector<8x1xf32> -> vector<8x1xf32>
    %28 = vector.broadcast %27 : vector<8x1xf32> to vector<8x8xf32>
    %29 = arith.mulf %24, %28 : vector<8x8xf32>
    %cst_15 = arith.constant dense<0.000000e+00> : vector<8x8xf32>
    %30 = tpu.matmul %29, %13, %cst_15 {dimension_numbers = #tpu.dot_dimension_numbers<[1], [0], [0], [1], [0, 0, 1, 1], [], []>, precision = #tpu.contract_precision<fp32>} : vector<8x8xf32>, vector<8x8xf32>, vector<8x8xf32> -> vector<8x8xf32>
    %31 = vector.extract_strided_slice %8 {offsets = [0, 8], sizes = [8, 8], strides = [1, 1]} : vector<8x32xf32> to vector<8x8xf32>
    %32 = vector.extract_strided_slice %9 {offsets = [0, 8], sizes = [8, 8], strides = [1, 1]} : vector<8x32xf32> to vector<8x8xf32>
    %33 = vector.extract_strided_slice %10 {offsets = [0, 8], sizes = [8, 8], strides = [1, 1]} : vector<8x32xf32> to vector<8x8xf32>
    "tpu.trace_start"() <{level = 10 : i32, message = "qd,kd->qk"}> : () -> ()
    %cst_16 = arith.constant dense<0.000000e+00> : vector<8x8xf32>
    %34 = tpu.matmul %31, %32, %cst_16 {dimension_numbers = #tpu.dot_dimension_numbers<[1], [1], [0], [0], [0, 0, 1, 0], [], []>, precision = #tpu.contract_precision<fp32>} : vector<8x8xf32>, vector<8x8xf32>, vector<8x8xf32> -> vector<8x8xf32>
    "tpu.trace_stop"() : () -> ()
    %35 = vector.extract_strided_slice %5 {offsets = [1, 0, 0], sizes = [1, 8, 8], strides = [1, 1, 1]} : vector<4x8x8xf32> to vector<1x8x8xf32>
    %36 = vector.shape_cast %35 : vector<1x8x8xf32> to vector<8x8xf32>
    %37 = arith.addf %34, %36 : vector<8x8xf32>
    %38 = vector.broadcast %3 : vector<1x8xf32> to vector<8x8xf32>
    %39 = arith.addf %37, %38 : vector<8x8xf32>
    %cst_17 = arith.constant dense<0xFF800000> : vector<8xf32>
    %40 = vector.multi_reduction <maximumf>, %39, %cst_17 [1] : vector<8x8xf32> to vector<8xf32>
    %41 = vector.shape_cast %40 : vector<8xf32> to vector<8x1xf32>
    %42 = vector.broadcast %41 : vector<8x1xf32> to vector<8x8xf32>
    %43 = arith.subf %39, %42 : vector<8x8xf32>
    %44 = math.exp %43 : vector<8x8xf32>
    %cst_18 = arith.constant dense<0.000000e+00> : vector<8xf32>
    %45 = vector.multi_reduction <add>, %44, %cst_18 [1] : vector<8x8xf32> to vector<8xf32>
    %46 = vector.shape_cast %45 : vector<8xf32> to vector<8x1xf32>
    %47 = tpu.reciprocal %46 : vector<8x1xf32> -> vector<8x1xf32>
    %48 = vector.broadcast %47 : vector<8x1xf32> to vector<8x8xf32>
    %49 = arith.mulf %44, %48 : vector<8x8xf32>
    %cst_19 = arith.constant dense<0.000000e+00> : vector<8x8xf32>
    %50 = tpu.matmul %49, %33, %cst_19 {dimension_numbers = #tpu.dot_dimension_numbers<[1], [0], [0], [1], [0, 0, 1, 1], [], []>, precision = #tpu.contract_precision<fp32>} : vector<8x8xf32>, vector<8x8xf32>, vector<8x8xf32> -> vector<8x8xf32>
    %51 = vector.extract_strided_slice %8 {offsets = [0, 16], sizes = [8, 8], strides = [1, 1]} : vector<8x32xf32> to vector<8x8xf32>
    %52 = vector.extract_strided_slice %9 {offsets = [0, 16], sizes = [8, 8], strides = [1, 1]} : vector<8x32xf32> to vector<8x8xf32>
    %53 = vector.extract_strided_slice %10 {offsets = [0, 16], sizes = [8, 8], strides = [1, 1]} : vector<8x32xf32> to vector<8x8xf32>
    "tpu.trace_start"() <{level = 10 : i32, message = "qd,kd->qk"}> : () -> ()
    %cst_20 = arith.constant dense<0.000000e+00> : vector<8x8xf32>
    %54 = tpu.matmul %51, %52, %cst_20 {dimension_numbers = #tpu.dot_dimension_numbers<[1], [1], [0], [0], [0, 0, 1, 0], [], []>, precision = #tpu.contract_precision<fp32>} : vector<8x8xf32>, vector<8x8xf32>, vector<8x8xf32> -> vector<8x8xf32>
    "tpu.trace_stop"() : () -> ()
    %55 = vector.extract_strided_slice %5 {offsets = [2, 0, 0], sizes = [1, 8, 8], strides = [1, 1, 1]} : vector<4x8x8xf32> to vector<1x8x8xf32>
    %56 = vector.shape_cast %55 : vector<1x8x8xf32> to vector<8x8xf32>
    %57 = arith.addf %54, %56 : vector<8x8xf32>
    %58 = vector.broadcast %3 : vector<1x8xf32> to vector<8x8xf32>
    %59 = arith.addf %57, %58 : vector<8x8xf32>
    %cst_21 = arith.constant dense<0xFF800000> : vector<8xf32>
    %60 = vector.multi_reduction <maximumf>, %59, %cst_21 [1] : vector<8x8xf32> to vector<8xf32>
    %61 = vector.shape_cast %60 : vector<8xf32> to vector<8x1xf32>
    %62 = vector.broadcast %61 : vector<8x1xf32> to vector<8x8xf32>
    %63 = arith.subf %59, %62 : vector<8x8xf32>
    %64 = math.exp %63 : vector<8x8xf32>
    %cst_22 = arith.constant dense<0.000000e+00> : vector<8xf32>
    %65 = vector.multi_reduction <add>, %64, %cst_22 [1] : vector<8x8xf32> to vector<8xf32>
    %66 = vector.shape_cast %65 : vector<8xf32> to vector<8x1xf32>
    %67 = tpu.reciprocal %66 : vector<8x1xf32> -> vector<8x1xf32>
    %68 = vector.broadcast %67 : vector<8x1xf32> to vector<8x8xf32>
    %69 = arith.mulf %64, %68 : vector<8x8xf32>
    %cst_23 = arith.constant dense<0.000000e+00> : vector<8x8xf32>
    %70 = tpu.matmul %69, %53, %cst_23 {dimension_numbers = #tpu.dot_dimension_numbers<[1], [0], [0], [1], [0, 0, 1, 1], [], []>, precision = #tpu.contract_precision<fp32>} : vector<8x8xf32>, vector<8x8xf32>, vector<8x8xf32> -> vector<8x8xf32>
    %71 = vector.extract_strided_slice %8 {offsets = [0, 24], sizes = [8, 8], strides = [1, 1]} : vector<8x32xf32> to vector<8x8xf32>
    %72 = vector.extract_strided_slice %9 {offsets = [0, 24], sizes = [8, 8], strides = [1, 1]} : vector<8x32xf32> to vector<8x8xf32>
    %73 = vector.extract_strided_slice %10 {offsets = [0, 24], sizes = [8, 8], strides = [1, 1]} : vector<8x32xf32> to vector<8x8xf32>
    "tpu.trace_start"() <{level = 10 : i32, message = "qd,kd->qk"}> : () -> ()
    %cst_24 = arith.constant dense<0.000000e+00> : vector<8x8xf32>
    %74 = tpu.matmul %71, %72, %cst_24 {dimension_numbers = #tpu.dot_dimension_numbers<[1], [1], [0], [0], [0, 0, 1, 0], [], []>, precision = #tpu.contract_precision<fp32>} : vector<8x8xf32>, vector<8x8xf32>, vector<8x8xf32> -> vector<8x8xf32>
    "tpu.trace_stop"() : () -> ()
    %75 = vector.extract_strided_slice %5 {offsets = [3, 0, 0], sizes = [1, 8, 8], strides = [1, 1, 1]} : vector<4x8x8xf32> to vector<1x8x8xf32>
    %76 = vector.shape_cast %75 : vector<1x8x8xf32> to vector<8x8xf32>
    %77 = arith.addf %74, %76 : vector<8x8xf32>
    %78 = vector.broadcast %3 : vector<1x8xf32> to vector<8x8xf32>
    %79 = arith.addf %77, %78 : vector<8x8xf32>
    %cst_25 = arith.constant dense<0xFF800000> : vector<8xf32>
    %80 = vector.multi_reduction <maximumf>, %79, %cst_25 [1] : vector<8x8xf32> to vector<8xf32>
    %81 = vector.shape_cast %80 : vector<8xf32> to vector<8x1xf32>
    %82 = vector.broadcast %81 : vector<8x1xf32> to vector<8x8xf32>
    %83 = arith.subf %79, %82 : vector<8x8xf32>
    %84 = math.exp %83 : vector<8x8xf32>
    %cst_26 = arith.constant dense<0.000000e+00> : vector<8xf32>
    %85 = vector.multi_reduction <add>, %84, %cst_26 [1] : vector<8x8xf32> to vector<8xf32>
    %86 = vector.shape_cast %85 : vector<8xf32> to vector<8x1xf32>
    %87 = tpu.reciprocal %86 : vector<8x1xf32> -> vector<8x1xf32>
    %88 = vector.broadcast %87 : vector<8x1xf32> to vector<8x8xf32>
    %89 = arith.mulf %84, %88 : vector<8x8xf32>
    %cst_27 = arith.constant dense<0.000000e+00> : vector<8x8xf32>
    %90 = tpu.matmul %89, %73, %cst_27 {dimension_numbers = #tpu.dot_dimension_numbers<[1], [0], [0], [1], [0, 0, 1, 1], [], []>, precision = #tpu.contract_precision<fp32>} : vector<8x8xf32>, vector<8x8xf32>, vector<8x8xf32> -> vector<8x8xf32>
    %91 = tpu.concatenate %30, %50, %70, %90 in 1 : vector<8x8xf32>, vector<8x8xf32>, vector<8x8xf32>, vector<8x8xf32> -> vector<8x32xf32>
    %c0_28 = arith.constant 0 : index
    %c0_29 = arith.constant 0 : index
    %92 = vector.load %arg5[%c0_28, %c0_29] : memref<32x128xf32, #tpu.memory_space<vmem>>, vector<32x128xf32>
    %cst_30 = arith.constant dense<0.000000e+00> : vector<8x128xf32>
    %93 = tpu.matmul %91, %92, %cst_30 {dimension_numbers = #tpu.dot_dimension_numbers<[1], [0], [0], [1], [0, 0, 1, 1], [], []>, precision = #tpu.contract_precision<fp32>} : vector<8x32xf32>, vector<32x128xf32>, vector<8x128xf32> -> vector<8x128xf32>
    %c0_31 = arith.constant 0 : index
    %c0_32 = arith.constant 0 : index
    %c0_33 = arith.constant 0 : index
    %94 = vector.load %arg6[%c0_31, %c0_32, %c0_33] : memref<1x8x128xf32, #tpu.memory_space<vmem>>, vector<1x8x128xf32>
    %95 = vector.shape_cast %94 : vector<1x8x128xf32> to vector<8x128xf32>
    %96 = vector.shape_cast %93 : vector<8x128xf32> to vector<1x8x128xf32>
    tpu.vector_store %arg6[%c0_31, %c0_32, %c0_33], %96 {strides = array<i32>} : memref<1x8x128xf32, #tpu.memory_space<vmem>>, vector<1x8x128xf32>,
    return
  }
  func.func @transform_0(%arg0: i32) -> (i32, i32, i32, i32) {
    %c0_i32 = arith.constant 0 : i32
    %c0_i32_0 = arith.constant 0 : i32
    %c0_i32_1 = arith.constant 0 : i32
    %c0_i32_2 = arith.constant 0 : i32
    %c0_i32_3 = arith.constant 0 : i32
    return %c0_i32, %c0_i32_0, %c0_i32_1, %c0_i32_2 : i32, i32, i32, i32
  }
  func.func @transform_1(%arg0: i32) -> (i32, i32, i32, i32) {
    %c0_i32 = arith.constant 0 : i32
    %c0_i32_0 = arith.constant 0 : i32
    %c0_i32_1 = arith.constant 0 : i32
    %c0_i32_2 = arith.constant 0 : i32
    return %arg0, %c0_i32, %c0_i32_0, %c0_i32_1 : i32, i32, i32, i32
  }
  func.func @transform_2(%arg0: i32) -> (i32, i32, i32) {
    %c0_i32 = arith.constant 0 : i32
    %c0_i32_0 = arith.constant 0 : i32
    %c0_i32_1 = arith.constant 0 : i32
    return %arg0, %c0_i32, %c0_i32_0 : i32, i32, i32
  }
  func.func @transform_3(%arg0: i32) -> (i32, i32) {
    %c0_i32 = arith.constant 0 : i32
    %c0_i32_0 = arith.constant 0 : i32
    %c0_i32_1 = arith.constant 0 : i32
    return %c0_i32, %c0_i32_0 : i32, i32
  }
  func.func @transform_4(%arg0: i32) -> (i32, i32) {
    %c0_i32 = arith.constant 0 : i32
    %c0_i32_0 = arith.constant 0 : i32
    %c0_i32_1 = arith.constant 0 : i32
    return %c0_i32, %c0_i32_0 : i32, i32
  }
  func.func @transform_5(%arg0: i32) -> (i32, i32, i32) {
    %c0_i32 = arith.constant 0 : i32
    %c0_i32_0 = arith.constant 0 : i32
    %c0_i32_1 = arith.constant 0 : i32
    return %arg0, %c0_i32, %c0_i32_0 : i32, i32, i32
  }
}

</mosaic_0001>

<llo_original>
// kernel: _attention_pallas.1
$region0: #{_attention_pallas.1}
  #allocation0 [shape = 'u32[]', space=smem, size = 0x4, offset = 0x4, fixed_abs, tag = 'smem constant byte address 0x4 - core index']
  #allocation1 [shape = 'u32[144,128]{1,0:T(1,128)}', space=vmem, size = 0x12000, scoped, tag = 'internal scratch']
  %s0 = inlined_call_operand.vmem [shape: f32[1,4,8,8], index: 0, kind: input, shape index: {}]
  %s1 = inlined_call_operand.vmem [shape: f32[2,1,1,8], index: 1, kind: input, shape index: {}]
  %s2 = inlined_call_operand.vmem [shape: f32[2,8,32], index: 2, kind: input, shape index: {}]
  %s3 = inlined_call_operand.vmem [shape: f32[32,96], index: 3, kind: input, shape index: {}]
  %s4 = inlined_call_operand.vmem [shape: f32[32,128], index: 4, kind: input, shape index: {}]
  %s5 = inlined_call_operand.hbm [shape: f32[2,8,128], index: 5, kind: output, shape index: {}]
  %s6 = sld [smem:[#allocation0]]
  $region53: #{_attention_pallas.1} parent=0
    _
  %s8 = ssub.s32 1, %s6
  %s9 = scalar_select 0, %s8, %s6
  $region1: #{_attention_pallas.1} parent=0
    #allocation2 [shape = 'u8[8192]{0}', space=vmem, size = 0x2000, scoped, tag = 'output window, operand 0']
    #allocation3 [shape = 's32[2]{0}', space=sflag, size = 0x8, scoped, tag = 'scoped memory for _attention_pallas.1']
    %10 = vsyncpa [#allocation3], 0
    %s11 = scalar_lea.sflag [#allocation3], 1
    %12 = vsyncpa %s11, 0
    loop: start=0, step=1, limit=4
    $region2: #{_attention_pallas.1} parent=1 // loop_pre_header
      _
    $region3: #{_attention_pallas.1} parent=1 // loop_header
      %s14 = sphi 0, %s18
      %p15 = scmp.ge.s32.totalorder %s14, 4
      %s22 = sphi 0, %s22
      %s24 = sphi 0, %s22
      %s25 = sphi 0, %s24
      %s39 = sphi 0, %s25
      %s45 = sphi 0, %s47
      %s48 = sphi 0, %s45
      %s49 = sphi 0, %s48
      %s65 = sphi 0, %s49
      %s71 = sphi 0, %s73
      %s74 = sphi 0, %s71
      %s75 = sphi 0, %s74
      %s91 = sphi 0, %s75
      %s95 = sphi 0, %s95
      %s97 = sphi 0, %s95
      %s98 = sphi 0, %s97
      %s112 = sphi 0, %s98
      %s116 = sphi 0, %s116
      %s118 = sphi 0, %s116
      %s119 = sphi 0, %s118
      %s133 = sphi 0, %s119
      %s139 = sphi 0, %s141
      %s142 = sphi 0, %s139
      %s143 = sphi 0, %s142
      %s159 = sphi 0, %s143
    $region4: #{_attention_pallas.1} parent=1 // loop_header_branch
      %17 = sbr.rel (%p15) target = $region8
    $region5: #{_attention_pallas.1} parent=1 // loop_body
      %s19 = ssub.s32 %s14, 1
      %s20 = ssub.s32 %s14, 2
      %s21 = sadd.s32 %s14, 1
      %s23 = sadd.s32 %s22, 1
      %p26 = scmp.eq.s32.totalorder %s14, 1
      %p27 = scmp.ne.s32.totalorder %s22, %s24
      %p28 = scmp.eq.s32.totalorder %s14, 0
      %p29 = por %p27, %p28
      %p30 = scmp.ne.s32.totalorder %s22, %s24
      %p31 = scmp.eq.s32.totalorder %s19, 1
      %p32 = por %p30, %p31
      %p33 = scmp.ne.s32.totalorder %s24, %s25
      %p34 = scmp.eq.s32.totalorder %s19, 0
      %p35 = por %p33, %p34
      %p36 = scmp.ne.s32.totalorder %s24, %s25
      %p37 = scmp.eq.s32.totalorder %s20, 1
      %p38 = por %p36, %p37
      %p40 = scmp.ne.s32.totalorder %s25, %s39
      %p41 = scmp.eq.s32.totalorder %s20, 0
      %p42 = por %p40, %p41
      %s43 = ssub.s32 %s14, %s21
      %p44 = scmp.eq.s32.totalorder %s43, 0
      %s46 = sadd.s32 %s45, 1
      %s47 = scalar_select %p44, %s45, %s46
      %p50 = pneg %p44
      %p51 = scmp.eq.s32.totalorder %s14, 1
      %p52 = por %p50, %p51
      %p53 = scmp.ne.s32.totalorder %s45, %s48
      %p54 = scmp.eq.s32.totalorder %s14, 0
      %p55 = por %p53, %p54
      %p56 = scmp.ne.s32.totalorder %s45, %s48
      %p57 = scmp.eq.s32.totalorder %s19, 1
      %p58 = por %p56, %p57
      %p59 = scmp.ne.s32.totalorder %s48, %s49
      %p60 = scmp.eq.s32.totalorder %s19, 0
      %p61 = por %p59, %p60
      %p62 = scmp.ne.s32.totalorder %s48, %s49
      %p63 = scmp.eq.s32.totalorder %s20, 1
      %p64 = por %p62, %p63
      %p66 = scmp.ne.s32.totalorder %s49, %s65
      %p67 = scmp.eq.s32.totalorder %s20, 0
      %p68 = por %p66, %p67
      %s69 = ssub.s32 %s14, %s21
      %p70 = scmp.eq.s32.totalorder %s69, 0
      %s72 = sadd.s32 %s71, 1
      %s73 = scalar_select %p70, %s71, %s72
      %p76 = pneg %p70
      %p77 = scmp.eq.s32.totalorder %s14, 1
      %p78 = por %p76, %p77
      %p79 = scmp.ne.s32.totalorder %s71, %s74
      %p80 = scmp.eq.s32.totalorder %s14, 0
      %p81 = por %p79, %p80
      %p82 = scmp.ne.s32.totalorder %s71, %s74
      %p83 = scmp.eq.s32.totalorder %s19, 1
      %p84 = por %p82, %p83
      %p85 = scmp.ne.s32.totalorder %s74, %s75
      %p86 = scmp.eq.s32.totalorder %s19, 0
      %p87 = por %p85, %p86
      %p88 = scmp.ne.s32.totalorder %s74, %s75
      %p89 = scmp.eq.s32.totalorder %s20, 1
      %p90 = por %p88, %p89
      %p92 = scmp.ne.s32.totalorder %s75, %s91
      %p93 = scmp.eq.s32.totalorder %s20, 0
      %p94 = por %p92, %p93
      %s96 = sadd.s32 %s95, 1
      %p99 = scmp.eq.s32.totalorder %s14, 1
      %p100 = scmp.ne.s32.totalorder %s95, %s97
      %p101 = scmp.eq.s32.totalorder %s14, 0
      %p102 = por %p100, %p101
      %p103 = scmp.ne.s32.totalorder %s95, %s97
      %p104 = scmp.eq.s32.totalorder %s19, 1
      %p105 = por %p103, %p104
      %p106 = scmp.ne.s32.totalorder %s97, %s98
      %p107 = scmp.eq.s32.totalorder %s19, 0
      %p108 = por %p106, %p107
      %p109 = scmp.ne.s32.totalorder %s97, %s98
      %p110 = scmp.eq.s32.totalorder %s20, 1
      %p111 = por %p109, %p110
      %p113 = scmp.ne.s32.totalorder %s98, %s112
      %p114 = scmp.eq.s32.totalorder %s20, 0
      %p115 = por %p113, %p114
      %s117 = sadd.s32 %s116, 1
      %p120 = scmp.eq.s32.totalorder %s14, 1
      %p121 = scmp.ne.s32.totalorder %s116, %s118
      %p122 = scmp.eq.s32.totalorder %s14, 0
      %p123 = por %p121, %p122
      %p124 = scmp.ne.s32.totalorder %s116, %s118
      %p125 = scmp.eq.s32.totalorder %s19, 1
      %p126 = por %p124, %p125
      %p127 = scmp.ne.s32.totalorder %s118, %s119
      %p128 = scmp.eq.s32.totalorder %s19, 0
      %p129 = por %p127, %p128
      %p130 = scmp.ne.s32.totalorder %s118, %s119
      %p131 = scmp.eq.s32.totalorder %s20, 1
      %p132 = por %p130, %p131
      %p134 = scmp.ne.s32.totalorder %s119, %s133
      %p135 = scmp.eq.s32.totalorder %s20, 0
      %p136 = por %p134, %p135
      %s137 = ssub.s32 %s14, %s21
      %p138 = scmp.eq.s32.totalorder %s137, 0
      %s140 = sadd.s32 %s139, 1
      %s141 = scalar_select %p138, %s139, %s140
      %p144 = pneg %p138
      %p145 = scmp.eq.s32.totalorder %s14, 1
      %p146 = por %p144, %p145
      %p147 = scmp.ne.s32.totalorder %s139, %s142
      %p148 = scmp.eq.s32.totalorder %s14, 0
      %p149 = por %p147, %p148
      %p150 = scmp.ne.s32.totalorder %s139, %s142
      %p151 = scmp.eq.s32.totalorder %s19, 1
      %p152 = por %p150, %p151
      %p153 = scmp.ne.s32.totalorder %s142, %s143
      %p154 = scmp.eq.s32.totalorder %s19, 0
      %p155 = por %p153, %p154
      %p156 = scmp.ne.s32.totalorder %s142, %s143
      %p157 = scmp.eq.s32.totalorder %s20, 1
      %p158 = por %p156, %p157
      %p160 = scmp.ne.s32.totalorder %s143, %s159
      %p161 = scmp.eq.s32.totalorder %s20, 0
      %p162 = por %p160, %p161
      %p163 = scmp.le.s32.totalorder 1, %s14
      %p164 = scmp.lt.s32.totalorder %s14, 3
      %p165 = pnand %p163, %p164
      %p166 = pneg %p165
      // Predicated region
      $region9: #{_attention_pallas.1} parent=5 // pred_check
        _
      $region10: #{_attention_pallas.1} parent=5 // pred_check_branch
        %168 = sbr.rel (%p165) target = $region12
      $region11: #{_attention_pallas.1} parent=5 // pred_region
        %s169 = ssub.s32 %s14, 1
        // Predicated region
        $region13: #{_attention_pallas.1} parent=11 // pred_check
          %p170 = pneg %p35
        $region14: #{_attention_pallas.1} parent=11 // pred_check_branch
          %172 = sbr.rel (%p170) target = $region16
        $region15: #{_attention_pallas.1} parent=11 // pred_region
          _
        $region16: #{_attention_pallas.1} parent=11 // pred_fallthru
          _
        // Predicated region
        $region17: #{_attention_pallas.1} parent=11 // pred_check
          %p173 = pneg %p108
        $region18: #{_attention_pallas.1} parent=11 // pred_check_branch
          %175 = sbr.rel (%p173) target = $region20
        $region19: #{_attention_pallas.1} parent=11 // pred_region
          _
        $region20: #{_attention_pallas.1} parent=11 // pred_fallthru
          _
        // Predicated region
        $region21: #{_attention_pallas.1} parent=11 // pred_check
          %p176 = pneg %p129
        $region22: #{_attention_pallas.1} parent=11 // pred_check_branch
          %178 = sbr.rel (%p176) target = $region24
        $region23: #{_attention_pallas.1} parent=11 // pred_region
          _
        $region24: #{_attention_pallas.1} parent=11 // pred_fallthru
          _
      $region12: #{_attention_pallas.1} parent=5 // pred_fallthru
        _
      %p179 = scmp.lt.s32.totalorder %s14, 2
      // Predicated region
      $region25: #{_attention_pallas.1} parent=5 // pred_check
        %p180 = pneg %p179
      $region26: #{_attention_pallas.1} parent=5 // pred_check_branch
        %182 = sbr.rel (%p180) target = $region28
      $region27: #{_attention_pallas.1} parent=5 // pred_region
        // Predicated region
        $region29: #{_attention_pallas.1} parent=27 // pred_check
          %p183 = pneg %p55
        $region30: #{_attention_pallas.1} parent=27 // pred_check_branch
          %185 = sbr.rel (%p183) target = $region32
        $region31: #{_attention_pallas.1} parent=27 // pred_region
          %p186 = scmp.lt.s32.totalorder %s14, 1
          %s187 = scalar_select %p186, %s14, 1
          %s188 = scalar_lea.vmem %s1, %s187
        $region32: #{_attention_pallas.1} parent=27 // pred_fallthru
          _
        // Predicated region
        $region33: #{_attention_pallas.1} parent=27 // pred_check
          %p189 = pneg %p81
        $region34: #{_attention_pallas.1} parent=27 // pred_check_branch
          %191 = sbr.rel (%p189) target = $region36
        $region35: #{_attention_pallas.1} parent=27 // pred_region
          %p192 = scmp.lt.s32.totalorder %s14, 1
          %s193 = scalar_select %p192, %s14, 1
          %s194 = smul.addr %s193, 8
          %s195 = scalar_lea.vmem %s2, %s194
        $region36: #{_attention_pallas.1} parent=27 // pred_fallthru
          _
      $region28: #{_attention_pallas.1} parent=5 // pred_fallthru
        _
      %p196 = scmp.le.s32.totalorder 1, %s14
      %p197 = scmp.lt.s32.totalorder %s14, 3
      %p198 = pnand %p196, %p197
      %p199 = pneg %p198
      // Predicated region
      $region37: #{_attention_pallas.1} parent=5 // pred_check
        _
      $region38: #{_attention_pallas.1} parent=5 // pred_check_branch
        %201 = sbr.rel (%p198) target = $region40
      $region39: #{_attention_pallas.1} parent=5 // pred_region
        %s202 = ssub.s32 %s14, 1
        %p203 = pneg %p35
        %p204 = pneg %p32
        %p205 = scmp.lt.s32.totalorder %s19, 1
        %s206 = scalar_select %p205, %s19, 1
        %s207 = scalar_lea.vmem %s1, %s206
        %p208 = pneg %p61
        %p209 = pneg %p58
        %p210 = scmp.lt.s32.totalorder %s19, 1
        %s211 = scalar_select %p210, %s19, 1
        %s212 = smul.addr %s211, 8
        %s213 = scalar_lea.vmem %s2, %s212
        %p214 = pneg %p87
        %p215 = pneg %p84
        %p216 = pneg %p108
        %p217 = pneg %p105
        %p218 = pneg %p129
        %p219 = pneg %p126
        %p220 = pneg %p155
        %p221 = pneg %p152
        %s222 = sand.u32 %s142, 1
        %s223 = scalar_lea.sflag [#allocation3], %s222
        %s224 = sand.u32 %s142, 1
        %s225 = smul.addr %s224, 8
        %s226 = scalar_lea.vmem [#allocation2], %s225
        %p227 = scmp.lt.s32.totalorder %s19, 1
        %s228 = scalar_select %p227, %s19, 1
        %s229 = scalar_lea.vmem %s1, %s228
        %p230 = scmp.lt.s32.totalorder %s19, 1
        %s231 = scalar_select %p230, %s19, 1
        %s232 = smul.addr %s231, 8
        %s233 = scalar_lea.vmem %s2, %s232
        %v234 = vld [vmem:[%s233] sm:$0xff]
        %v235 = vld [vmem:[%s229] sm:$0x1]
        %v236 = vld [vmem:[%s0] sm:$0xff]
        %v237 = vld [vmem:[%s0 + $0x8] sm:$0xff]
        %v238 = vld [vmem:[%s0 + $0x10] sm:$0xff]
        %v239 = vld [vmem:[%s0 + $0x18] sm:$0xff]
        %v240 = vld [vmem:[%s3] sm:$0xff]
        %v241 = vld [vmem:[%s3 + $0x8] sm:$0xff]
        %v242 = vld [vmem:[%s3 + $0x10] sm:$0xff]
        %v243 = vld [vmem:[%s3 + $0x18] sm:$0xff]
        %vm244 = vcmask 261120
        %v246 = vsel %vm244, %v234, 0
        %248 = vmatprep.subr.mxu0 0.0
        %v249 = vand.u32 %v240, 4294901760
        %250 = vmatpush1.msra.mxu0 %v249
        %251 = vmatprep.subr.mxu0 0.0
        %v252 = vand.u32 %v241, 4294901760
        %253 = vmatpush1.msra.mxu0 %v252
        %254 = vmatprep.subr.mxu0 0.0
        %v255 = vand.u32 %v242, 4294901760
        %256 = vmatpush1.msra.mxu0 %v255
        %257 = vmatprep.subr.mxu0 0.0
        %v258 = vand.u32 %v243, 4294901760
        %259 = vmatpush1.msra.mxu0 %v258
        %260 = vmatprep.subr.mxu0 0.0
        %261 = vmatpush1.msra.mxu0 0.0
        %262 = vmatprep.subr.mxu0 0.0
        %263 = vmatpush1.msra.mxu0 0.0
        %264 = vmatprep.subr.mxu0 0.0
        %265 = vmatpush1.msra.mxu0 0.0
        %266 = vmatprep.subr.mxu0 0.0
        %267 = vmatpush1.msra.mxu0 0.0
        %268 = vmatprep.subr.mxu0 0.0
        %269 = vmatpush1.msra.mxu0 0.0
        %270 = vmatprep.subr.mxu0 0.0
        %271 = vmatpush1.msra.mxu0 0.0
        %272 = vmatprep.subr.mxu0 0.0
        %273 = vmatpush1.msra.mxu0 0.0
        %274 = vmatprep.subr.mxu0 0.0
        %275 = vmatpush1.msra.mxu0 0.0
        %276 = vmatprep.subr.mxu0 0.0
        %277 = vmatpush1.msra.mxu0 0.0
        %278 = vmatprep.subr.mxu0 0.0
        %279 = vmatpush1.msra.mxu0 0.0
        %280 = vmatprep.subr.mxu0 0.0
        %281 = vmatpush1.msra.mxu0 0.0
        %282 = vmatprep.subr.mxu0 0.0
        %283 = vmatpush1.msra.mxu0 0.0
        %284 = vmatprep.subr.mxu0 0.0
        %285 = vmatpush1.msra.mxu0 0.0
        %286 = vmatprep.subr.mxu0 0.0
        %287 = vmatpush1.msra.mxu0 0.0
        %288 = vmatprep.subr.mxu0 0.0
        %289 = vmatpush1.msra.mxu0 0.0
        %290 = vmatprep.subr.mxu0 0.0
        %291 = vmatpush1.msra.mxu0 0.0
        %292 = vmatprep.subr.mxu0 0.0
        %293 = vmatpush1.msra.mxu0 0.0
        %294 = vmatprep.subr.mxu0 0.0
        %295 = vmatpush1.msra.mxu0 0.0
        %296 = vmatprep.subr.mxu0 0.0
        %297 = vmatpush1.msra.mxu0 0.0
        %298 = vmatprep.subr.mxu0 0.0
        %299 = vmatpush1.msra.mxu0 0.0
        %300 = vmatprep.subr.mxu0 0.0
        %301 = vmatpush1.msra.mxu0 0.0
        %302 = vmatprep.subr.mxu0 0.0
        %303 = vmatpush1.msra.mxu0 0.0
        %304 = vmatprep.subr.mxu0 0.0
        %305 = vmatpush1.msra.mxu0 0.0
        %306 = vmatprep.subr.mxu0 0.0
        %307 = vmatpush1.msra.mxu0 0.0
        %308 = vmatprep.subr.mxu0 0.0
        %309 = vmatpush1.msra.mxu0 0.0
        %310 = vmatprep.subr.mxu0 0.0
        %311 = vmatpush1.msra.mxu0 0.0
        %312 = vmatprep.subr.mxu0 0.0
        %313 = vmatpush1.msra.mxu0 0.0
        %314 = vmatprep.subr.mxu0 0.0
        %315 = vmatpush1.msra.mxu0 0.0
        %316 = vmatprep.mubr.f32.mxu0 0.0
        %v317 = vand.u32 %v246, 4294901760
        %v318 = vsub.f32 %v246, %v317
        %v319 = vand.u32 %v318, 4294901760
        %v320 = vsub.f32 %v318, %v319
        %v321 = vand.u32 %v320, 4294901760
        %322 = vmatmul.mubr.f32.gmra.mrb[0].mxu0 %v321
        %v323 = vpop.f32.mrb[0].mxu0
        %v324 = vadd.f32 0.0, %v323
        %v325 = vpop.f32.mrb[0].mxu0
        %326 = vdwg.mxu0
        %327 = vmatprep.subr.mxu0 0.0
        %v328 = vand.u32 %v240, 4294901760
        %v329 = vsub.f32 %v240, %v328
        %v330 = vand.u32 %v329, 4294901760
        %v331 = vsub.f32 %v329, %v330
        %v332 = vand.u32 %v331, 4294901760
        %333 = vmatpush1.msra.mxu0 %v332
        %334 = vmatprep.subr.mxu0 0.0
        %v335 = vand.u32 %v241, 4294901760
        %v336 = vsub.f32 %v241, %v335
        %v337 = vand.u32 %v336, 4294901760
        %v338 = vsub.f32 %v336, %v337
        %v339 = vand.u32 %v338, 4294901760
        %340 = vmatpush1.msra.mxu0 %v339
        %341 = vmatprep.subr.mxu0 0.0
        %v342 = vand.u32 %v242, 4294901760
        %v343 = vsub.f32 %v242, %v342
        %v344 = vand.u32 %v343, 4294901760
        %v345 = vsub.f32 %v343, %v344
        %v346 = vand.u32 %v345, 4294901760
        %347 = vmatpush1.msra.mxu0 %v346
        %348 = vmatprep.subr.mxu0 0.0
        %v349 = vand.u32 %v243, 4294901760
        %v350 = vsub.f32 %v243, %v349
        %v351 = vand.u32 %v350, 4294901760
        %v352 = vsub.f32 %v350, %v351
        %v353 = vand.u32 %v352, 4294901760
        %354 = vmatpush1.msra.mxu0 %v353
        %355 = vmatprep.subr.mxu0 0.0
        %356 = vmatpush1.msra.mxu0 0.0
        %357 = vmatprep.subr.mxu0 0.0
        %358 = vmatpush1.msra.mxu0 0.0
        %359 = vmatprep.subr.mxu0 0.0
        %360 = vmatpush1.msra.mxu0 0.0
        %361 = vmatprep.subr.mxu0 0.0
        %362 = vmatpush1.msra.mxu0 0.0
        %363 = vmatprep.subr.mxu0 0.0
        %364 = vmatpush1.msra.mxu0 0.0
        %365 = vmatprep.subr.mxu0 0.0
        %366 = vmatpush1.msra.mxu0 0.0
        %367 = vmatprep.subr.mxu0 0.0
        %368 = vmatpush1.msra.mxu0 0.0
        %369 = vmatprep.subr.mxu0 0.0
        %370 = vmatpush1.msra.mxu0 0.0
        %371 = vmatprep.subr.mxu0 0.0
        %372 = vmatpush1.msra.mxu0 0.0
        %373 = vmatprep.subr.mxu0 0.0
        %374 = vmatpush1.msra.mxu0 0.0
        %375 = vmatprep.subr.mxu0 0.0
        %376 = vmatpush1.msra.mxu0 0.0
        %377 = vmatprep.subr.mxu0 0.0
        %378 = vmatpush1.msra.mxu0 0.0
        %379 = vmatprep.subr.mxu0 0.0
        %380 = vmatpush1.msra.mxu0 0.0
        %381 = vmatprep.subr.mxu0 0.0
        %382 = vmatpush1.msra.mxu0 0.0
        %383 = vmatprep.subr.mxu0 0.0
        %384 = vmatpush1.msra.mxu0 0.0
        %385 = vmatprep.subr.mxu0 0.0
        %386 = vmatpush1.msra.mxu0 0.0
        %387 = vmatprep.subr.mxu0 0.0
        %388 = vmatpush1.msra.mxu0 0.0
        %389 = vmatprep.subr.mxu0 0.0
        %390 = vmatpush1.msra.mxu0 0.0
        %391 = vmatprep.subr.mxu0 0.0
        %392 = vmatpush1.msra.mxu0 0.0
        %393 = vmatprep.subr.mxu0 0.0
        %394 = vmatpush1.msra.mxu0 0.0
        %395 = vmatprep.subr.mxu0 0.0
        %396 = vmatpush1.msra.mxu0 0.0
        %397 = vmatprep.subr.mxu0 0.0
        %398 = vmatpush1.msra.mxu0 0.0
        %399 = vmatprep.subr.mxu0 0.0
        %400 = vmatpush1.msra.mxu0 0.0
        %401 = vmatprep.subr.mxu0 0.0
        %402 = vmatpush1.msra.mxu0 0.0
        %403 = vmatprep.subr.mxu0 0.0
        %404 = vmatpush1.msra.mxu0 0.0
        %405 = vmatprep.subr.mxu0 0.0
        %406 = vmatpush1.msra.mxu0 0.0
        %407 = vmatprep.subr.mxu0 0.0
        %408 = vmatpush1.msra.mxu0 0.0
        %409 = vmatprep.subr.mxu0 0.0
        %410 = vmatpush1.msra.mxu0 0.0
        %411 = vmatprep.mubr.f32.mxu0 0.0
        %v412 = vand.u32 %v246, 4294901760
        %413 = vmatmul.mubr.f32.gmra.mrb[0].mxu0 %v412
        %v414 = vpop.f32.mrb[0].mxu0
        %v415 = vadd.f32 %v324, %v414
        %v416 = vpop.f32.mrb[0].mxu0
        %417 = vdwg.mxu0
        %418 = vmatprep.subr.mxu0 0.0
        %v419 = vand.u32 %v240, 4294901760
        %v420 = vsub.f32 %v240, %v419
        %421 = vmatpush1.msra.mxu0 %v420
        %422 = vmatprep.subr.mxu0 0.0
        %v423 = vand.u32 %v241, 4294901760
        %v424 = vsub.f32 %v241, %v423
        %425 = vmatpush1.msra.mxu0 %v424
        %426 = vmatprep.subr.mxu0 0.0
        %v427 = vand.u32 %v242, 4294901760
        %v428 = vsub.f32 %v242, %v427
        %429 = vmatpush1.msra.mxu0 %v428
        %430 = vmatprep.subr.mxu0 0.0
        %v431 = vand.u32 %v243, 4294901760
        %v432 = vsub.f32 %v243, %v431
        %433 = vmatpush1.msra.mxu0 %v432
        %434 = vmatprep.subr.mxu0 0.0
        %435 = vmatpush1.msra.mxu0 0.0
        %436 = vmatprep.subr.mxu0 0.0
        %437 = vmatpush1.msra.mxu0 0.0
        %438 = vmatprep.subr.mxu0 0.0
        %439 = vmatpush1.msra.mxu0 0.0
        %440 = vmatprep.subr.mxu0 0.0
        %441 = vmatpush1.msra.mxu0 0.0
        %442 = vmatprep.subr.mxu0 0.0
        %443 = vmatpush1.msra.mxu0 0.0
        %444 = vmatprep.subr.mxu0 0.0
        %445 = vmatpush1.msra.mxu0 0.0
        %446 = vmatprep.subr.mxu0 0.0
        %447 = vmatpush1.msra.mxu0 0.0
        %448 = vmatprep.subr.mxu0 0.0
        %449 = vmatpush1.msra.mxu0 0.0
        %450 = vmatprep.subr.mxu0 0.0
        %451 = vmatpush1.msra.mxu0 0.0
        %452 = vmatprep.subr.mxu0 0.0
        %453 = vmatpush1.msra.mxu0 0.0
        %454 = vmatprep.subr.mxu0 0.0
        %455 = vmatpush1.msra.mxu0 0.0
        %456 = vmatprep.subr.mxu0 0.0
        %457 = vmatpush1.msra.mxu0 0.0
        %458 = vmatprep.subr.mxu0 0.0
        %459 = vmatpush1.msra.mxu0 0.0
        %460 = vmatprep.subr.mxu0 0.0
        %461 = vmatpush1.msra.mxu0 0.0
        %462 = vmatprep.subr.mxu0 0.0
        %463 = vmatpush1.msra.mxu0 0.0
        %464 = vmatprep.subr.mxu0 0.0
        %465 = vmatpush1.msra.mxu0 0.0
        %466 = vmatprep.subr.mxu0 0.0
        %467 = vmatpush1.msra.mxu0 0.0
        %468 = vmatprep.subr.mxu0 0.0
        %469 = vmatpush1.msra.mxu0 0.0
        %470 = vmatprep.subr.mxu0 0.0
        %471 = vmatpush1.msra.mxu0 0.0
        %472 = vmatprep.subr.mxu0 0.0
        %473 = vmatpush1.msra.mxu0 0.0
        %474 = vmatprep.subr.mxu0 0.0
        %475 = vmatpush1.msra.mxu0 0.0
        %476 = vmatprep.subr.mxu0 0.0
        %477 = vmatpush1.msra.mxu0 0.0
        %478 = vmatprep.subr.mxu0 0.0
        %479 = vmatpush1.msra.mxu0 0.0
        %480 = vmatprep.subr.mxu0 0.0
        %481 = vmatpush1.msra.mxu0 0.0
        %482 = vmatprep.subr.mxu0 0.0
        %483 = vmatpush1.msra.mxu0 0.0
        %484 = vmatprep.subr.mxu0 0.0
        %485 = vmatpush1.msra.mxu0 0.0
        %486 = vmatprep.subr.mxu0 0.0
        %487 = vmatpush1.msra.mxu0 0.0
        %488 = vmatprep.subr.mxu0 0.0
        %489 = vmatpush1.msra.mxu0 0.0
        %490 = vmatprep.mubr.f32.mxu0 0.0
        %v491 = vand.u32 %v246, 4294901760
        %v492 = vsub.f32 %v246, %v491
        %493 = vmatmul.mubr.f32.gmra.mrb[0].mxu0 %v492
        %v494 = vpop.f32.mrb[0].mxu0
        %v495 = vadd.f32 %v415, %v494
        %v496 = vpop.f32.mrb[0].mxu0
        %497 = vdwg.mxu0
        %498 = vmatprep.subr.mxu0 0.0
        %v499 = vand.u32 %v240, 4294901760
        %500 = vmatpush1.msra.mxu0 %v499
        %501 = vmatprep.subr.mxu0 0.0
        %v502 = vand.u32 %v241, 4294901760
        %503 = vmatpush1.msra.mxu0 %v502
        %504 = vmatprep.subr.mxu0 0.0
        %v505 = vand.u32 %v242, 4294901760
        %506 = vmatpush1.msra.mxu0 %v505
        %507 = vmatprep.subr.mxu0 0.0
        %v508 = vand.u32 %v243, 4294901760
        %509 = vmatpush1.msra.mxu0 %v508
        %510 = vmatprep.subr.mxu0 0.0
        %511 = vmatpush1.msra.mxu0 0.0
        %512 = vmatprep.subr.mxu0 0.0
        %513 = vmatpush1.msra.mxu0 0.0
        %514 = vmatprep.subr.mxu0 0.0
        %515 = vmatpush1.msra.mxu0 0.0
        %516 = vmatprep.subr.mxu0 0.0
        %517 = vmatpush1.msra.mxu0 0.0
        %518 = vmatprep.subr.mxu0 0.0
        %519 = vmatpush1.msra.mxu0 0.0
        %520 = vmatprep.subr.mxu0 0.0
        %521 = vmatpush1.msra.mxu0 0.0
        %522 = vmatprep.subr.mxu0 0.0
        %523 = vmatpush1.msra.mxu0 0.0
        %524 = vmatprep.subr.mxu0 0.0
        %525 = vmatpush1.msra.mxu0 0.0
        %526 = vmatprep.subr.mxu0 0.0
        %527 = vmatpush1.msra.mxu0 0.0
        %528 = vmatprep.subr.mxu0 0.0
        %529 = vmatpush1.msra.mxu0 0.0
        %530 = vmatprep.subr.mxu0 0.0
        %531 = vmatpush1.msra.mxu0 0.0
        %532 = vmatprep.subr.mxu0 0.0
        %533 = vmatpush1.msra.mxu0 0.0
        %534 = vmatprep.subr.mxu0 0.0
        %535 = vmatpush1.msra.mxu0 0.0
        %536 = vmatprep.subr.mxu0 0.0
        %537 = vmatpush1.msra.mxu0 0.0
        %538 = vmatprep.subr.mxu0 0.0
        %539 = vmatpush1.msra.mxu0 0.0
        %540 = vmatprep.subr.mxu0 0.0
        %541 = vmatpush1.msra.mxu0 0.0
        %542 = vmatprep.subr.mxu0 0.0
        %543 = vmatpush1.msra.mxu0 0.0
        %544 = vmatprep.subr.mxu0 0.0
        %545 = vmatpush1.msra.mxu0 0.0
        %546 = vmatprep.subr.mxu0 0.0
        %547 = vmatpush1.msra.mxu0 0.0
        %548 = vmatprep.subr.mxu0 0.0
        %549 = vmatpush1.msra.mxu0 0.0
        %550 = vmatprep.subr.mxu0 0.0
        %551 = vmatpush1.msra.mxu0 0.0
        %552 = vmatprep.subr.mxu0 0.0
        %553 = vmatpush1.msra.mxu0 0.0
        %554 = vmatprep.subr.mxu0 0.0
        %555 = vmatpush1.msra.mxu0 0.0
        %556 = vmatprep.subr.mxu0 0.0
        %557 = vmatpush1.msra.mxu0 0.0
        %558 = vmatprep.subr.mxu0 0.0
        %559 = vmatpush1.msra.mxu0 0.0
        %560 = vmatprep.subr.mxu0 0.0
        %561 = vmatpush1.msra.mxu0 0.0
        %562 = vmatprep.subr.mxu0 0.0
        %563 = vmatpush1.msra.mxu0 0.0
        %564 = vmatprep.subr.mxu0 0.0
        %565 = vmatpush1.msra.mxu0 0.0
        %566 = vmatprep.mubr.f32.mxu0 0.0
        %v567 = vand.u32 %v246, 4294901760
        %v568 = vsub.f32 %v246, %v567
        %v569 = vand.u32 %v568, 4294901760
        %570 = vmatmul.mubr.f32.gmra.mrb[0].mxu0 %v569
        %v571 = vpop.f32.mrb[0].mxu0
        %v572 = vadd.f32 %v495, %v571
        %v573 = vpop.f32.mrb[0].mxu0
        %574 = vdwg.mxu0
        %575 = vmatprep.subr.mxu0 0.0
        %v576 = vand.u32 %v240, 4294901760
        %v577 = vsub.f32 %v240, %v576
        %v578 = vand.u32 %v577, 4294901760
        %579 = vmatpush1.msra.mxu0 %v578
        %580 = vmatprep.subr.mxu0 0.0
        %v581 = vand.u32 %v241, 4294901760
        %v582 = vsub.f32 %v241, %v581
        %v583 = vand.u32 %v582, 4294901760
        %584 = vmatpush1.msra.mxu0 %v583
        %585 = vmatprep.subr.mxu0 0.0
        %v586 = vand.u32 %v242, 4294901760
        %v587 = vsub.f32 %v242, %v586
        %v588 = vand.u32 %v587, 4294901760
        %589 = vmatpush1.msra.mxu0 %v588
        %590 = vmatprep.subr.mxu0 0.0
        %v591 = vand.u32 %v243, 4294901760
        %v592 = vsub.f32 %v243, %v591
        %v593 = vand.u32 %v592, 4294901760
        %594 = vmatpush1.msra.mxu0 %v593
        %595 = vmatprep.subr.mxu0 0.0
        %596 = vmatpush1.msra.mxu0 0.0
        %597 = vmatprep.subr.mxu0 0.0
        %598 = vmatpush1.msra.mxu0 0.0
        %599 = vmatprep.subr.mxu0 0.0
        %600 = vmatpush1.msra.mxu0 0.0
        %601 = vmatprep.subr.mxu0 0.0
        %602 = vmatpush1.msra.mxu0 0.0
        %603 = vmatprep.subr.mxu0 0.0
        %604 = vmatpush1.msra.mxu0 0.0
        %605 = vmatprep.subr.mxu0 0.0
        %606 = vmatpush1.msra.mxu0 0.0
        %607 = vmatprep.subr.mxu0 0.0
        %608 = vmatpush1.msra.mxu0 0.0
        %609 = vmatprep.subr.mxu0 0.0
        %610 = vmatpush1.msra.mxu0 0.0
        %611 = vmatprep.subr.mxu0 0.0
        %612 = vmatpush1.msra.mxu0 0.0
        %613 = vmatprep.subr.mxu0 0.0
        %614 = vmatpush1.msra.mxu0 0.0
        %615 = vmatprep.subr.mxu0 0.0
        %616 = vmatpush1.msra.mxu0 0.0
        %617 = vmatprep.subr.mxu0 0.0
        %618 = vmatpush1.msra.mxu0 0.0
        %619 = vmatprep.subr.mxu0 0.0
        %620 = vmatpush1.msra.mxu0 0.0
        %621 = vmatprep.subr.mxu0 0.0
        %622 = vmatpush1.msra.mxu0 0.0
        %623 = vmatprep.subr.mxu0 0.0
        %624 = vmatpush1.msra.mxu0 0.0
        %625 = vmatprep.subr.mxu0 0.0
        %626 = vmatpush1.msra.mxu0 0.0
        %627 = vmatprep.subr.mxu0 0.0
        %628 = vmatpush1.msra.mxu0 0.0
        %629 = vmatprep.subr.mxu0 0.0
        %630 = vmatpush1.msra.mxu0 0.0
        %631 = vmatprep.subr.mxu0 0.0
        %632 = vmatpush1.msra.mxu0 0.0
        %633 = vmatprep.subr.mxu0 0.0
        %634 = vmatpush1.msra.mxu0 0.0
        %635 = vmatprep.subr.mxu0 0.0
        %636 = vmatpush1.msra.mxu0 0.0
        %637 = vmatprep.subr.mxu0 0.0
        %638 = vmatpush1.msra.mxu0 0.0
        %639 = vmatprep.subr.mxu0 0.0
        %640 = vmatpush1.msra.mxu0 0.0
        %641 = vmatprep.subr.mxu0 0.0
        %642 = vmatpush1.msra.mxu0 0.0
        %643 = vmatprep.subr.mxu0 0.0
        %644 = vmatpush1.msra.mxu0 0.0
        %645 = vmatprep.subr.mxu0 0.0
        %646 = vmatpush1.msra.mxu0 0.0
        %647 = vmatprep.subr.mxu0 0.0
        %648 = vmatpush1.msra.mxu0 0.0
        %649 = vmatprep.subr.mxu0 0.0
        %650 = vmatpush1.msra.mxu0 0.0
        %651 = vmatprep.mubr.f32.mxu0 0.0
        %v652 = vand.u32 %v246, 4294901760
        %653 = vmatmul.mubr.f32.gmra.mrb[0].mxu0 %v652
        %v654 = vpop.f32.mrb[0].mxu0
        %v655 = vadd.f32 %v572, %v654
        %v656 = vpop.f32.mrb[0].mxu0
        %657 = vdwg.mxu0
        %658 = vmatprep.subr.mxu0 0.0
        %v659 = vand.u32 %v240, 4294901760
        %660 = vmatpush1.msra.mxu0 %v659
        %661 = vmatprep.subr.mxu0 0.0
        %v662 = vand.u32 %v241, 4294901760
        %663 = vmatpush1.msra.mxu0 %v662
        %664 = vmatprep.subr.mxu0 0.0
        %v665 = vand.u32 %v242, 4294901760
        %666 = vmatpush1.msra.mxu0 %v665
        %667 = vmatprep.subr.mxu0 0.0
        %v668 = vand.u32 %v243, 4294901760
        %669 = vmatpush1.msra.mxu0 %v668
        %670 = vmatprep.subr.mxu0 0.0
        %671 = vmatpush1.msra.mxu0 0.0
        %672 = vmatprep.subr.mxu0 0.0
        %673 = vmatpush1.msra.mxu0 0.0
        %674 = vmatprep.subr.mxu0 0.0
        %675 = vmatpush1.msra.mxu0 0.0
        %676 = vmatprep.subr.mxu0 0.0
        %677 = vmatpush1.msra.mxu0 0.0
        %678 = vmatprep.subr.mxu0 0.0
        %679 = vmatpush1.msra.mxu0 0.0
        %680 = vmatprep.subr.mxu0 0.0
        %681 = vmatpush1.msra.mxu0 0.0
        %682 = vmatprep.subr.mxu0 0.0
        %683 = vmatpush1.msra.mxu0 0.0
        %684 = vmatprep.subr.mxu0 0.0
        %685 = vmatpush1.msra.mxu0 0.0
        %686 = vmatprep.subr.mxu0 0.0
        %687 = vmatpush1.msra.mxu0 0.0
        %688 = vmatprep.subr.mxu0 0.0
        %689 = vmatpush1.msra.mxu0 0.0
        %690 = vmatprep.subr.mxu0 0.0
        %691 = vmatpush1.msra.mxu0 0.0
        %692 = vmatprep.subr.mxu0 0.0
        %693 = vmatpush1.msra.mxu0 0.0
        %694 = vmatprep.subr.mxu0 0.0
        %695 = vmatpush1.msra.mxu0 0.0
        %696 = vmatprep.subr.mxu0 0.0
        %697 = vmatpush1.msra.mxu0 0.0
        %698 = vmatprep.subr.mxu0 0.0
        %699 = vmatpush1.msra.mxu0 0.0
        %700 = vmatprep.subr.mxu0 0.0
        %701 = vmatpush1.msra.mxu0 0.0
        %702 = vmatprep.subr.mxu0 0.0
        %703 = vmatpush1.msra.mxu0 0.0
        %704 = vmatprep.subr.mxu0 0.0
        %705 = vmatpush1.msra.mxu0 0.0
        %706 = vmatprep.subr.mxu0 0.0
        %707 = vmatpush1.msra.mxu0 0.0
        %708 = vmatprep.subr.mxu0 0.0
        %709 = vmatpush1.msra.mxu0 0.0
        %710 = vmatprep.subr.mxu0 0.0
        %711 = vmatpush1.msra.mxu0 0.0
        %712 = vmatprep.subr.mxu0 0.0
        %713 = vmatpush1.msra.mxu0 0.0
        %714 = vmatprep.subr.mxu0 0.0
        %715 = vmatpush1.msra.mxu0 0.0
        %716 = vmatprep.subr.mxu0 0.0
        %717 = vmatpush1.msra.mxu0 0.0
        %718 = vmatprep.subr.mxu0 0.0
        %719 = vmatpush1.msra.mxu0 0.0
        %720 = vmatprep.subr.mxu0 0.0
        %721 = vmatpush1.msra.mxu0 0.0
        %722 = vmatprep.subr.mxu0 0.0
        %723 = vmatpush1.msra.mxu0 0.0
        %724 = vmatprep.subr.mxu0 0.0
        %725 = vmatpush1.msra.mxu0 0.0
        %726 = vmatprep.mubr.f32.mxu0 0.0
        %v727 = vand.u32 %v246, 4294901760
        %728 = vmatmul.mubr.f32.gmra.mrb[0].mxu0 %v727
        %v729 = vpop.f32.mrb[0].mxu0
        %v730 = vadd.f32 %v655, %v729
        %v731 = vpop.f32.mrb[0].mxu0
        %732 = vdwg.mxu0
        %734 = vrot.lane.b32.xlu0 %v730, 96
        %v735 = vpop.permute.xlu0 %734
        %vm736 = vcmask 64512
        %v737 = vsel %vm736, %v730, 0
        %v739 = vsel %vm736, %v735, 0
        %741 = vmatprep.subr.mxu0 0.0
        %v742 = vand.u32 %v739, 4294901760
        %743 = vmatpush1.xpose.msra.mxu0 %v742
        %744 = vmatprep.subr.mxu0 0.0
        %745 = vmatpush1.xpose.msra.mxu0 0.0
        %746 = vmatprep.subr.mxu0 0.0
        %747 = vmatpush1.xpose.msra.mxu0 0.0
        %748 = vmatprep.subr.mxu0 0.0
        %749 = vmatpush1.xpose.msra.mxu0 0.0
        %750 = vmatprep.subr.mxu0 0.0
        %751 = vmatpush1.xpose.msra.mxu0 0.0
        %752 = vmatprep.subr.mxu0 0.0
        %753 = vmatpush1.xpose.msra.mxu0 0.0
        %754 = vmatprep.subr.mxu0 0.0
        %755 = vmatpush1.xpose.msra.mxu0 0.0
        %756 = vmatprep.subr.mxu0 0.0
        %757 = vmatpush1.xpose.msra.mxu0 0.0
        %758 = vmatprep.subr.mxu0 0.0
        %759 = vmatpush1.xpose.msra.mxu0 0.0
        %760 = vmatprep.subr.mxu0 0.0
        %761 = vmatpush1.xpose.msra.mxu0 0.0
        %762 = vmatprep.subr.mxu0 0.0
        %763 = vmatpush1.xpose.msra.mxu0 0.0
        %764 = vmatprep.subr.mxu0 0.0
        %765 = vmatpush1.xpose.msra.mxu0 0.0
        %766 = vmatprep.subr.mxu0 0.0
        %767 = vmatpush1.xpose.msra.mxu0 0.0
        %768 = vmatprep.subr.mxu0 0.0
        %769 = vmatpush1.xpose.msra.mxu0 0.0
        %770 = vmatprep.subr.mxu0 0.0
        %771 = vmatpush1.xpose.msra.mxu0 0.0
        %772 = vmatprep.subr.mxu0 0.0
        %773 = vmatpush1.xpose.msra.mxu0 0.0
        %774 = vmatprep.subr.mxu0 0.0
        %775 = vmatpush1.xpose.msra.mxu0 0.0
        %776 = vmatprep.subr.mxu0 0.0
        %777 = vmatpush1.xpose.msra.mxu0 0.0
        %778 = vmatprep.subr.mxu0 0.0
        %779 = vmatpush1.xpose.msra.mxu0 0.0
        %780 = vmatprep.subr.mxu0 0.0
        %781 = vmatpush1.xpose.msra.mxu0 0.0
        %782 = vmatprep.subr.mxu0 0.0
        %783 = vmatpush1.xpose.msra.mxu0 0.0
        %784 = vmatprep.subr.mxu0 0.0
        %785 = vmatpush1.xpose.msra.mxu0 0.0
        %786 = vmatprep.subr.mxu0 0.0
        %787 = vmatpush1.xpose.msra.mxu0 0.0
        %788 = vmatprep.subr.mxu0 0.0
        %789 = vmatpush1.xpose.msra.mxu0 0.0
        %790 = vmatprep.subr.mxu0 0.0
        %791 = vmatpush1.xpose.msra.mxu0 0.0
        %792 = vmatprep.subr.mxu0 0.0
        %793 = vmatpush1.xpose.msra.mxu0 0.0
        %794 = vmatprep.subr.mxu0 0.0
        %795 = vmatpush1.xpose.msra.mxu0 0.0
        %796 = vmatprep.subr.mxu0 0.0
        %797 = vmatpush1.xpose.msra.mxu0 0.0
        %798 = vmatprep.subr.mxu0 0.0
        %799 = vmatpush1.xpose.msra.mxu0 0.0
        %800 = vmatprep.subr.mxu0 0.0
        %801 = vmatpush1.xpose.msra.mxu0 0.0
        %802 = vmatprep.subr.mxu0 0.0
        %803 = vmatpush1.xpose.msra.mxu0 0.0
        %804 = vmatprep.subr.mxu0 0.0
        %805 = vmatpush1.xpose.msra.mxu0 0.0
        %806 = vmatprep.mubr.f32.mxu0 0.0
        %v807 = vand.u32 %v737, 4294901760
        %v808 = vsub.f32 %v737, %v807
        %v809 = vand.u32 %v808, 4294901760
        %v810 = vsub.f32 %v808, %v809
        %v811 = vand.u32 %v810, 4294901760
        %812 = vmatmul.mubr.f32.gmra.mrb[0].mxu0 %v811
        %v813 = vpop.f32.mrb[0].mxu0
        %v814 = vadd.f32 %v236, %v813
        %v815 = vpop.f32.mrb[0].mxu0
        %816 = vdwg.mxu0
        %817 = vmatprep.subr.mxu0 0.0
        %v818 = vand.u32 %v739, 4294901760
        %v819 = vsub.f32 %v739, %v818
        %v820 = vand.u32 %v819, 4294901760
        %v821 = vsub.f32 %v819, %v820
        %v822 = vand.u32 %v821, 4294901760
        %823 = vmatpush1.xpose.msra.mxu0 %v822
        %824 = vmatprep.subr.mxu0 0.0
        %825 = vmatpush1.xpose.msra.mxu0 0.0
        %826 = vmatprep.subr.mxu0 0.0
        %827 = vmatpush1.xpose.msra.mxu0 0.0
        %828 = vmatprep.subr.mxu0 0.0
        %829 = vmatpush1.xpose.msra.mxu0 0.0
        %830 = vmatprep.subr.mxu0 0.0
        %831 = vmatpush1.xpose.msra.mxu0 0.0
        %832 = vmatprep.subr.mxu0 0.0
        %833 = vmatpush1.xpose.msra.mxu0 0.0
        %834 = vmatprep.subr.mxu0 0.0
        %835 = vmatpush1.xpose.msra.mxu0 0.0
        %836 = vmatprep.subr.mxu0 0.0
        %837 = vmatpush1.xpose.msra.mxu0 0.0
        %838 = vmatprep.subr.mxu0 0.0
        %839 = vmatpush1.xpose.msra.mxu0 0.0
        %840 = vmatprep.subr.mxu0 0.0
        %841 = vmatpush1.xpose.msra.mxu0 0.0
        %842 = vmatprep.subr.mxu0 0.0
        %843 = vmatpush1.xpose.msra.mxu0 0.0
        %844 = vmatprep.subr.mxu0 0.0
        %845 = vmatpush1.xpose.msra.mxu0 0.0
        %846 = vmatprep.subr.mxu0 0.0
        %847 = vmatpush1.xpose.msra.mxu0 0.0
        %848 = vmatprep.subr.mxu0 0.0
        %849 = vmatpush1.xpose.msra.mxu0 0.0
        %850 = vmatprep.subr.mxu0 0.0
        %851 = vmatpush1.xpose.msra.mxu0 0.0
        %852 = vmatprep.subr.mxu0 0.0
        %853 = vmatpush1.xpose.msra.mxu0 0.0
        %854 = vmatprep.subr.mxu0 0.0
        %855 = vmatpush1.xpose.msra.mxu0 0.0
        %856 = vmatprep.subr.mxu0 0.0
        %857 = vmatpush1.xpose.msra.mxu0 0.0
        %858 = vmatprep.subr.mxu0 0.0
        %859 = vmatpush1.xpose.msra.mxu0 0.0
        %860 = vmatprep.subr.mxu0 0.0
        %861 = vmatpush1.xpose.msra.mxu0 0.0
        %862 = vmatprep.subr.mxu0 0.0
        %863 = vmatpush1.xpose.msra.mxu0 0.0
        %864 = vmatprep.subr.mxu0 0.0
        %865 = vmatpush1.xpose.msra.mxu0 0.0
        %866 = vmatprep.subr.mxu0 0.0
        %867 = vmatpush1.xpose.msra.mxu0 0.0
        %868 = vmatprep.subr.mxu0 0.0
        %869 = vmatpush1.xpose.msra.mxu0 0.0
        %870 = vmatprep.subr.mxu0 0.0
        %871 = vmatpush1.xpose.msra.mxu0 0.0
        %872 = vmatprep.subr.mxu0 0.0
        %873 = vmatpush1.xpose.msra.mxu0 0.0
        %874 = vmatprep.subr.mxu0 0.0
        %875 = vmatpush1.xpose.msra.mxu0 0.0
        %876 = vmatprep.subr.mxu0 0.0
        %877 = vmatpush1.xpose.msra.mxu0 0.0
        %878 = vmatprep.subr.mxu0 0.0
        %879 = vmatpush1.xpose.msra.mxu0 0.0
        %880 = vmatprep.subr.mxu0 0.0
        %881 = vmatpush1.xpose.msra.mxu0 0.0
        %882 = vmatprep.subr.mxu0 0.0
        %883 = vmatpush1.xpose.msra.mxu0 0.0
        %884 = vmatprep.subr.mxu0 0.0
        %885 = vmatpush1.xpose.msra.mxu0 0.0
        %886 = vmatprep.mubr.f32.mxu0 0.0
        %v887 = vand.u32 %v737, 4294901760
        %888 = vmatmul.mubr.f32.gmra.mrb[0].mxu0 %v887
        %v889 = vpop.f32.mrb[0].mxu0
        %v890 = vadd.f32 %v814, %v889
        %v891 = vpop.f32.mrb[0].mxu0
        %892 = vdwg.mxu0
        %893 = vmatprep.subr.mxu0 0.0
        %v894 = vand.u32 %v739, 4294901760
        %v895 = vsub.f32 %v739, %v894
        %896 = vmatpush1.xpose.msra.mxu0 %v895
        %897 = vmatprep.subr.mxu0 0.0
        %898 = vmatpush1.xpose.msra.mxu0 0.0
        %899 = vmatprep.subr.mxu0 0.0
        %900 = vmatpush1.xpose.msra.mxu0 0.0
        %901 = vmatprep.subr.mxu0 0.0
        %902 = vmatpush1.xpose.msra.mxu0 0.0
        %903 = vmatprep.subr.mxu0 0.0
        %904 = vmatpush1.xpose.msra.mxu0 0.0
        %905 = vmatprep.subr.mxu0 0.0
        %906 = vmatpush1.xpose.msra.mxu0 0.0
        %907 = vmatprep.subr.mxu0 0.0
        %908 = vmatpush1.xpose.msra.mxu0 0.0
        %909 = vmatprep.subr.mxu0 0.0
        %910 = vmatpush1.xpose.msra.mxu0 0.0
        %911 = vmatprep.subr.mxu0 0.0
        %912 = vmatpush1.xpose.msra.mxu0 0.0
        %913 = vmatprep.subr.mxu0 0.0
        %914 = vmatpush1.xpose.msra.mxu0 0.0
        %915 = vmatprep.subr.mxu0 0.0
        %916 = vmatpush1.xpose.msra.mxu0 0.0
        %917 = vmatprep.subr.mxu0 0.0
        %918 = vmatpush1.xpose.msra.mxu0 0.0
        %919 = vmatprep.subr.mxu0 0.0
        %920 = vmatpush1.xpose.msra.mxu0 0.0
        %921 = vmatprep.subr.mxu0 0.0
        %922 = vmatpush1.xpose.msra.mxu0 0.0
        %923 = vmatprep.subr.mxu0 0.0
        %924 = vmatpush1.xpose.msra.mxu0 0.0
        %925 = vmatprep.subr.mxu0 0.0
        %926 = vmatpush1.xpose.msra.mxu0 0.0
        %927 = vmatprep.subr.mxu0 0.0
        %928 = vmatpush1.xpose.msra.mxu0 0.0
        %929 = vmatprep.subr.mxu0 0.0
        %930 = vmatpush1.xpose.msra.mxu0 0.0
        %931 = vmatprep.subr.mxu0 0.0
        %932 = vmatpush1.xpose.msra.mxu0 0.0
        %933 = vmatprep.subr.mxu0 0.0
        %934 = vmatpush1.xpose.msra.mxu0 0.0
        %935 = vmatprep.subr.mxu0 0.0
        %936 = vmatpush1.xpose.msra.mxu0 0.0
        %937 = vmatprep.subr.mxu0 0.0
        %938 = vmatpush1.xpose.msra.mxu0 0.0
        %939 = vmatprep.subr.mxu0 0.0
        %940 = vmatpush1.xpose.msra.mxu0 0.0
        %941 = vmatprep.subr.mxu0 0.0
        %942 = vmatpush1.xpose.msra.mxu0 0.0
        %943 = vmatprep.subr.mxu0 0.0
        %944 = vmatpush1.xpose.msra.mxu0 0.0
        %945 = vmatprep.subr.mxu0 0.0
        %946 = vmatpush1.xpose.msra.mxu0 0.0
        %947 = vmatprep.subr.mxu0 0.0
        %948 = vmatpush1.xpose.msra.mxu0 0.0
        %949 = vmatprep.subr.mxu0 0.0
        %950 = vmatpush1.xpose.msra.mxu0 0.0
        %951 = vmatprep.subr.mxu0 0.0
        %952 = vmatpush1.xpose.msra.mxu0 0.0
        %953 = vmatprep.subr.mxu0 0.0
        %954 = vmatpush1.xpose.msra.mxu0 0.0
        %955 = vmatprep.subr.mxu0 0.0
        %956 = vmatpush1.xpose.msra.mxu0 0.0
        %957 = vmatprep.subr.mxu0 0.0
        %958 = vmatpush1.xpose.msra.mxu0 0.0
        %959 = vmatprep.mubr.f32.mxu0 0.0
        %v960 = vand.u32 %v737, 4294901760
        %v961 = vsub.f32 %v737, %v960
        %962 = vmatmul.mubr.f32.gmra.mrb[0].mxu0 %v961
        %v963 = vpop.f32.mrb[0].mxu0
        %v964 = vadd.f32 %v890, %v963
        %v965 = vpop.f32.mrb[0].mxu0
        %966 = vdwg.mxu0
        %967 = vmatprep.subr.mxu0 0.0
        %v968 = vand.u32 %v739, 4294901760
        %969 = vmatpush1.xpose.msra.mxu0 %v968
        %970 = vmatprep.subr.mxu0 0.0
        %971 = vmatpush1.xpose.msra.mxu0 0.0
        %972 = vmatprep.subr.mxu0 0.0
        %973 = vmatpush1.xpose.msra.mxu0 0.0
        %974 = vmatprep.subr.mxu0 0.0
        %975 = vmatpush1.xpose.msra.mxu0 0.0
        %976 = vmatprep.subr.mxu0 0.0
        %977 = vmatpush1.xpose.msra.mxu0 0.0
        %978 = vmatprep.subr.mxu0 0.0
        %979 = vmatpush1.xpose.msra.mxu0 0.0
        %980 = vmatprep.subr.mxu0 0.0
        %981 = vmatpush1.xpose.msra.mxu0 0.0
        %982 = vmatprep.subr.mxu0 0.0
        %983 = vmatpush1.xpose.msra.mxu0 0.0
        %984 = vmatprep.subr.mxu0 0.0
        %985 = vmatpush1.xpose.msra.mxu0 0.0
        %986 = vmatprep.subr.mxu0 0.0
        %987 = vmatpush1.xpose.msra.mxu0 0.0
        %988 = vmatprep.subr.mxu0 0.0
        %989 = vmatpush1.xpose.msra.mxu0 0.0
        %990 = vmatprep.subr.mxu0 0.0
        %991 = vmatpush1.xpose.msra.mxu0 0.0
        %992 = vmatprep.subr.mxu0 0.0
        %993 = vmatpush1.xpose.msra.mxu0 0.0
        %994 = vmatprep.subr.mxu0 0.0
        %995 = vmatpush1.xpose.msra.mxu0 0.0
        %996 = vmatprep.subr.mxu0 0.0
        %997 = vmatpush1.xpose.msra.mxu0 0.0
        %998 = vmatprep.subr.mxu0 0.0
        %999 = vmatpush1.xpose.msra.mxu0 0.0
        %1000 = vmatprep.subr.mxu0 0.0
        %1001 = vmatpush1.xpose.msra.mxu0 0.0
        %1002 = vmatprep.subr.mxu0 0.0
        %1003 = vmatpush1.xpose.msra.mxu0 0.0
        %1004 = vmatprep.subr.mxu0 0.0
        %1005 = vmatpush1.xpose.msra.mxu0 0.0
        %1006 = vmatprep.subr.mxu0 0.0
        %1007 = vmatpush1.xpose.msra.mxu0 0.0
        %1008 = vmatprep.subr.mxu0 0.0
        %1009 = vmatpush1.xpose.msra.mxu0 0.0
        %1010 = vmatprep.subr.mxu0 0.0
        %1011 = vmatpush1.xpose.msra.mxu0 0.0
        %1012 = vmatprep.subr.mxu0 0.0
        %1013 = vmatpush1.xpose.msra.mxu0 0.0
        %1014 = vmatprep.subr.mxu0 0.0
        %1015 = vmatpush1.xpose.msra.mxu0 0.0
        %1016 = vmatprep.subr.mxu0 0.0
        %1017 = vmatpush1.xpose.msra.mxu0 0.0
        %1018 = vmatprep.subr.mxu0 0.0
        %1019 = vmatpush1.xpose.msra.mxu0 0.0
        %1020 = vmatprep.subr.mxu0 0.0
        %1021 = vmatpush1.xpose.msra.mxu0 0.0
        %1022 = vmatprep.subr.mxu0 0.0
        %1023 = vmatpush1.xpose.msra.mxu0 0.0
        %1024 = vmatprep.subr.mxu0 0.0
        %1025 = vmatpush1.xpose.msra.mxu0 0.0
        %1026 = vmatprep.subr.mxu0 0.0
        %1027 = vmatpush1.xpose.msra.mxu0 0.0
        %1028 = vmatprep.subr.mxu0 0.0
        %1029 = vmatpush1.xpose.msra.mxu0 0.0
        %1030 = vmatprep.subr.mxu0 0.0
        %1031 = vmatpush1.xpose.msra.mxu0 0.0
        %1032 = vmatprep.mubr.f32.mxu0 0.0
        %v1033 = vand.u32 %v737, 4294901760
        %v1034 = vsub.f32 %v737, %v1033
        %v1035 = vand.u32 %v1034, 4294901760
        %1036 = vmatmul.mubr.f32.gmra.mrb[0].mxu0 %v1035
        %v1037 = vpop.f32.mrb[0].mxu0
        %v1038 = vadd.f32 %v964, %v1037
        %v1039 = vpop.f32.mrb[0].mxu0
        %1040 = vdwg.mxu0
        %1041 = vmatprep.subr.mxu0 0.0
        %v1042 = vand.u32 %v739, 4294901760
        %v1043 = vsub.f32 %v739, %v1042
        %v1044 = vand.u32 %v1043, 4294901760
        %1045 = vmatpush1.xpose.msra.mxu0 %v1044
        %1046 = vmatprep.subr.mxu0 0.0
        %1047 = vmatpush1.xpose.msra.mxu0 0.0
        %1048 = vmatprep.subr.mxu0 0.0
        %1049 = vmatpush1.xpose.msra.mxu0 0.0
        %1050 = vmatprep.subr.mxu0 0.0
        %1051 = vmatpush1.xpose.msra.mxu0 0.0
        %1052 = vmatprep.subr.mxu0 0.0
        %1053 = vmatpush1.xpose.msra.mxu0 0.0
        %1054 = vmatprep.subr.mxu0 0.0
        %1055 = vmatpush1.xpose.msra.mxu0 0.0
        %1056 = vmatprep.subr.mxu0 0.0
        %1057 = vmatpush1.xpose.msra.mxu0 0.0
        %1058 = vmatprep.subr.mxu0 0.0
        %1059 = vmatpush1.xpose.msra.mxu0 0.0
        %1060 = vmatprep.subr.mxu0 0.0
        %1061 = vmatpush1.xpose.msra.mxu0 0.0
        %1062 = vmatprep.subr.mxu0 0.0
        %1063 = vmatpush1.xpose.msra.mxu0 0.0
        %1064 = vmatprep.subr.mxu0 0.0
        %1065 = vmatpush1.xpose.msra.mxu0 0.0
        %1066 = vmatprep.subr.mxu0 0.0
        %1067 = vmatpush1.xpose.msra.mxu0 0.0
        %1068 = vmatprep.subr.mxu0 0.0
        %1069 = vmatpush1.xpose.msra.mxu0 0.0
        %1070 = vmatprep.subr.mxu0 0.0
        %1071 = vmatpush1.xpose.msra.mxu0 0.0
        %1072 = vmatprep.subr.mxu0 0.0
        %1073 = vmatpush1.xpose.msra.mxu0 0.0
        %1074 = vmatprep.subr.mxu0 0.0
        %1075 = vmatpush1.xpose.msra.mxu0 0.0
        %1076 = vmatprep.subr.mxu0 0.0
        %1077 = vmatpush1.xpose.msra.mxu0 0.0
        %1078 = vmatprep.subr.mxu0 0.0
        %1079 = vmatpush1.xpose.msra.mxu0 0.0
        %1080 = vmatprep.subr.mxu0 0.0
        %1081 = vmatpush1.xpose.msra.mxu0 0.0
        %1082 = vmatprep.subr.mxu0 0.0
        %1083 = vmatpush1.xpose.msra.mxu0 0.0
        %1084 = vmatprep.subr.mxu0 0.0
        %1085 = vmatpush1.xpose.msra.mxu0 0.0
        %1086 = vmatprep.subr.mxu0 0.0
        %1087 = vmatpush1.xpose.msra.mxu0 0.0
        %1088 = vmatprep.subr.mxu0 0.0
        %1089 = vmatpush1.xpose.msra.mxu0 0.0
        %1090 = vmatprep.subr.mxu0 0.0
        %1091 = vmatpush1.xpose.msra.mxu0 0.0
        %1092 = vmatprep.subr.mxu0 0.0
        %1093 = vmatpush1.xpose.msra.mxu0 0.0
        %1094 = vmatprep.subr.mxu0 0.0
        %1095 = vmatpush1.xpose.msra.mxu0 0.0
        %1096 = vmatprep.subr.mxu0 0.0
        %1097 = vmatpush1.xpose.msra.mxu0 0.0
        %1098 = vmatprep.subr.mxu0 0.0
        %1099 = vmatpush1.xpose.msra.mxu0 0.0
        %1100 = vmatprep.subr.mxu0 0.0
        %1101 = vmatpush1.xpose.msra.mxu0 0.0
        %1102 = vmatprep.subr.mxu0 0.0
        %1103 = vmatpush1.xpose.msra.mxu0 0.0
        %1104 = vmatprep.subr.mxu0 0.0
        %1105 = vmatpush1.xpose.msra.mxu0 0.0
        %1106 = vmatprep.subr.mxu0 0.0
        %1107 = vmatpush1.xpose.msra.mxu0 0.0
        %1108 = vmatprep.mubr.f32.mxu0 0.0
        %v1109 = vand.u32 %v737, 4294901760
        %1110 = vmatmul.mubr.f32.gmra.mrb[0].mxu0 %v1109
        %v1111 = vpop.f32.mrb[0].mxu0
        %v1112 = vadd.f32 %v1038, %v1111
        %v1113 = vpop.f32.mrb[0].mxu0
        %1114 = vdwg.mxu0
        %1115 = vmatprep.subr.mxu0 0.0
        %v1116 = vand.u32 %v739, 4294901760
        %1117 = vmatpush1.xpose.msra.mxu0 %v1116
        %1118 = vmatprep.subr.mxu0 0.0
        %1119 = vmatpush1.xpose.msra.mxu0 0.0
        %1120 = vmatprep.subr.mxu0 0.0
        %1121 = vmatpush1.xpose.msra.mxu0 0.0
        %1122 = vmatprep.subr.mxu0 0.0
        %1123 = vmatpush1.xpose.msra.mxu0 0.0
        %1124 = vmatprep.subr.mxu0 0.0
        %1125 = vmatpush1.xpose.msra.mxu0 0.0
        %1126 = vmatprep.subr.mxu0 0.0
        %1127 = vmatpush1.xpose.msra.mxu0 0.0
        %1128 = vmatprep.subr.mxu0 0.0
        %1129 = vmatpush1.xpose.msra.mxu0 0.0
        %1130 = vmatprep.subr.mxu0 0.0
        %1131 = vmatpush1.xpose.msra.mxu0 0.0
        %1132 = vmatprep.subr.mxu0 0.0
        %1133 = vmatpush1.xpose.msra.mxu0 0.0
        %1134 = vmatprep.subr.mxu0 0.0
        %1135 = vmatpush1.xpose.msra.mxu0 0.0
        %1136 = vmatprep.subr.mxu0 0.0
        %1137 = vmatpush1.xpose.msra.mxu0 0.0
        %1138 = vmatprep.subr.mxu0 0.0
        %1139 = vmatpush1.xpose.msra.mxu0 0.0
        %1140 = vmatprep.subr.mxu0 0.0
        %1141 = vmatpush1.xpose.msra.mxu0 0.0
        %1142 = vmatprep.subr.mxu0 0.0
        %1143 = vmatpush1.xpose.msra.mxu0 0.0
        %1144 = vmatprep.subr.mxu0 0.0
        %1145 = vmatpush1.xpose.msra.mxu0 0.0
        %1146 = vmatprep.subr.mxu0 0.0
        %1147 = vmatpush1.xpose.msra.mxu0 0.0
        %1148 = vmatprep.subr.mxu0 0.0
        %1149 = vmatpush1.xpose.msra.mxu0 0.0
        %1150 = vmatprep.subr.mxu0 0.0
        %1151 = vmatpush1.xpose.msra.mxu0 0.0
        %1152 = vmatprep.subr.mxu0 0.0
        %1153 = vmatpush1.xpose.msra.mxu0 0.0
        %1154 = vmatprep.subr.mxu0 0.0
        %1155 = vmatpush1.xpose.msra.mxu0 0.0
        %1156 = vmatprep.subr.mxu0 0.0
        %1157 = vmatpush1.xpose.msra.mxu0 0.0
        %1158 = vmatprep.subr.mxu0 0.0
        %1159 = vmatpush1.xpose.msra.mxu0 0.0
        %1160 = vmatprep.subr.mxu0 0.0
        %1161 = vmatpush1.xpose.msra.mxu0 0.0
        %1162 = vmatprep.subr.mxu0 0.0
        %1163 = vmatpush1.xpose.msra.mxu0 0.0
        %1164 = vmatprep.subr.mxu0 0.0
        %1165 = vmatpush1.xpose.msra.mxu0 0.0
        %1166 = vmatprep.subr.mxu0 0.0
        %1167 = vmatpush1.xpose.msra.mxu0 0.0
        %1168 = vmatprep.subr.mxu0 0.0
        %1169 = vmatpush1.xpose.msra.mxu0 0.0
        %1170 = vmatprep.subr.mxu0 0.0
        %1171 = vmatpush1.xpose.msra.mxu0 0.0
        %1172 = vmatprep.subr.mxu0 0.0
        %1173 = vmatpush1.xpose.msra.mxu0 0.0
        %1174 = vmatprep.subr.mxu0 0.0
        %1175 = vmatpush1.xpose.msra.mxu0 0.0
        %1176 = vmatprep.subr.mxu0 0.0
        %1177 = vmatpush1.xpose.msra.mxu0 0.0
        %1178 = vmatprep.subr.mxu0 0.0
        %1179 = vmatpush1.xpose.msra.mxu0 0.0
        %1180 = vmatprep.mubr.f32.mxu0 0.0
        %v1181 = vand.u32 %v737, 4294901760
        %1182 = vmatmul.mubr.f32.gmra.mrb[0].mxu0 %v1181
        %v1183 = vpop.f32.mrb[0].mxu0
        %v1184 = vadd.f32 %v1112, %v1183
        %v1185 = vpop.f32.mrb[0].mxu0
        %1186 = vdwg.mxu0
        %v1188 = vlaneseq
        %v1189 = vshrl.u32 %v1188, 7
        %v1190 = vsub.s32 0, %v1189
        %v1191 = vrot.slane %v235, %v1190
        %v1193 = vadd.f32 %v1184, %v1191
        %v1194 = vsel %vm736, %v1193, -inf
        %1195 = vmax.xlane.f32.xlu0 %v1194
        %v1196 = vpop.xlane.xlu0 %1195
        %v1197 = vsub.f32 %v1193, %v1196
        %v1198 = vmul.f32 %v1197, 1.442695
        %v1199 = vpow.pop %v1198
        %v1200 = vsel %vm736, %v1199, 0.0
        %1201 = vadd.xlane.f32.xlu0 %v1200
        %v1202 = vpop.xlane.xlu0 %1201
        %v1203 = vrcp.pop %v1202
        %v1204 = vmul.f32 %v1199, %v1203
        %1205 = vrot.lane.b32.xlu0 %v730, 64
        %v1206 = vpop.permute.xlu0 %1205
        %v1209 = vsel %vm736, %v1204, 0
        %1211 = vmatprep.subr.mxu0 0.0
        %v1212 = vand.u32 %v1206, 4294901760
        %1213 = vmatpush1.msra.mxu0 %v1212
        %1214 = vmatprep.subr.mxu0 0.0
        %1215 = vmatpush1.msra.mxu0 0.0
        %1216 = vmatprep.subr.mxu0 0.0
        %1217 = vmatpush1.msra.mxu0 0.0
        %1218 = vmatprep.subr.mxu0 0.0
        %1219 = vmatpush1.msra.mxu0 0.0
        %1220 = vmatprep.subr.mxu0 0.0
        %1221 = vmatpush1.msra.mxu0 0.0
        %1222 = vmatprep.subr.mxu0 0.0
        %1223 = vmatpush1.msra.mxu0 0.0
        %1224 = vmatprep.subr.mxu0 0.0
        %1225 = vmatpush1.msra.mxu0 0.0
        %1226 = vmatprep.subr.mxu0 0.0
        %1227 = vmatpush1.msra.mxu0 0.0
        %1228 = vmatprep.subr.mxu0 0.0
        %1229 = vmatpush1.msra.mxu0 0.0
        %1230 = vmatprep.subr.mxu0 0.0
        %1231 = vmatpush1.msra.mxu0 0.0
        %1232 = vmatprep.subr.mxu0 0.0
        %1233 = vmatpush1.msra.mxu0 0.0
        %1234 = vmatprep.subr.mxu0 0.0
        %1235 = vmatpush1.msra.mxu0 0.0
        %1236 = vmatprep.subr.mxu0 0.0
        %1237 = vmatpush1.msra.mxu0 0.0
        %1238 = vmatprep.subr.mxu0 0.0
        %1239 = vmatpush1.msra.mxu0 0.0
        %1240 = vmatprep.subr.mxu0 0.0
        %1241 = vmatpush1.msra.mxu0 0.0
        %1242 = vmatprep.subr.mxu0 0.0
        %1243 = vmatpush1.msra.mxu0 0.0
        %1244 = vmatprep.subr.mxu0 0.0
        %1245 = vmatpush1.msra.mxu0 0.0
        %1246 = vmatprep.subr.mxu0 0.0
        %1247 = vmatpush1.msra.mxu0 0.0
        %1248 = vmatprep.subr.mxu0 0.0
        %1249 = vmatpush1.msra.mxu0 0.0
        %1250 = vmatprep.subr.mxu0 0.0
        %1251 = vmatpush1.msra.mxu0 0.0
        %1252 = vmatprep.subr.mxu0 0.0
        %1253 = vmatpush1.msra.mxu0 0.0
        %1254 = vmatprep.subr.mxu0 0.0
        %1255 = vmatpush1.msra.mxu0 0.0
        %1256 = vmatprep.subr.mxu0 0.0
        %1257 = vmatpush1.msra.mxu0 0.0
        %1258 = vmatprep.subr.mxu0 0.0
        %1259 = vmatpush1.msra.mxu0 0.0
        %1260 = vmatprep.subr.mxu0 0.0
        %1261 = vmatpush1.msra.mxu0 0.0
        %1262 = vmatprep.subr.mxu0 0.0
        %1263 = vmatpush1.msra.mxu0 0.0
        %1264 = vmatprep.subr.mxu0 0.0
        %1265 = vmatpush1.msra.mxu0 0.0
        %1266 = vmatprep.subr.mxu0 0.0
        %1267 = vmatpush1.msra.mxu0 0.0
        %1268 = vmatprep.subr.mxu0 0.0
        %1269 = vmatpush1.msra.mxu0 0.0
        %1270 = vmatprep.subr.mxu0 0.0
        %1271 = vmatpush1.msra.mxu0 0.0
        %1272 = vmatprep.subr.mxu0 0.0
        %1273 = vmatpush1.msra.mxu0 0.0
        %1274 = vmatprep.subr.mxu0 0.0
        %1275 = vmatpush1.msra.mxu0 0.0
        %1276 = vmatprep.mubr.f32.mxu0 0.0
        %v1277 = vand.u32 %v1209, 4294901760
        %v1278 = vsub.f32 %v1209, %v1277
        %v1279 = vand.u32 %v1278, 4294901760
        %v1280 = vsub.f32 %v1278, %v1279
        %v1281 = vand.u32 %v1280, 4294901760
        %1282 = vmatmul.mubr.f32.gmra.mrb[0].mxu0 %v1281
        %v1283 = vpop.f32.mrb[0].mxu0
        %v1284 = vadd.f32 0.0, %v1283
        %v1285 = vpop.f32.mrb[0].mxu0
        %1286 = vdwg.mxu0
        %1287 = vmatprep.subr.mxu0 0.0
        %v1288 = vand.u32 %v1206, 4294901760
        %v1289 = vsub.f32 %v1206, %v1288
        %v1290 = vand.u32 %v1289, 4294901760
        %v1291 = vsub.f32 %v1289, %v1290
        %v1292 = vand.u32 %v1291, 4294901760
        %1293 = vmatpush1.msra.mxu0 %v1292
        %1294 = vmatprep.subr.mxu0 0.0
        %1295 = vmatpush1.msra.mxu0 0.0
        %1296 = vmatprep.subr.mxu0 0.0
        %1297 = vmatpush1.msra.mxu0 0.0
        %1298 = vmatprep.subr.mxu0 0.0
        %1299 = vmatpush1.msra.mxu0 0.0
        %1300 = vmatprep.subr.mxu0 0.0
        %1301 = vmatpush1.msra.mxu0 0.0
        %1302 = vmatprep.subr.mxu0 0.0
        %1303 = vmatpush1.msra.mxu0 0.0
        %1304 = vmatprep.subr.mxu0 0.0
        %1305 = vmatpush1.msra.mxu0 0.0
        %1306 = vmatprep.subr.mxu0 0.0
        %1307 = vmatpush1.msra.mxu0 0.0
        %1308 = vmatprep.subr.mxu0 0.0
        %1309 = vmatpush1.msra.mxu0 0.0
        %1310 = vmatprep.subr.mxu0 0.0
        %1311 = vmatpush1.msra.mxu0 0.0
        %1312 = vmatprep.subr.mxu0 0.0
        %1313 = vmatpush1.msra.mxu0 0.0
        %1314 = vmatprep.subr.mxu0 0.0
        %1315 = vmatpush1.msra.mxu0 0.0
        %1316 = vmatprep.subr.mxu0 0.0
        %1317 = vmatpush1.msra.mxu0 0.0
        %1318 = vmatprep.subr.mxu0 0.0
        %1319 = vmatpush1.msra.mxu0 0.0
        %1320 = vmatprep.subr.mxu0 0.0
        %1321 = vmatpush1.msra.mxu0 0.0
        %1322 = vmatprep.subr.mxu0 0.0
        %1323 = vmatpush1.msra.mxu0 0.0
        %1324 = vmatprep.subr.mxu0 0.0
        %1325 = vmatpush1.msra.mxu0 0.0
        %1326 = vmatprep.subr.mxu0 0.0
        %1327 = vmatpush1.msra.mxu0 0.0
        %1328 = vmatprep.subr.mxu0 0.0
        %1329 = vmatpush1.msra.mxu0 0.0
        %1330 = vmatprep.subr.mxu0 0.0
        %1331 = vmatpush1.msra.mxu0 0.0
        %1332 = vmatprep.subr.mxu0 0.0
        %1333 = vmatpush1.msra.mxu0 0.0
        %1334 = vmatprep.subr.mxu0 0.0
        %1335 = vmatpush1.msra.mxu0 0.0
        %1336 = vmatprep.subr.mxu0 0.0
        %1337 = vmatpush1.msra.mxu0 0.0
        %1338 = vmatprep.subr.mxu0 0.0
        %1339 = vmatpush1.msra.mxu0 0.0
        %1340 = vmatprep.subr.mxu0 0.0
        %1341 = vmatpush1.msra.mxu0 0.0
        %1342 = vmatprep.subr.mxu0 0.0
        %1343 = vmatpush1.msra.mxu0 0.0
        %1344 = vmatprep.subr.mxu0 0.0
        %1345 = vmatpush1.msra.mxu0 0.0
        %1346 = vmatprep.subr.mxu0 0.0
        %1347 = vmatpush1.msra.mxu0 0.0
        %1348 = vmatprep.subr.mxu0 0.0
        %1349 = vmatpush1.msra.mxu0 0.0
        %1350 = vmatprep.subr.mxu0 0.0
        %1351 = vmatpush1.msra.mxu0 0.0
        %1352 = vmatprep.subr.mxu0 0.0
        %1353 = vmatpush1.msra.mxu0 0.0
        %1354 = vmatprep.subr.mxu0 0.0
        %1355 = vmatpush1.msra.mxu0 0.0
        %1356 = vmatprep.mubr.f32.mxu0 0.0
        %v1357 = vand.u32 %v1209, 4294901760
        %1358 = vmatmul.mubr.f32.gmra.mrb[0].mxu0 %v1357
        %v1359 = vpop.f32.mrb[0].mxu0
        %v1360 = vadd.f32 %v1284, %v1359
        %v1361 = vpop.f32.mrb[0].mxu0
        %1362 = vdwg.mxu0
        %1363 = vmatprep.subr.mxu0 0.0
        %v1364 = vand.u32 %v1206, 4294901760
        %v1365 = vsub.f32 %v1206, %v1364
        %1366 = vmatpush1.msra.mxu0 %v1365
        %1367 = vmatprep.subr.mxu0 0.0
        %1368 = vmatpush1.msra.mxu0 0.0
        %1369 = vmatprep.subr.mxu0 0.0
        %1370 = vmatpush1.msra.mxu0 0.0
        %1371 = vmatprep.subr.mxu0 0.0
        %1372 = vmatpush1.msra.mxu0 0.0
        %1373 = vmatprep.subr.mxu0 0.0
        %1374 = vmatpush1.msra.mxu0 0.0
        %1375 = vmatprep.subr.mxu0 0.0
        %1376 = vmatpush1.msra.mxu0 0.0
        %1377 = vmatprep.subr.mxu0 0.0
        %1378 = vmatpush1.msra.mxu0 0.0
        %1379 = vmatprep.subr.mxu0 0.0
        %1380 = vmatpush1.msra.mxu0 0.0
        %1381 = vmatprep.subr.mxu0 0.0
        %1382 = vmatpush1.msra.mxu0 0.0
        %1383 = vmatprep.subr.mxu0 0.0
        %1384 = vmatpush1.msra.mxu0 0.0
        %1385 = vmatprep.subr.mxu0 0.0
        %1386 = vmatpush1.msra.mxu0 0.0
        %1387 = vmatprep.subr.mxu0 0.0
        %1388 = vmatpush1.msra.mxu0 0.0
        %1389 = vmatprep.subr.mxu0 0.0
        %1390 = vmatpush1.msra.mxu0 0.0
        %1391 = vmatprep.subr.mxu0 0.0
        %1392 = vmatpush1.msra.mxu0 0.0
        %1393 = vmatprep.subr.mxu0 0.0
        %1394 = vmatpush1.msra.mxu0 0.0
        %1395 = vmatprep.subr.mxu0 0.0
        %1396 = vmatpush1.msra.mxu0 0.0
        %1397 = vmatprep.subr.mxu0 0.0
        %1398 = vmatpush1.msra.mxu0 0.0
        %1399 = vmatprep.subr.mxu0 0.0
        %1400 = vmatpush1.msra.mxu0 0.0
        %1401 = vmatprep.subr.mxu0 0.0
        %1402 = vmatpush1.msra.mxu0 0.0
        %1403 = vmatprep.subr.mxu0 0.0
        %1404 = vmatpush1.msra.mxu0 0.0
        %1405 = vmatprep.subr.mxu0 0.0
        %1406 = vmatpush1.msra.mxu0 0.0
        %1407 = vmatprep.subr.mxu0 0.0
        %1408 = vmatpush1.msra.mxu0 0.0
        %1409 = vmatprep.subr.mxu0 0.0
        %1410 = vmatpush1.msra.mxu0 0.0
        %1411 = vmatprep.subr.mxu0 0.0
        %1412 = vmatpush1.msra.mxu0 0.0
        %1413 = vmatprep.subr.mxu0 0.0
        %1414 = vmatpush1.msra.mxu0 0.0
        %1415 = vmatprep.subr.mxu0 0.0
        %1416 = vmatpush1.msra.mxu0 0.0
        %1417 = vmatprep.subr.mxu0 0.0
        %1418 = vmatpush1.msra.mxu0 0.0
        %1419 = vmatprep.subr.mxu0 0.0
        %1420 = vmatpush1.msra.mxu0 0.0
        %1421 = vmatprep.subr.mxu0 0.0
        %1422 = vmatpush1.msra.mxu0 0.0
        %1423 = vmatprep.subr.mxu0 0.0
        %1424 = vmatpush1.msra.mxu0 0.0
        %1425 = vmatprep.subr.mxu0 0.0
        %1426 = vmatpush1.msra.mxu0 0.0
        %1427 = vmatprep.subr.mxu0 0.0
        %1428 = vmatpush1.msra.mxu0 0.0
        %1429 = vmatprep.mubr.f32.mxu0 0.0
        %v1430 = vand.u32 %v1209, 4294901760
        %v1431 = vsub.f32 %v1209, %v1430
        %1432 = vmatmul.mubr.f32.gmra.mrb[0].mxu0 %v1431
        %v1433 = vpop.f32.mrb[0].mxu0
        %v1434 = vadd.f32 %v1360, %v1433
        %v1435 = vpop.f32.mrb[0].mxu0
        %1436 = vdwg.mxu0
        %1437 = vmatprep.subr.mxu0 0.0
        %v1438 = vand.u32 %v1206, 4294901760
        %1439 = vmatpush1.msra.mxu0 %v1438
        %1440 = vmatprep.subr.mxu0 0.0
        %1441 = vmatpush1.msra.mxu0 0.0
        %1442 = vmatprep.subr.mxu0 0.0
        %1443 = vmatpush1.msra.mxu0 0.0
        %1444 = vmatprep.subr.mxu0 0.0
        %1445 = vmatpush1.msra.mxu0 0.0
        %1446 = vmatprep.subr.mxu0 0.0
        %1447 = vmatpush1.msra.mxu0 0.0
        %1448 = vmatprep.subr.mxu0 0.0
        %1449 = vmatpush1.msra.mxu0 0.0
        %1450 = vmatprep.subr.mxu0 0.0
        %1451 = vmatpush1.msra.mxu0 0.0
        %1452 = vmatprep.subr.mxu0 0.0
        %1453 = vmatpush1.msra.mxu0 0.0
        %1454 = vmatprep.subr.mxu0 0.0
        %1455 = vmatpush1.msra.mxu0 0.0
        %1456 = vmatprep.subr.mxu0 0.0
        %1457 = vmatpush1.msra.mxu0 0.0
        %1458 = vmatprep.subr.mxu0 0.0
        %1459 = vmatpush1.msra.mxu0 0.0
        %1460 = vmatprep.subr.mxu0 0.0
        %1461 = vmatpush1.msra.mxu0 0.0
        %1462 = vmatprep.subr.mxu0 0.0
        %1463 = vmatpush1.msra.mxu0 0.0
        %1464 = vmatprep.subr.mxu0 0.0
        %1465 = vmatpush1.msra.mxu0 0.0
        %1466 = vmatprep.subr.mxu0 0.0
        %1467 = vmatpush1.msra.mxu0 0.0
        %1468 = vmatprep.subr.mxu0 0.0
        %1469 = vmatpush1.msra.mxu0 0.0
        %1470 = vmatprep.subr.mxu0 0.0
        %1471 = vmatpush1.msra.mxu0 0.0
        %1472 = vmatprep.subr.mxu0 0.0
        %1473 = vmatpush1.msra.mxu0 0.0
        %1474 = vmatprep.subr.mxu0 0.0
        %1475 = vmatpush1.msra.mxu0 0.0
        %1476 = vmatprep.subr.mxu0 0.0
        %1477 = vmatpush1.msra.mxu0 0.0
        %1478 = vmatprep.subr.mxu0 0.0
        %1479 = vmatpush1.msra.mxu0 0.0
        %1480 = vmatprep.subr.mxu0 0.0
        %1481 = vmatpush1.msra.mxu0 0.0
        %1482 = vmatprep.subr.mxu0 0.0
        %1483 = vmatpush1.msra.mxu0 0.0
        %1484 = vmatprep.subr.mxu0 0.0
        %1485 = vmatpush1.msra.mxu0 0.0
        %1486 = vmatprep.subr.mxu0 0.0
        %1487 = vmatpush1.msra.mxu0 0.0
        %1488 = vmatprep.subr.mxu0 0.0
        %1489 = vmatpush1.msra.mxu0 0.0
        %1490 = vmatprep.subr.mxu0 0.0
        %1491 = vmatpush1.msra.mxu0 0.0
        %1492 = vmatprep.subr.mxu0 0.0
        %1493 = vmatpush1.msra.mxu0 0.0
        %1494 = vmatprep.subr.mxu0 0.0
        %1495 = vmatpush1.msra.mxu0 0.0
        %1496 = vmatprep.subr.mxu0 0.0
        %1497 = vmatpush1.msra.mxu0 0.0
        %1498 = vmatprep.subr.mxu0 0.0
        %1499 = vmatpush1.msra.mxu0 0.0
        %1500 = vmatprep.subr.mxu0 0.0
        %1501 = vmatpush1.msra.mxu0 0.0
        %1502 = vmatprep.mubr.f32.mxu0 0.0
        %v1503 = vand.u32 %v1209, 4294901760
        %v1504 = vsub.f32 %v1209, %v1503
        %v1505 = vand.u32 %v1504, 4294901760
        %1506 = vmatmul.mubr.f32.gmra.mrb[0].mxu0 %v1505
        %v1507 = vpop.f32.mrb[0].mxu0
        %v1508 = vadd.f32 %v1434, %v1507
        %v1509 = vpop.f32.mrb[0].mxu0
        %1510 = vdwg.mxu0
        %1511 = vmatprep.subr.mxu0 0.0
        %v1512 = vand.u32 %v1206, 4294901760
        %v1513 = vsub.f32 %v1206, %v1512
        %v1514 = vand.u32 %v1513, 4294901760
        %1515 = vmatpush1.msra.mxu0 %v1514
        %1516 = vmatprep.subr.mxu0 0.0
        %1517 = vmatpush1.msra.mxu0 0.0
        %1518 = vmatprep.subr.mxu0 0.0
        %1519 = vmatpush1.msra.mxu0 0.0
        %1520 = vmatprep.subr.mxu0 0.0
        %1521 = vmatpush1.msra.mxu0 0.0
        %1522 = vmatprep.subr.mxu0 0.0
        %1523 = vmatpush1.msra.mxu0 0.0
        %1524 = vmatprep.subr.mxu0 0.0
        %1525 = vmatpush1.msra.mxu0 0.0
        %1526 = vmatprep.subr.mxu0 0.0
        %1527 = vmatpush1.msra.mxu0 0.0
        %1528 = vmatprep.subr.mxu0 0.0
        %1529 = vmatpush1.msra.mxu0 0.0
        %1530 = vmatprep.subr.mxu0 0.0
        %1531 = vmatpush1.msra.mxu0 0.0
        %1532 = vmatprep.subr.mxu0 0.0
        %1533 = vmatpush1.msra.mxu0 0.0
        %1534 = vmatprep.subr.mxu0 0.0
        %1535 = vmatpush1.msra.mxu0 0.0
        %1536 = vmatprep.subr.mxu0 0.0
        %1537 = vmatpush1.msra.mxu0 0.0
        %1538 = vmatprep.subr.mxu0 0.0
        %1539 = vmatpush1.msra.mxu0 0.0
        %1540 = vmatprep.subr.mxu0 0.0
        %1541 = vmatpush1.msra.mxu0 0.0
        %1542 = vmatprep.subr.mxu0 0.0
        %1543 = vmatpush1.msra.mxu0 0.0
        %1544 = vmatprep.subr.mxu0 0.0
        %1545 = vmatpush1.msra.mxu0 0.0
        %1546 = vmatprep.subr.mxu0 0.0
        %1547 = vmatpush1.msra.mxu0 0.0
        %1548 = vmatprep.subr.mxu0 0.0
        %1549 = vmatpush1.msra.mxu0 0.0
        %1550 = vmatprep.subr.mxu0 0.0
        %1551 = vmatpush1.msra.mxu0 0.0
        %1552 = vmatprep.subr.mxu0 0.0
        %1553 = vmatpush1.msra.mxu0 0.0
        %1554 = vmatprep.subr.mxu0 0.0
        %1555 = vmatpush1.msra.mxu0 0.0
        %1556 = vmatprep.subr.mxu0 0.0
        %1557 = vmatpush1.msra.mxu0 0.0
        %1558 = vmatprep.subr.mxu0 0.0
        %1559 = vmatpush1.msra.mxu0 0.0
        %1560 = vmatprep.subr.mxu0 0.0
        %1561 = vmatpush1.msra.mxu0 0.0
        %1562 = vmatprep.subr.mxu0 0.0
        %1563 = vmatpush1.msra.mxu0 0.0
        %1564 = vmatprep.subr.mxu0 0.0
        %1565 = vmatpush1.msra.mxu0 0.0
        %1566 = vmatprep.subr.mxu0 0.0
        %1567 = vmatpush1.msra.mxu0 0.0
        %1568 = vmatprep.subr.mxu0 0.0
        %1569 = vmatpush1.msra.mxu0 0.0
        %1570 = vmatprep.subr.mxu0 0.0
        %1571 = vmatpush1.msra.mxu0 0.0
        %1572 = vmatprep.subr.mxu0 0.0
        %1573 = vmatpush1.msra.mxu0 0.0
        %1574 = vmatprep.subr.mxu0 0.0
        %1575 = vmatpush1.msra.mxu0 0.0
        %1576 = vmatprep.subr.mxu0 0.0
        %1577 = vmatpush1.msra.mxu0 0.0
        %1578 = vmatprep.mubr.f32.mxu0 0.0
        %v1579 = vand.u32 %v1209, 4294901760
        %1580 = vmatmul.mubr.f32.gmra.mrb[0].mxu0 %v1579
        %v1581 = vpop.f32.mrb[0].mxu0
        %v1582 = vadd.f32 %v1508, %v1581
        %v1583 = vpop.f32.mrb[0].mxu0
        %1584 = vdwg.mxu0
        %1585 = vmatprep.subr.mxu0 0.0
        %v1586 = vand.u32 %v1206, 4294901760
        %1587 = vmatpush1.msra.mxu0 %v1586
        %1588 = vmatprep.subr.mxu0 0.0
        %1589 = vmatpush1.msra.mxu0 0.0
        %1590 = vmatprep.subr.mxu0 0.0
        %1591 = vmatpush1.msra.mxu0 0.0
        %1592 = vmatprep.subr.mxu0 0.0
        %1593 = vmatpush1.msra.mxu0 0.0
        %1594 = vmatprep.subr.mxu0 0.0
        %1595 = vmatpush1.msra.mxu0 0.0
        %1596 = vmatprep.subr.mxu0 0.0
        %1597 = vmatpush1.msra.mxu0 0.0
        %1598 = vmatprep.subr.mxu0 0.0
        %1599 = vmatpush1.msra.mxu0 0.0
        %1600 = vmatprep.subr.mxu0 0.0
        %1601 = vmatpush1.msra.mxu0 0.0
        %1602 = vmatprep.subr.mxu0 0.0
        %1603 = vmatpush1.msra.mxu0 0.0
        %1604 = vmatprep.subr.mxu0 0.0
        %1605 = vmatpush1.msra.mxu0 0.0
        %1606 = vmatprep.subr.mxu0 0.0
        %1607 = vmatpush1.msra.mxu0 0.0
        %1608 = vmatprep.subr.mxu0 0.0
        %1609 = vmatpush1.msra.mxu0 0.0
        %1610 = vmatprep.subr.mxu0 0.0
        %1611 = vmatpush1.msra.mxu0 0.0
        %1612 = vmatprep.subr.mxu0 0.0
        %1613 = vmatpush1.msra.mxu0 0.0
        %1614 = vmatprep.subr.mxu0 0.0
        %1615 = vmatpush1.msra.mxu0 0.0
        %1616 = vmatprep.subr.mxu0 0.0
        %1617 = vmatpush1.msra.mxu0 0.0
        %1618 = vmatprep.subr.mxu0 0.0
        %1619 = vmatpush1.msra.mxu0 0.0
        %1620 = vmatprep.subr.mxu0 0.0
        %1621 = vmatpush1.msra.mxu0 0.0
        %1622 = vmatprep.subr.mxu0 0.0
        %1623 = vmatpush1.msra.mxu0 0.0
        %1624 = vmatprep.subr.mxu0 0.0
        %1625 = vmatpush1.msra.mxu0 0.0
        %1626 = vmatprep.subr.mxu0 0.0
        %1627 = vmatpush1.msra.mxu0 0.0
        %1628 = vmatprep.subr.mxu0 0.0
        %1629 = vmatpush1.msra.mxu0 0.0
        %1630 = vmatprep.subr.mxu0 0.0
        %1631 = vmatpush1.msra.mxu0 0.0
        %1632 = vmatprep.subr.mxu0 0.0
        %1633 = vmatpush1.msra.mxu0 0.0
        %1634 = vmatprep.subr.mxu0 0.0
        %1635 = vmatpush1.msra.mxu0 0.0
        %1636 = vmatprep.subr.mxu0 0.0
        %1637 = vmatpush1.msra.mxu0 0.0
        %1638 = vmatprep.subr.mxu0 0.0
        %1639 = vmatpush1.msra.mxu0 0.0
        %1640 = vmatprep.subr.mxu0 0.0
        %1641 = vmatpush1.msra.mxu0 0.0
        %1642 = vmatprep.subr.mxu0 0.0
        %1643 = vmatpush1.msra.mxu0 0.0
        %1644 = vmatprep.subr.mxu0 0.0
        %1645 = vmatpush1.msra.mxu0 0.0
        %1646 = vmatprep.subr.mxu0 0.0
        %1647 = vmatpush1.msra.mxu0 0.0
        %1648 = vmatprep.subr.mxu0 0.0
        %1649 = vmatpush1.msra.mxu0 0.0
        %1650 = vmatprep.mubr.f32.mxu0 0.0
        %v1651 = vand.u32 %v1209, 4294901760
        %1652 = vmatmul.mubr.f32.gmra.mrb[0].mxu0 %v1651
        %v1653 = vpop.f32.mrb[0].mxu0
        %v1654 = vadd.f32 %v1582, %v1653
        %v1655 = vpop.f32.mrb[0].mxu0
        %1656 = vdwg.mxu0
        %1657 = vrot.lane.b32.xlu0 %v730, 120
        %v1658 = vpop.permute.xlu0 %1657
        %1659 = vrot.lane.b32.xlu0 %v730, 88
        %v1660 = vpop.permute.xlu0 %1659
        %v1661 = vsel %vm736, %v1658, 0
        %v1663 = vsel %vm736, %v1660, 0
        %1665 = vmatprep.subr.mxu0 0.0
        %v1666 = vand.u32 %v1663, 4294901760
        %1667 = vmatpush1.xpose.msra.mxu0 %v1666
        %1668 = vmatprep.subr.mxu0 0.0
        %1669 = vmatpush1.xpose.msra.mxu0 0.0
        %1670 = vmatprep.subr.mxu0 0.0
        %1671 = vmatpush1.xpose.msra.mxu0 0.0
        %1672 = vmatprep.subr.mxu0 0.0
        %1673 = vmatpush1.xpose.msra.mxu0 0.0
        %1674 = vmatprep.subr.mxu0 0.0
        %1675 = vmatpush1.xpose.msra.mxu0 0.0
        %1676 = vmatprep.subr.mxu0 0.0
        %1677 = vmatpush1.xpose.msra.mxu0 0.0
        %1678 = vmatprep.subr.mxu0 0.0
        %1679 = vmatpush1.xpose.msra.mxu0 0.0
        %1680 = vmatprep.subr.mxu0 0.0
        %1681 = vmatpush1.xpose.msra.mxu0 0.0
        %1682 = vmatprep.subr.mxu0 0.0
        %1683 = vmatpush1.xpose.msra.mxu0 0.0
        %1684 = vmatprep.subr.mxu0 0.0
        %1685 = vmatpush1.xpose.msra.mxu0 0.0
        %1686 = vmatprep.subr.mxu0 0.0
        %1687 = vmatpush1.xpose.msra.mxu0 0.0
        %1688 = vmatprep.subr.mxu0 0.0
        %1689 = vmatpush1.xpose.msra.mxu0 0.0
        %1690 = vmatprep.subr.mxu0 0.0
        %1691 = vmatpush1.xpose.msra.mxu0 0.0
        %1692 = vmatprep.subr.mxu0 0.0
        %1693 = vmatpush1.xpose.msra.mxu0 0.0
        %1694 = vmatprep.subr.mxu0 0.0
        %1695 = vmatpush1.xpose.msra.mxu0 0.0
        %1696 = vmatprep.subr.mxu0 0.0
        %1697 = vmatpush1.xpose.msra.mxu0 0.0
        %1698 = vmatprep.subr.mxu0 0.0
        %1699 = vmatpush1.xpose.msra.mxu0 0.0
        %1700 = vmatprep.subr.mxu0 0.0
        %1701 = vmatpush1.xpose.msra.mxu0 0.0
        %1702 = vmatprep.subr.mxu0 0.0
        %1703 = vmatpush1.xpose.msra.mxu0 0.0
        %1704 = vmatprep.subr.mxu0 0.0
        %1705 = vmatpush1.xpose.msra.mxu0 0.0
        %1706 = vmatprep.subr.mxu0 0.0
        %1707 = vmatpush1.xpose.msra.mxu0 0.0
        %1708 = vmatprep.subr.mxu0 0.0
        %1709 = vmatpush1.xpose.msra.mxu0 0.0
        %1710 = vmatprep.subr.mxu0 0.0
        %1711 = vmatpush1.xpose.msra.mxu0 0.0
        %1712 = vmatprep.subr.mxu0 0.0
        %1713 = vmatpush1.xpose.msra.mxu0 0.0
        %1714 = vmatprep.subr.mxu0 0.0
        %1715 = vmatpush1.xpose.msra.mxu0 0.0
        %1716 = vmatprep.subr.mxu0 0.0
        %1717 = vmatpush1.xpose.msra.mxu0 0.0
        %1718 = vmatprep.subr.mxu0 0.0
        %1719 = vmatpush1.xpose.msra.mxu0 0.0
        %1720 = vmatprep.subr.mxu0 0.0
        %1721 = vmatpush1.xpose.msra.mxu0 0.0
        %1722 = vmatprep.subr.mxu0 0.0
        %1723 = vmatpush1.xpose.msra.mxu0 0.0
        %1724 = vmatprep.subr.mxu0 0.0
        %1725 = vmatpush1.xpose.msra.mxu0 0.0
        %1726 = vmatprep.subr.mxu0 0.0
        %1727 = vmatpush1.xpose.msra.mxu0 0.0
        %1728 = vmatprep.subr.mxu0 0.0
        %1729 = vmatpush1.xpose.msra.mxu0 0.0
        %1730 = vmatprep.mubr.f32.mxu0 0.0
        %v1731 = vand.u32 %v1661, 4294901760
        %v1732 = vsub.f32 %v1661, %v1731
        %v1733 = vand.u32 %v1732, 4294901760
        %v1734 = vsub.f32 %v1732, %v1733
        %v1735 = vand.u32 %v1734, 4294901760
        %1736 = vmatmul.mubr.f32.gmra.mrb[0].mxu0 %v1735
        %v1737 = vpop.f32.mrb[0].mxu0
        %v1738 = vadd.f32 %v237, %v1737
        %v1739 = vpop.f32.mrb[0].mxu0
        %1740 = vdwg.mxu0
        %1741 = vmatprep.subr.mxu0 0.0
        %v1742 = vand.u32 %v1663, 4294901760
        %v1743 = vsub.f32 %v1663, %v1742
        %v1744 = vand.u32 %v1743, 4294901760
        %v1745 = vsub.f32 %v1743, %v1744
        %v1746 = vand.u32 %v1745, 4294901760
        %1747 = vmatpush1.xpose.msra.mxu0 %v1746
        %1748 = vmatprep.subr.mxu0 0.0
        %1749 = vmatpush1.xpose.msra.mxu0 0.0
        %1750 = vmatprep.subr.mxu0 0.0
        %1751 = vmatpush1.xpose.msra.mxu0 0.0
        %1752 = vmatprep.subr.mxu0 0.0
        %1753 = vmatpush1.xpose.msra.mxu0 0.0
        %1754 = vmatprep.subr.mxu0 0.0
        %1755 = vmatpush1.xpose.msra.mxu0 0.0
        %1756 = vmatprep.subr.mxu0 0.0
        %1757 = vmatpush1.xpose.msra.mxu0 0.0
        %1758 = vmatprep.subr.mxu0 0.0
        %1759 = vmatpush1.xpose.msra.mxu0 0.0
        %1760 = vmatprep.subr.mxu0 0.0
        %1761 = vmatpush1.xpose.msra.mxu0 0.0
        %1762 = vmatprep.subr.mxu0 0.0
        %1763 = vmatpush1.xpose.msra.mxu0 0.0
        %1764 = vmatprep.subr.mxu0 0.0
        %1765 = vmatpush1.xpose.msra.mxu0 0.0
        %1766 = vmatprep.subr.mxu0 0.0
        %1767 = vmatpush1.xpose.msra.mxu0 0.0
        %1768 = vmatprep.subr.mxu0 0.0
        %1769 = vmatpush1.xpose.msra.mxu0 0.0
        %1770 = vmatprep.subr.mxu0 0.0
        %1771 = vmatpush1.xpose.msra.mxu0 0.0
        %1772 = vmatprep.subr.mxu0 0.0
        %1773 = vmatpush1.xpose.msra.mxu0 0.0
        %1774 = vmatprep.subr.mxu0 0.0
        %1775 = vmatpush1.xpose.msra.mxu0 0.0
        %1776 = vmatprep.subr.mxu0 0.0
        %1777 = vmatpush1.xpose.msra.mxu0 0.0
        %1778 = vmatprep.subr.mxu0 0.0
        %1779 = vmatpush1.xpose.msra.mxu0 0.0
        %1780 = vmatprep.subr.mxu0 0.0
        %1781 = vmatpush1.xpose.msra.mxu0 0.0
        %1782 = vmatprep.subr.mxu0 0.0
        %1783 = vmatpush1.xpose.msra.mxu0 0.0
        %1784 = vmatprep.subr.mxu0 0.0
        %1785 = vmatpush1.xpose.msra.mxu0 0.0
        %1786 = vmatprep.subr.mxu0 0.0
        %1787 = vmatpush1.xpose.msra.mxu0 0.0
        %1788 = vmatprep.subr.mxu0 0.0
        %1789 = vmatpush1.xpose.msra.mxu0 0.0
        %1790 = vmatprep.subr.mxu0 0.0
        %1791 = vmatpush1.xpose.msra.mxu0 0.0
        %1792 = vmatprep.subr.mxu0 0.0
        %1793 = vmatpush1.xpose.msra.mxu0 0.0
        %1794 = vmatprep.subr.mxu0 0.0
        %1795 = vmatpush1.xpose.msra.mxu0 0.0
        %1796 = vmatprep.subr.mxu0 0.0
        %1797 = vmatpush1.xpose.msra.mxu0 0.0
        %1798 = vmatprep.subr.mxu0 0.0
        %1799 = vmatpush1.xpose.msra.mxu0 0.0
        %1800 = vmatprep.subr.mxu0 0.0
        %1801 = vmatpush1.xpose.msra.mxu0 0.0
        %1802 = vmatprep.subr.mxu0 0.0
        %1803 = vmatpush1.xpose.msra.mxu0 0.0
        %1804 = vmatprep.subr.mxu0 0.0
        %1805 = vmatpush1.xpose.msra.mxu0 0.0
        %1806 = vmatprep.subr.mxu0 0.0
        %1807 = vmatpush1.xpose.msra.mxu0 0.0
        %1808 = vmatprep.subr.mxu0 0.0
        %1809 = vmatpush1.xpose.msra.mxu0 0.0
        %1810 = vmatprep.mubr.f32.mxu0 0.0
        %v1811 = vand.u32 %v1661, 4294901760
        %1812 = vmatmul.mubr.f32.gmra.mrb[0].mxu0 %v1811
        %v1813 = vpop.f32.mrb[0].mxu0
        %v1814 = vadd.f32 %v1738, %v1813
        %v1815 = vpop.f32.mrb[0].mxu0
        %1816 = vdwg.mxu0
        %1817 = vmatprep.subr.mxu0 0.0
        %v1818 = vand.u32 %v1663, 4294901760
        %v1819 = vsub.f32 %v1663, %v1818
        %1820 = vmatpush1.xpose.msra.mxu0 %v1819
        %1821 = vmatprep.subr.mxu0 0.0
        %1822 = vmatpush1.xpose.msra.mxu0 0.0
        %1823 = vmatprep.subr.mxu0 0.0
        %1824 = vmatpush1.xpose.msra.mxu0 0.0
        %1825 = vmatprep.subr.mxu0 0.0
        %1826 = vmatpush1.xpose.msra.mxu0 0.0
        %1827 = vmatprep.subr.mxu0 0.0
        %1828 = vmatpush1.xpose.msra.mxu0 0.0
        %1829 = vmatprep.subr.mxu0 0.0
        %1830 = vmatpush1.xpose.msra.mxu0 0.0
        %1831 = vmatprep.subr.mxu0 0.0
        %1832 = vmatpush1.xpose.msra.mxu0 0.0
        %1833 = vmatprep.subr.mxu0 0.0
        %1834 = vmatpush1.xpose.msra.mxu0 0.0
        %1835 = vmatprep.subr.mxu0 0.0
        %1836 = vmatpush1.xpose.msra.mxu0 0.0
        %1837 = vmatprep.subr.mxu0 0.0
        %1838 = vmatpush1.xpose.msra.mxu0 0.0
        %1839 = vmatprep.subr.mxu0 0.0
        %1840 = vmatpush1.xpose.msra.mxu0 0.0
        %1841 = vmatprep.subr.mxu0 0.0
        %1842 = vmatpush1.xpose.msra.mxu0 0.0
        %1843 = vmatprep.subr.mxu0 0.0
        %1844 = vmatpush1.xpose.msra.mxu0 0.0
        %1845 = vmatprep.subr.mxu0 0.0
        %1846 = vmatpush1.xpose.msra.mxu0 0.0
        %1847 = vmatprep.subr.mxu0 0.0
        %1848 = vmatpush1.xpose.msra.mxu0 0.0
        %1849 = vmatprep.subr.mxu0 0.0
        %1850 = vmatpush1.xpose.msra.mxu0 0.0
        %1851 = vmatprep.subr.mxu0 0.0
        %1852 = vmatpush1.xpose.msra.mxu0 0.0
        %1853 = vmatprep.subr.mxu0 0.0
        %1854 = vmatpush1.xpose.msra.mxu0 0.0
        %1855 = vmatprep.subr.mxu0 0.0
        %1856 = vmatpush1.xpose.msra.mxu0 0.0
        %1857 = vmatprep.subr.mxu0 0.0
        %1858 = vmatpush1.xpose.msra.mxu0 0.0
        %1859 = vmatprep.subr.mxu0 0.0
        %1860 = vmatpush1.xpose.msra.mxu0 0.0
        %1861 = vmatprep.subr.mxu0 0.0
        %1862 = vmatpush1.xpose.msra.mxu0 0.0
        %1863 = vmatprep.subr.mxu0 0.0
        %1864 = vmatpush1.xpose.msra.mxu0 0.0
        %1865 = vmatprep.subr.mxu0 0.0
        %1866 = vmatpush1.xpose.msra.mxu0 0.0
        %1867 = vmatprep.subr.mxu0 0.0
        %1868 = vmatpush1.xpose.msra.mxu0 0.0
        %1869 = vmatprep.subr.mxu0 0.0
        %1870 = vmatpush1.xpose.msra.mxu0 0.0
        %1871 = vmatprep.subr.mxu0 0.0
        %1872 = vmatpush1.xpose.msra.mxu0 0.0
        %1873 = vmatprep.subr.mxu0 0.0
        %1874 = vmatpush1.xpose.msra.mxu0 0.0
        %1875 = vmatprep.subr.mxu0 0.0
        %1876 = vmatpush1.xpose.msra.mxu0 0.0
        %1877 = vmatprep.subr.mxu0 0.0
        %1878 = vmatpush1.xpose.msra.mxu0 0.0
        %1879 = vmatprep.subr.mxu0 0.0
        %1880 = vmatpush1.xpose.msra.mxu0 0.0
        %1881 = vmatprep.subr.mxu0 0.0
        %1882 = vmatpush1.xpose.msra.mxu0 0.0
        %1883 = vmatprep.mubr.f32.mxu0 0.0
        %v1884 = vand.u32 %v1661, 4294901760
        %v1885 = vsub.f32 %v1661, %v1884
        %1886 = vmatmul.mubr.f32.gmra.mrb[0].mxu0 %v1885
        %v1887 = vpop.f32.mrb[0].mxu0
        %v1888 = vadd.f32 %v1814, %v1887
        %v1889 = vpop.f32.mrb[0].mxu0
        %1890 = vdwg.mxu0
        %1891 = vmatprep.subr.mxu0 0.0
        %v1892 = vand.u32 %v1663, 4294901760
        %1893 = vmatpush1.xpose.msra.mxu0 %v1892
        %1894 = vmatprep.subr.mxu0 0.0
        %1895 = vmatpush1.xpose.msra.mxu0 0.0
        %1896 = vmatprep.subr.mxu0 0.0
        %1897 = vmatpush1.xpose.msra.mxu0 0.0
        %1898 = vmatprep.subr.mxu0 0.0
        %1899 = vmatpush1.xpose.msra.mxu0 0.0
        %1900 = vmatprep.subr.mxu0 0.0
        %1901 = vmatpush1.xpose.msra.mxu0 0.0
        %1902 = vmatprep.subr.mxu0 0.0
        %1903 = vmatpush1.xpose.msra.mxu0 0.0
        %1904 = vmatprep.subr.mxu0 0.0
        %1905 = vmatpush1.xpose.msra.mxu0 0.0
        %1906 = vmatprep.subr.mxu0 0.0
        %1907 = vmatpush1.xpose.msra.mxu0 0.0
        %1908 = vmatprep.subr.mxu0 0.0
        %1909 = vmatpush1.xpose.msra.mxu0 0.0
        %1910 = vmatprep.subr.mxu0 0.0
        %1911 = vmatpush1.xpose.msra.mxu0 0.0
        %1912 = vmatprep.subr.mxu0 0.0
        %1913 = vmatpush1.xpose.msra.mxu0 0.0
        %1914 = vmatprep.subr.mxu0 0.0
        %1915 = vmatpush1.xpose.msra.mxu0 0.0
        %1916 = vmatprep.subr.mxu0 0.0
        %1917 = vmatpush1.xpose.msra.mxu0 0.0
        %1918 = vmatprep.subr.mxu0 0.0
        %1919 = vmatpush1.xpose.msra.mxu0 0.0
        %1920 = vmatprep.subr.mxu0 0.0
        %1921 = vmatpush1.xpose.msra.mxu0 0.0
        %1922 = vmatprep.subr.mxu0 0.0
        %1923 = vmatpush1.xpose.msra.mxu0 0.0
        %1924 = vmatprep.subr.mxu0 0.0
        %1925 = vmatpush1.xpose.msra.mxu0 0.0
        %1926 = vmatprep.subr.mxu0 0.0
        %1927 = vmatpush1.xpose.msra.mxu0 0.0
        %1928 = vmatprep.subr.mxu0 0.0
        %1929 = vmatpush1.xpose.msra.mxu0 0.0
        %1930 = vmatprep.subr.mxu0 0.0
        %1931 = vmatpush1.xpose.msra.mxu0 0.0
        %1932 = vmatprep.subr.mxu0 0.0
        %1933 = vmatpush1.xpose.msra.mxu0 0.0
        %1934 = vmatprep.subr.mxu0 0.0
        %1935 = vmatpush1.xpose.msra.mxu0 0.0
        %1936 = vmatprep.subr.mxu0 0.0
        %1937 = vmatpush1.xpose.msra.mxu0 0.0
        %1938 = vmatprep.subr.mxu0 0.0
        %1939 = vmatpush1.xpose.msra.mxu0 0.0
        %1940 = vmatprep.subr.mxu0 0.0
        %1941 = vmatpush1.xpose.msra.mxu0 0.0
        %1942 = vmatprep.subr.mxu0 0.0
        %1943 = vmatpush1.xpose.msra.mxu0 0.0
        %1944 = vmatprep.subr.mxu0 0.0
        %1945 = vmatpush1.xpose.msra.mxu0 0.0
        %1946 = vmatprep.subr.mxu0 0.0
        %1947 = vmatpush1.xpose.msra.mxu0 0.0
        %1948 = vmatprep.subr.mxu0 0.0
        %1949 = vmatpush1.xpose.msra.mxu0 0.0
        %1950 = vmatprep.subr.mxu0 0.0
        %1951 = vmatpush1.xpose.msra.mxu0 0.0
        %1952 = vmatprep.subr.mxu0 0.0
        %1953 = vmatpush1.xpose.msra.mxu0 0.0
        %1954 = vmatprep.subr.mxu0 0.0
        %1955 = vmatpush1.xpose.msra.mxu0 0.0
        %1956 = vmatprep.mubr.f32.mxu0 0.0
        %v1957 = vand.u32 %v1661, 4294901760
        %v1958 = vsub.f32 %v1661, %v1957
        %v1959 = vand.u32 %v1958, 4294901760
        %1960 = vmatmul.mubr.f32.gmra.mrb[0].mxu0 %v1959
        %v1961 = vpop.f32.mrb[0].mxu0
        %v1962 = vadd.f32 %v1888, %v1961
        %v1963 = vpop.f32.mrb[0].mxu0
        %1964 = vdwg.mxu0
        %1965 = vmatprep.subr.mxu0 0.0
        %v1966 = vand.u32 %v1663, 4294901760
        %v1967 = vsub.f32 %v1663, %v1966
        %v1968 = vand.u32 %v1967, 4294901760
        %1969 = vmatpush1.xpose.msra.mxu0 %v1968
        %1970 = vmatprep.subr.mxu0 0.0
        %1971 = vmatpush1.xpose.msra.mxu0 0.0
        %1972 = vmatprep.subr.mxu0 0.0
        %1973 = vmatpush1.xpose.msra.mxu0 0.0
        %1974 = vmatprep.subr.mxu0 0.0
        %1975 = vmatpush1.xpose.msra.mxu0 0.0
        %1976 = vmatprep.subr.mxu0 0.0
        %1977 = vmatpush1.xpose.msra.mxu0 0.0
        %1978 = vmatprep.subr.mxu0 0.0
        %1979 = vmatpush1.xpose.msra.mxu0 0.0
        %1980 = vmatprep.subr.mxu0 0.0
        %1981 = vmatpush1.xpose.msra.mxu0 0.0
        %1982 = vmatprep.subr.mxu0 0.0
        %1983 = vmatpush1.xpose.msra.mxu0 0.0
        %1984 = vmatprep.subr.mxu0 0.0
        %1985 = vmatpush1.xpose.msra.mxu0 0.0
        %1986 = vmatprep.subr.mxu0 0.0
        %1987 = vmatpush1.xpose.msra.mxu0 0.0
        %1988 = vmatprep.subr.mxu0 0.0
        %1989 = vmatpush1.xpose.msra.mxu0 0.0
        %1990 = vmatprep.subr.mxu0 0.0
        %1991 = vmatpush1.xpose.msra.mxu0 0.0
        %1992 = vmatprep.subr.mxu0 0.0
        %1993 = vmatpush1.xpose.msra.mxu0 0.0
        %1994 = vmatprep.subr.mxu0 0.0
        %1995 = vmatpush1.xpose.msra.mxu0 0.0
        %1996 = vmatprep.subr.mxu0 0.0
        %1997 = vmatpush1.xpose.msra.mxu0 0.0
        %1998 = vmatprep.subr.mxu0 0.0
        %1999 = vmatpush1.xpose.msra.mxu0 0.0
        %2000 = vmatprep.subr.mxu0 0.0
        %2001 = vmatpush1.xpose.msra.mxu0 0.0
        %2002 = vmatprep.subr.mxu0 0.0
        %2003 = vmatpush1.xpose.msra.mxu0 0.0
        %2004 = vmatprep.subr.mxu0 0.0
        %2005 = vmatpush1.xpose.msra.mxu0 0.0
        %2006 = vmatprep.subr.mxu0 0.0
        %2007 = vmatpush1.xpose.msra.mxu0 0.0
        %2008 = vmatprep.subr.mxu0 0.0
        %2009 = vmatpush1.xpose.msra.mxu0 0.0
        %2010 = vmatprep.subr.mxu0 0.0
        %2011 = vmatpush1.xpose.msra.mxu0 0.0
        %2012 = vmatprep.subr.mxu0 0.0
        %2013 = vmatpush1.xpose.msra.mxu0 0.0
        %2014 = vmatprep.subr.mxu0 0.0
        %2015 = vmatpush1.xpose.msra.mxu0 0.0
        %2016 = vmatprep.subr.mxu0 0.0
        %2017 = vmatpush1.xpose.msra.mxu0 0.0
        %2018 = vmatprep.subr.mxu0 0.0
        %2019 = vmatpush1.xpose.msra.mxu0 0.0
        %2020 = vmatprep.subr.mxu0 0.0
        %2021 = vmatpush1.xpose.msra.mxu0 0.0
        %2022 = vmatprep.subr.mxu0 0.0
        %2023 = vmatpush1.xpose.msra.mxu0 0.0
        %2024 = vmatprep.subr.mxu0 0.0
        %2025 = vmatpush1.xpose.msra.mxu0 0.0
        %2026 = vmatprep.subr.mxu0 0.0
        %2027 = vmatpush1.xpose.msra.mxu0 0.0
        %2028 = vmatprep.subr.mxu0 0.0
        %2029 = vmatpush1.xpose.msra.mxu0 0.0
        %2030 = vmatprep.subr.mxu0 0.0
        %2031 = vmatpush1.xpose.msra.mxu0 0.0
        %2032 = vmatprep.mubr.f32.mxu0 0.0
        %v2033 = vand.u32 %v1661, 4294901760
        %2034 = vmatmul.mubr.f32.gmra.mrb[0].mxu0 %v2033
        %v2035 = vpop.f32.mrb[0].mxu0
        %v2036 = vadd.f32 %v1962, %v2035
        %v2037 = vpop.f32.mrb[0].mxu0
        %2038 = vdwg.mxu0
        %2039 = vmatprep.subr.mxu0 0.0
        %v2040 = vand.u32 %v1663, 4294901760
        %2041 = vmatpush1.xpose.msra.mxu0 %v2040
        %2042 = vmatprep.subr.mxu0 0.0
        %2043 = vmatpush1.xpose.msra.mxu0 0.0
        %2044 = vmatprep.subr.mxu0 0.0
        %2045 = vmatpush1.xpose.msra.mxu0 0.0
        %2046 = vmatprep.subr.mxu0 0.0
        %2047 = vmatpush1.xpose.msra.mxu0 0.0
        %2048 = vmatprep.subr.mxu0 0.0
        %2049 = vmatpush1.xpose.msra.mxu0 0.0
        %2050 = vmatprep.subr.mxu0 0.0
        %2051 = vmatpush1.xpose.msra.mxu0 0.0
        %2052 = vmatprep.subr.mxu0 0.0
        %2053 = vmatpush1.xpose.msra.mxu0 0.0
        %2054 = vmatprep.subr.mxu0 0.0
        %2055 = vmatpush1.xpose.msra.mxu0 0.0
        %2056 = vmatprep.subr.mxu0 0.0
        %2057 = vmatpush1.xpose.msra.mxu0 0.0
        %2058 = vmatprep.subr.mxu0 0.0
        %2059 = vmatpush1.xpose.msra.mxu0 0.0
        %2060 = vmatprep.subr.mxu0 0.0
        %2061 = vmatpush1.xpose.msra.mxu0 0.0
        %2062 = vmatprep.subr.mxu0 0.0
        %2063 = vmatpush1.xpose.msra.mxu0 0.0
        %2064 = vmatprep.subr.mxu0 0.0
        %2065 = vmatpush1.xpose.msra.mxu0 0.0
        %2066 = vmatprep.subr.mxu0 0.0
        %2067 = vmatpush1.xpose.msra.mxu0 0.0
        %2068 = vmatprep.subr.mxu0 0.0
        %2069 = vmatpush1.xpose.msra.mxu0 0.0
        %2070 = vmatprep.subr.mxu0 0.0
        %2071 = vmatpush1.xpose.msra.mxu0 0.0
        %2072 = vmatprep.subr.mxu0 0.0
        %2073 = vmatpush1.xpose.msra.mxu0 0.0
        %2074 = vmatprep.subr.mxu0 0.0
        %2075 = vmatpush1.xpose.msra.mxu0 0.0
        %2076 = vmatprep.subr.mxu0 0.0
        %2077 = vmatpush1.xpose.msra.mxu0 0.0
        %2078 = vmatprep.subr.mxu0 0.0
        %2079 = vmatpush1.xpose.msra.mxu0 0.0
        %2080 = vmatprep.subr.mxu0 0.0
        %2081 = vmatpush1.xpose.msra.mxu0 0.0
        %2082 = vmatprep.subr.mxu0 0.0
        %2083 = vmatpush1.xpose.msra.mxu0 0.0
        %2084 = vmatprep.subr.mxu0 0.0
        %2085 = vmatpush1.xpose.msra.mxu0 0.0
        %2086 = vmatprep.subr.mxu0 0.0
        %2087 = vmatpush1.xpose.msra.mxu0 0.0
        %2088 = vmatprep.subr.mxu0 0.0
        %2089 = vmatpush1.xpose.msra.mxu0 0.0
        %2090 = vmatprep.subr.mxu0 0.0
        %2091 = vmatpush1.xpose.msra.mxu0 0.0
        %2092 = vmatprep.subr.mxu0 0.0
        %2093 = vmatpush1.xpose.msra.mxu0 0.0
        %2094 = vmatprep.subr.mxu0 0.0
        %2095 = vmatpush1.xpose.msra.mxu0 0.0
        %2096 = vmatprep.subr.mxu0 0.0
        %2097 = vmatpush1.xpose.msra.mxu0 0.0
        %2098 = vmatprep.subr.mxu0 0.0
        %2099 = vmatpush1.xpose.msra.mxu0 0.0
        %2100 = vmatprep.subr.mxu0 0.0
        %2101 = vmatpush1.xpose.msra.mxu0 0.0
        %2102 = vmatprep.subr.mxu0 0.0
        %2103 = vmatpush1.xpose.msra.mxu0 0.0
        %2104 = vmatprep.mubr.f32.mxu0 0.0
        %v2105 = vand.u32 %v1661, 4294901760
        %2106 = vmatmul.mubr.f32.gmra.mrb[0].mxu0 %v2105
        %v2107 = vpop.f32.mrb[0].mxu0
        %v2108 = vadd.f32 %v2036, %v2107
        %v2109 = vpop.f32.mrb[0].mxu0
        %2110 = vdwg.mxu0
        %v2111 = vadd.f32 %v2108, %v1191
        %v2112 = vsel %vm736, %v2111, -inf
        %2113 = vmax.xlane.f32.xlu0 %v2112
        %v2114 = vpop.xlane.xlu0 %2113
        %v2115 = vsub.f32 %v2111, %v2114
        %v2116 = vmul.f32 %v2115, 1.442695
        %v2117 = vpow.pop %v2116
        %v2118 = vsel %vm736, %v2117, 0.0
        %2119 = vadd.xlane.f32.xlu0 %v2118
        %v2120 = vpop.xlane.xlu0 %2119
        %v2121 = vrcp.pop %v2120
        %v2122 = vmul.f32 %v2117, %v2121
        %2123 = vrot.lane.b32.xlu0 %v730, 56
        %v2124 = vpop.permute.xlu0 %2123
        %v2127 = vsel %vm736, %v2122, 0
        %2129 = vmatprep.subr.mxu0 0.0
        %v2130 = vand.u32 %v2124, 4294901760
        %2131 = vmatpush1.msra.mxu0 %v2130
        %2132 = vmatprep.subr.mxu0 0.0
        %2133 = vmatpush1.msra.mxu0 0.0
        %2134 = vmatprep.subr.mxu0 0.0
        %2135 = vmatpush1.msra.mxu0 0.0
        %2136 = vmatprep.subr.mxu0 0.0
        %2137 = vmatpush1.msra.mxu0 0.0
        %2138 = vmatprep.subr.mxu0 0.0
        %2139 = vmatpush1.msra.mxu0 0.0
        %2140 = vmatprep.subr.mxu0 0.0
        %2141 = vmatpush1.msra.mxu0 0.0
        %2142 = vmatprep.subr.mxu0 0.0
        %2143 = vmatpush1.msra.mxu0 0.0
        %2144 = vmatprep.subr.mxu0 0.0
        %2145 = vmatpush1.msra.mxu0 0.0
        %2146 = vmatprep.subr.mxu0 0.0
        %2147 = vmatpush1.msra.mxu0 0.0
        %2148 = vmatprep.subr.mxu0 0.0
        %2149 = vmatpush1.msra.mxu0 0.0
        %2150 = vmatprep.subr.mxu0 0.0
        %2151 = vmatpush1.msra.mxu0 0.0
        %2152 = vmatprep.subr.mxu0 0.0
        %2153 = vmatpush1.msra.mxu0 0.0
        %2154 = vmatprep.subr.mxu0 0.0
        %2155 = vmatpush1.msra.mxu0 0.0
        %2156 = vmatprep.subr.mxu0 0.0
        %2157 = vmatpush1.msra.mxu0 0.0
        %2158 = vmatprep.subr.mxu0 0.0
        %2159 = vmatpush1.msra.mxu0 0.0
        %2160 = vmatprep.subr.mxu0 0.0
        %2161 = vmatpush1.msra.mxu0 0.0
        %2162 = vmatprep.subr.mxu0 0.0
        %2163 = vmatpush1.msra.mxu0 0.0
        %2164 = vmatprep.subr.mxu0 0.0
        %2165 = vmatpush1.msra.mxu0 0.0
        %2166 = vmatprep.subr.mxu0 0.0
        %2167 = vmatpush1.msra.mxu0 0.0
        %2168 = vmatprep.subr.mxu0 0.0
        %2169 = vmatpush1.msra.mxu0 0.0
        %2170 = vmatprep.subr.mxu0 0.0
        %2171 = vmatpush1.msra.mxu0 0.0
        %2172 = vmatprep.subr.mxu0 0.0
        %2173 = vmatpush1.msra.mxu0 0.0
        %2174 = vmatprep.subr.mxu0 0.0
        %2175 = vmatpush1.msra.mxu0 0.0
        %2176 = vmatprep.subr.mxu0 0.0
        %2177 = vmatpush1.msra.mxu0 0.0
        %2178 = vmatprep.subr.mxu0 0.0
        %2179 = vmatpush1.msra.mxu0 0.0
        %2180 = vmatprep.subr.mxu0 0.0
        %2181 = vmatpush1.msra.mxu0 0.0
        %2182 = vmatprep.subr.mxu0 0.0
        %2183 = vmatpush1.msra.mxu0 0.0
        %2184 = vmatprep.subr.mxu0 0.0
        %2185 = vmatpush1.msra.mxu0 0.0
        %2186 = vmatprep.subr.mxu0 0.0
        %2187 = vmatpush1.msra.mxu0 0.0
        %2188 = vmatprep.subr.mxu0 0.0
        %2189 = vmatpush1.msra.mxu0 0.0
        %2190 = vmatprep.subr.mxu0 0.0
        %2191 = vmatpush1.msra.mxu0 0.0
        %2192 = vmatprep.subr.mxu0 0.0
        %2193 = vmatpush1.msra.mxu0 0.0
        %2194 = vmatprep.mubr.f32.mxu0 0.0
        %v2195 = vand.u32 %v2127, 4294901760
        %v2196 = vsub.f32 %v2127, %v2195
        %v2197 = vand.u32 %v2196, 4294901760
        %v2198 = vsub.f32 %v2196, %v2197
        %v2199 = vand.u32 %v2198, 4294901760
        %2200 = vmatmul.mubr.f32.gmra.mrb[0].mxu0 %v2199
        %v2201 = vpop.f32.mrb[0].mxu0
        %v2202 = vadd.f32 0.0, %v2201
        %v2203 = vpop.f32.mrb[0].mxu0
        %2204 = vdwg.mxu0
        %2205 = vmatprep.subr.mxu0 0.0
        %v2206 = vand.u32 %v2124, 4294901760
        %v2207 = vsub.f32 %v2124, %v2206
        %v2208 = vand.u32 %v2207, 4294901760
        %v2209 = vsub.f32 %v2207, %v2208
        %v2210 = vand.u32 %v2209, 4294901760
        %2211 = vmatpush1.msra.mxu0 %v2210
        %2212 = vmatprep.subr.mxu0 0.0
        %2213 = vmatpush1.msra.mxu0 0.0
        %2214 = vmatprep.subr.mxu0 0.0
        %2215 = vmatpush1.msra.mxu0 0.0
        %2216 = vmatprep.subr.mxu0 0.0
        %2217 = vmatpush1.msra.mxu0 0.0
        %2218 = vmatprep.subr.mxu0 0.0
        %2219 = vmatpush1.msra.mxu0 0.0
        %2220 = vmatprep.subr.mxu0 0.0
        %2221 = vmatpush1.msra.mxu0 0.0
        %2222 = vmatprep.subr.mxu0 0.0
        %2223 = vmatpush1.msra.mxu0 0.0
        %2224 = vmatprep.subr.mxu0 0.0
        %2225 = vmatpush1.msra.mxu0 0.0
        %2226 = vmatprep.subr.mxu0 0.0
        %2227 = vmatpush1.msra.mxu0 0.0
        %2228 = vmatprep.subr.mxu0 0.0
        %2229 = vmatpush1.msra.mxu0 0.0
        %2230 = vmatprep.subr.mxu0 0.0
        %2231 = vmatpush1.msra.mxu0 0.0
        %2232 = vmatprep.subr.mxu0 0.0
        %2233 = vmatpush1.msra.mxu0 0.0
        %2234 = vmatprep.subr.mxu0 0.0
        %2235 = vmatpush1.msra.mxu0 0.0
        %2236 = vmatprep.subr.mxu0 0.0
        %2237 = vmatpush1.msra.mxu0 0.0
        %2238 = vmatprep.subr.mxu0 0.0
        %2239 = vmatpush1.msra.mxu0 0.0
        %2240 = vmatprep.subr.mxu0 0.0
        %2241 = vmatpush1.msra.mxu0 0.0
        %2242 = vmatprep.subr.mxu0 0.0
        %2243 = vmatpush1.msra.mxu0 0.0
        %2244 = vmatprep.subr.mxu0 0.0
        %2245 = vmatpush1.msra.mxu0 0.0
        %2246 = vmatprep.subr.mxu0 0.0
        %2247 = vmatpush1.msra.mxu0 0.0
        %2248 = vmatprep.subr.mxu0 0.0
        %2249 = vmatpush1.msra.mxu0 0.0
        %2250 = vmatprep.subr.mxu0 0.0
        %2251 = vmatpush1.msra.mxu0 0.0
        %2252 = vmatprep.subr.mxu0 0.0
        %2253 = vmatpush1.msra.mxu0 0.0
        %2254 = vmatprep.subr.mxu0 0.0
        %2255 = vmatpush1.msra.mxu0 0.0
        %2256 = vmatprep.subr.mxu0 0.0
        %2257 = vmatpush1.msra.mxu0 0.0
        %2258 = vmatprep.subr.mxu0 0.0
        %2259 = vmatpush1.msra.mxu0 0.0
        %2260 = vmatprep.subr.mxu0 0.0
        %2261 = vmatpush1.msra.mxu0 0.0
        %2262 = vmatprep.subr.mxu0 0.0
        %2263 = vmatpush1.msra.mxu0 0.0
        %2264 = vmatprep.subr.mxu0 0.0
        %2265 = vmatpush1.msra.mxu0 0.0
        %2266 = vmatprep.subr.mxu0 0.0
        %2267 = vmatpush1.msra.mxu0 0.0
        %2268 = vmatprep.subr.mxu0 0.0
        %2269 = vmatpush1.msra.mxu0 0.0
        %2270 = vmatprep.subr.mxu0 0.0
        %2271 = vmatpush1.msra.mxu0 0.0
        %2272 = vmatprep.subr.mxu0 0.0
        %2273 = vmatpush1.msra.mxu0 0.0
        %2274 = vmatprep.mubr.f32.mxu0 0.0
        %v2275 = vand.u32 %v2127, 4294901760
        %2276 = vmatmul.mubr.f32.gmra.mrb[0].mxu0 %v2275
        %v2277 = vpop.f32.mrb[0].mxu0
        %v2278 = vadd.f32 %v2202, %v2277
        %v2279 = vpop.f32.mrb[0].mxu0
        %2280 = vdwg.mxu0
        %2281 = vmatprep.subr.mxu0 0.0
        %v2282 = vand.u32 %v2124, 4294901760
        %v2283 = vsub.f32 %v2124, %v2282
        %2284 = vmatpush1.msra.mxu0 %v2283
        %2285 = vmatprep.subr.mxu0 0.0
        %2286 = vmatpush1.msra.mxu0 0.0
        %2287 = vmatprep.subr.mxu0 0.0
        %2288 = vmatpush1.msra.mxu0 0.0
        %2289 = vmatprep.subr.mxu0 0.0
        %2290 = vmatpush1.msra.mxu0 0.0
        %2291 = vmatprep.subr.mxu0 0.0
        %2292 = vmatpush1.msra.mxu0 0.0
        %2293 = vmatprep.subr.mxu0 0.0
        %2294 = vmatpush1.msra.mxu0 0.0
        %2295 = vmatprep.subr.mxu0 0.0
        %2296 = vmatpush1.msra.mxu0 0.0
        %2297 = vmatprep.subr.mxu0 0.0
        %2298 = vmatpush1.msra.mxu0 0.0
        %2299 = vmatprep.subr.mxu0 0.0
        %2300 = vmatpush1.msra.mxu0 0.0
        %2301 = vmatprep.subr.mxu0 0.0
        %2302 = vmatpush1.msra.mxu0 0.0
        %2303 = vmatprep.subr.mxu0 0.0
        %2304 = vmatpush1.msra.mxu0 0.0
        %2305 = vmatprep.subr.mxu0 0.0
        %2306 = vmatpush1.msra.mxu0 0.0
        %2307 = vmatprep.subr.mxu0 0.0
        %2308 = vmatpush1.msra.mxu0 0.0
        %2309 = vmatprep.subr.mxu0 0.0
        %2310 = vmatpush1.msra.mxu0 0.0
        %2311 = vmatprep.subr.mxu0 0.0
        %2312 = vmatpush1.msra.mxu0 0.0
        %2313 = vmatprep.subr.mxu0 0.0
        %2314 = vmatpush1.msra.mxu0 0.0
        %2315 = vmatprep.subr.mxu0 0.0
        %2316 = vmatpush1.msra.mxu0 0.0
        %2317 = vmatprep.subr.mxu0 0.0
        %2318 = vmatpush1.msra.mxu0 0.0
        %2319 = vmatprep.subr.mxu0 0.0
        %2320 = vmatpush1.msra.mxu0 0.0
        %2321 = vmatprep.subr.mxu0 0.0
        %2322 = vmatpush1.msra.mxu0 0.0
        %2323 = vmatprep.subr.mxu0 0.0
        %2324 = vmatpush1.msra.mxu0 0.0
        %2325 = vmatprep.subr.mxu0 0.0
        %2326 = vmatpush1.msra.mxu0 0.0
        %2327 = vmatprep.subr.mxu0 0.0
        %2328 = vmatpush1.msra.mxu0 0.0
        %2329 = vmatprep.subr.mxu0 0.0
        %2330 = vmatpush1.msra.mxu0 0.0
        %2331 = vmatprep.subr.mxu0 0.0
        %2332 = vmatpush1.msra.mxu0 0.0
        %2333 = vmatprep.subr.mxu0 0.0
        %2334 = vmatpush1.msra.mxu0 0.0
        %2335 = vmatprep.subr.mxu0 0.0
        %2336 = vmatpush1.msra.mxu0 0.0
        %2337 = vmatprep.subr.mxu0 0.0
        %2338 = vmatpush1.msra.mxu0 0.0
        %2339 = vmatprep.subr.mxu0 0.0
        %2340 = vmatpush1.msra.mxu0 0.0
        %2341 = vmatprep.subr.mxu0 0.0
        %2342 = vmatpush1.msra.mxu0 0.0
        %2343 = vmatprep.subr.mxu0 0.0
        %2344 = vmatpush1.msra.mxu0 0.0
        %2345 = vmatprep.subr.mxu0 0.0
        %2346 = vmatpush1.msra.mxu0 0.0
        %2347 = vmatprep.mubr.f32.mxu0 0.0
        %v2348 = vand.u32 %v2127, 4294901760
        %v2349 = vsub.f32 %v2127, %v2348
        %2350 = vmatmul.mubr.f32.gmra.mrb[0].mxu0 %v2349
        %v2351 = vpop.f32.mrb[0].mxu0
        %v2352 = vadd.f32 %v2278, %v2351
        %v2353 = vpop.f32.mrb[0].mxu0
        %2354 = vdwg.mxu0
        %2355 = vmatprep.subr.mxu0 0.0
        %v2356 = vand.u32 %v2124, 4294901760
        %2357 = vmatpush1.msra.mxu0 %v2356
        %2358 = vmatprep.subr.mxu0 0.0
        %2359 = vmatpush1.msra.mxu0 0.0
        %2360 = vmatprep.subr.mxu0 0.0
        %2361 = vmatpush1.msra.mxu0 0.0
        %2362 = vmatprep.subr.mxu0 0.0
        %2363 = vmatpush1.msra.mxu0 0.0
        %2364 = vmatprep.subr.mxu0 0.0
        %2365 = vmatpush1.msra.mxu0 0.0
        %2366 = vmatprep.subr.mxu0 0.0
        %2367 = vmatpush1.msra.mxu0 0.0
        %2368 = vmatprep.subr.mxu0 0.0
        %2369 = vmatpush1.msra.mxu0 0.0
        %2370 = vmatprep.subr.mxu0 0.0
        %2371 = vmatpush1.msra.mxu0 0.0
        %2372 = vmatprep.subr.mxu0 0.0
        %2373 = vmatpush1.msra.mxu0 0.0
        %2374 = vmatprep.subr.mxu0 0.0
        %2375 = vmatpush1.msra.mxu0 0.0
        %2376 = vmatprep.subr.mxu0 0.0
        %2377 = vmatpush1.msra.mxu0 0.0
        %2378 = vmatprep.subr.mxu0 0.0
        %2379 = vmatpush1.msra.mxu0 0.0
        %2380 = vmatprep.subr.mxu0 0.0
        %2381 = vmatpush1.msra.mxu0 0.0
        %2382 = vmatprep.subr.mxu0 0.0
        %2383 = vmatpush1.msra.mxu0 0.0
        %2384 = vmatprep.subr.mxu0 0.0
        %2385 = vmatpush1.msra.mxu0 0.0
        %2386 = vmatprep.subr.mxu0 0.0
        %2387 = vmatpush1.msra.mxu0 0.0
        %2388 = vmatprep.subr.mxu0 0.0
        %2389 = vmatpush1.msra.mxu0 0.0
        %2390 = vmatprep.subr.mxu0 0.0
        %2391 = vmatpush1.msra.mxu0 0.0
        %2392 = vmatprep.subr.mxu0 0.0
        %2393 = vmatpush1.msra.mxu0 0.0
        %2394 = vmatprep.subr.mxu0 0.0
        %2395 = vmatpush1.msra.mxu0 0.0
        %2396 = vmatprep.subr.mxu0 0.0
        %2397 = vmatpush1.msra.mxu0 0.0
        %2398 = vmatprep.subr.mxu0 0.0
        %2399 = vmatpush1.msra.mxu0 0.0
        %2400 = vmatprep.subr.mxu0 0.0
        %2401 = vmatpush1.msra.mxu0 0.0
        %2402 = vmatprep.subr.mxu0 0.0
        %2403 = vmatpush1.msra.mxu0 0.0
        %2404 = vmatprep.subr.mxu0 0.0
        %2405 = vmatpush1.msra.mxu0 0.0
        %2406 = vmatprep.subr.mxu0 0.0
        %2407 = vmatpush1.msra.mxu0 0.0
        %2408 = vmatprep.subr.mxu0 0.0
        %2409 = vmatpush1.msra.mxu0 0.0
        %2410 = vmatprep.subr.mxu0 0.0
        %2411 = vmatpush1.msra.mxu0 0.0
        %2412 = vmatprep.subr.mxu0 0.0
        %2413 = vmatpush1.msra.mxu0 0.0
        %2414 = vmatprep.subr.mxu0 0.0
        %2415 = vmatpush1.msra.mxu0 0.0
        %2416 = vmatprep.subr.mxu0 0.0
        %2417 = vmatpush1.msra.mxu0 0.0
        %2418 = vmatprep.subr.mxu0 0.0
        %2419 = vmatpush1.msra.mxu0 0.0
        %2420 = vmatprep.mubr.f32.mxu0 0.0
        %v2421 = vand.u32 %v2127, 4294901760
        %v2422 = vsub.f32 %v2127, %v2421
        %v2423 = vand.u32 %v2422, 4294901760
        %2424 = vmatmul.mubr.f32.gmra.mrb[0].mxu0 %v2423
        %v2425 = vpop.f32.mrb[0].mxu0
        %v2426 = vadd.f32 %v2352, %v2425
        %v2427 = vpop.f32.mrb[0].mxu0
        %2428 = vdwg.mxu0
        %2429 = vmatprep.subr.mxu0 0.0
        %v2430 = vand.u32 %v2124, 4294901760
        %v2431 = vsub.f32 %v2124, %v2430
        %v2432 = vand.u32 %v2431, 4294901760
        %2433 = vmatpush1.msra.mxu0 %v2432
        %2434 = vmatprep.subr.mxu0 0.0
        %2435 = vmatpush1.msra.mxu0 0.0
        %2436 = vmatprep.subr.mxu0 0.0
        %2437 = vmatpush1.msra.mxu0 0.0
        %2438 = vmatprep.subr.mxu0 0.0
        %2439 = vmatpush1.msra.mxu0 0.0
        %2440 = vmatprep.subr.mxu0 0.0
        %2441 = vmatpush1.msra.mxu0 0.0
        %2442 = vmatprep.subr.mxu0 0.0
        %2443 = vmatpush1.msra.mxu0 0.0
        %2444 = vmatprep.subr.mxu0 0.0
        %2445 = vmatpush1.msra.mxu0 0.0
        %2446 = vmatprep.subr.mxu0 0.0
        %2447 = vmatpush1.msra.mxu0 0.0
        %2448 = vmatprep.subr.mxu0 0.0
        %2449 = vmatpush1.msra.mxu0 0.0
        %2450 = vmatprep.subr.mxu0 0.0
        %2451 = vmatpush1.msra.mxu0 0.0
        %2452 = vmatprep.subr.mxu0 0.0
        %2453 = vmatpush1.msra.mxu0 0.0
        %2454 = vmatprep.subr.mxu0 0.0
        %2455 = vmatpush1.msra.mxu0 0.0
        %2456 = vmatprep.subr.mxu0 0.0
        %2457 = vmatpush1.msra.mxu0 0.0
        %2458 = vmatprep.subr.mxu0 0.0
        %2459 = vmatpush1.msra.mxu0 0.0
        %2460 = vmatprep.subr.mxu0 0.0
        %2461 = vmatpush1.msra.mxu0 0.0
        %2462 = vmatprep.subr.mxu0 0.0
        %2463 = vmatpush1.msra.mxu0 0.0
        %2464 = vmatprep.subr.mxu0 0.0
        %2465 = vmatpush1.msra.mxu0 0.0
        %2466 = vmatprep.subr.mxu0 0.0
        %2467 = vmatpush1.msra.mxu0 0.0
        %2468 = vmatprep.subr.mxu0 0.0
        %2469 = vmatpush1.msra.mxu0 0.0
        %2470 = vmatprep.subr.mxu0 0.0
        %2471 = vmatpush1.msra.mxu0 0.0
        %2472 = vmatprep.subr.mxu0 0.0
        %2473 = vmatpush1.msra.mxu0 0.0
        %2474 = vmatprep.subr.mxu0 0.0
        %2475 = vmatpush1.msra.mxu0 0.0
        %2476 = vmatprep.subr.mxu0 0.0
        %2477 = vmatpush1.msra.mxu0 0.0
        %2478 = vmatprep.subr.mxu0 0.0
        %2479 = vmatpush1.msra.mxu0 0.0
        %2480 = vmatprep.subr.mxu0 0.0
        %2481 = vmatpush1.msra.mxu0 0.0
        %2482 = vmatprep.subr.mxu0 0.0
        %2483 = vmatpush1.msra.mxu0 0.0
        %2484 = vmatprep.subr.mxu0 0.0
        %2485 = vmatpush1.msra.mxu0 0.0
        %2486 = vmatprep.subr.mxu0 0.0
        %2487 = vmatpush1.msra.mxu0 0.0
        %2488 = vmatprep.subr.mxu0 0.0
        %2489 = vmatpush1.msra.mxu0 0.0
        %2490 = vmatprep.subr.mxu0 0.0
        %2491 = vmatpush1.msra.mxu0 0.0
        %2492 = vmatprep.subr.mxu0 0.0
        %2493 = vmatpush1.msra.mxu0 0.0
        %2494 = vmatprep.subr.mxu0 0.0
        %2495 = vmatpush1.msra.mxu0 0.0
        %2496 = vmatprep.mubr.f32.mxu0 0.0
        %v2497 = vand.u32 %v2127, 4294901760
        %2498 = vmatmul.mubr.f32.gmra.mrb[0].mxu0 %v2497
        %v2499 = vpop.f32.mrb[0].mxu0
        %v2500 = vadd.f32 %v2426, %v2499
        %v2501 = vpop.f32.mrb[0].mxu0
        %2502 = vdwg.mxu0
        %2503 = vmatprep.subr.mxu0 0.0
        %v2504 = vand.u32 %v2124, 4294901760
        %2505 = vmatpush1.msra.mxu0 %v2504
        %2506 = vmatprep.subr.mxu0 0.0
        %2507 = vmatpush1.msra.mxu0 0.0
        %2508 = vmatprep.subr.mxu0 0.0
        %2509 = vmatpush1.msra.mxu0 0.0
        %2510 = vmatprep.subr.mxu0 0.0
        %2511 = vmatpush1.msra.mxu0 0.0
        %2512 = vmatprep.subr.mxu0 0.0
        %2513 = vmatpush1.msra.mxu0 0.0
        %2514 = vmatprep.subr.mxu0 0.0
        %2515 = vmatpush1.msra.mxu0 0.0
        %2516 = vmatprep.subr.mxu0 0.0
        %2517 = vmatpush1.msra.mxu0 0.0
        %2518 = vmatprep.subr.mxu0 0.0
        %2519 = vmatpush1.msra.mxu0 0.0
        %2520 = vmatprep.subr.mxu0 0.0
        %2521 = vmatpush1.msra.mxu0 0.0
        %2522 = vmatprep.subr.mxu0 0.0
        %2523 = vmatpush1.msra.mxu0 0.0
        %2524 = vmatprep.subr.mxu0 0.0
        %2525 = vmatpush1.msra.mxu0 0.0
        %2526 = vmatprep.subr.mxu0 0.0
        %2527 = vmatpush1.msra.mxu0 0.0
        %2528 = vmatprep.subr.mxu0 0.0
        %2529 = vmatpush1.msra.mxu0 0.0
        %2530 = vmatprep.subr.mxu0 0.0
        %2531 = vmatpush1.msra.mxu0 0.0
        %2532 = vmatprep.subr.mxu0 0.0
        %2533 = vmatpush1.msra.mxu0 0.0
        %2534 = vmatprep.subr.mxu0 0.0
        %2535 = vmatpush1.msra.mxu0 0.0
        %2536 = vmatprep.subr.mxu0 0.0
        %2537 = vmatpush1.msra.mxu0 0.0
        %2538 = vmatprep.subr.mxu0 0.0
        %2539 = vmatpush1.msra.mxu0 0.0
        %2540 = vmatprep.subr.mxu0 0.0
        %2541 = vmatpush1.msra.mxu0 0.0
        %2542 = vmatprep.subr.mxu0 0.0
        %2543 = vmatpush1.msra.mxu0 0.0
        %2544 = vmatprep.subr.mxu0 0.0
        %2545 = vmatpush1.msra.mxu0 0.0
        %2546 = vmatprep.subr.mxu0 0.0
        %2547 = vmatpush1.msra.mxu0 0.0
        %2548 = vmatprep.subr.mxu0 0.0
        %2549 = vmatpush1.msra.mxu0 0.0
        %2550 = vmatprep.subr.mxu0 0.0
        %2551 = vmatpush1.msra.mxu0 0.0
        %2552 = vmatprep.subr.mxu0 0.0
        %2553 = vmatpush1.msra.mxu0 0.0
        %2554 = vmatprep.subr.mxu0 0.0
        %2555 = vmatpush1.msra.mxu0 0.0
        %2556 = vmatprep.subr.mxu0 0.0
        %2557 = vmatpush1.msra.mxu0 0.0
        %2558 = vmatprep.subr.mxu0 0.0
        %2559 = vmatpush1.msra.mxu0 0.0
        %2560 = vmatprep.subr.mxu0 0.0
        %2561 = vmatpush1.msra.mxu0 0.0
        %2562 = vmatprep.subr.mxu0 0.0
        %2563 = vmatpush1.msra.mxu0 0.0
        %2564 = vmatprep.subr.mxu0 0.0
        %2565 = vmatpush1.msra.mxu0 0.0
        %2566 = vmatprep.subr.mxu0 0.0
        %2567 = vmatpush1.msra.mxu0 0.0
        %2568 = vmatprep.mubr.f32.mxu0 0.0
        %v2569 = vand.u32 %v2127, 4294901760
        %2570 = vmatmul.mubr.f32.gmra.mrb[0].mxu0 %v2569
        %v2571 = vpop.f32.mrb[0].mxu0
        %v2572 = vadd.f32 %v2500, %v2571
        %v2573 = vpop.f32.mrb[0].mxu0
        %2574 = vdwg.mxu0
        %2575 = vrot.lane.b32.xlu0 %v730, 112
        %v2576 = vpop.permute.xlu0 %2575
        %2577 = vrot.lane.b32.xlu0 %v730, 80
        %v2578 = vpop.permute.xlu0 %2577
        %v2579 = vsel %vm736, %v2576, 0
        %v2581 = vsel %vm736, %v2578, 0
        %2583 = vmatprep.subr.mxu0 0.0
        %v2584 = vand.u32 %v2581, 4294901760
        %2585 = vmatpush1.xpose.msra.mxu0 %v2584
        %2586 = vmatprep.subr.mxu0 0.0
        %2587 = vmatpush1.xpose.msra.mxu0 0.0
        %2588 = vmatprep.subr.mxu0 0.0
        %2589 = vmatpush1.xpose.msra.mxu0 0.0
        %2590 = vmatprep.subr.mxu0 0.0
        %2591 = vmatpush1.xpose.msra.mxu0 0.0
        %2592 = vmatprep.subr.mxu0 0.0
        %2593 = vmatpush1.xpose.msra.mxu0 0.0
        %2594 = vmatprep.subr.mxu0 0.0
        %2595 = vmatpush1.xpose.msra.mxu0 0.0
        %2596 = vmatprep.subr.mxu0 0.0
        %2597 = vmatpush1.xpose.msra.mxu0 0.0
        %2598 = vmatprep.subr.mxu0 0.0
        %2599 = vmatpush1.xpose.msra.mxu0 0.0
        %2600 = vmatprep.subr.mxu0 0.0
        %2601 = vmatpush1.xpose.msra.mxu0 0.0
        %2602 = vmatprep.subr.mxu0 0.0
        %2603 = vmatpush1.xpose.msra.mxu0 0.0
        %2604 = vmatprep.subr.mxu0 0.0
        %2605 = vmatpush1.xpose.msra.mxu0 0.0
        %2606 = vmatprep.subr.mxu0 0.0
        %2607 = vmatpush1.xpose.msra.mxu0 0.0
        %2608 = vmatprep.subr.mxu0 0.0
        %2609 = vmatpush1.xpose.msra.mxu0 0.0
        %2610 = vmatprep.subr.mxu0 0.0
        %2611 = vmatpush1.xpose.msra.mxu0 0.0
        %2612 = vmatprep.subr.mxu0 0.0
        %2613 = vmatpush1.xpose.msra.mxu0 0.0
        %2614 = vmatprep.subr.mxu0 0.0
        %2615 = vmatpush1.xpose.msra.mxu0 0.0
        %2616 = vmatprep.subr.mxu0 0.0
        %2617 = vmatpush1.xpose.msra.mxu0 0.0
        %2618 = vmatprep.subr.mxu0 0.0
        %2619 = vmatpush1.xpose.msra.mxu0 0.0
        %2620 = vmatprep.subr.mxu0 0.0
        %2621 = vmatpush1.xpose.msra.mxu0 0.0
        %2622 = vmatprep.subr.mxu0 0.0
        %2623 = vmatpush1.xpose.msra.mxu0 0.0
        %2624 = vmatprep.subr.mxu0 0.0
        %2625 = vmatpush1.xpose.msra.mxu0 0.0
        %2626 = vmatprep.subr.mxu0 0.0
        %2627 = vmatpush1.xpose.msra.mxu0 0.0
        %2628 = vmatprep.subr.mxu0 0.0
        %2629 = vmatpush1.xpose.msra.mxu0 0.0
        %2630 = vmatprep.subr.mxu0 0.0
        %2631 = vmatpush1.xpose.msra.mxu0 0.0
        %2632 = vmatprep.subr.mxu0 0.0
        %2633 = vmatpush1.xpose.msra.mxu0 0.0
        %2634 = vmatprep.subr.mxu0 0.0
        %2635 = vmatpush1.xpose.msra.mxu0 0.0
        %2636 = vmatprep.subr.mxu0 0.0
        %2637 = vmatpush1.xpose.msra.mxu0 0.0
        %2638 = vmatprep.subr.mxu0 0.0
        %2639 = vmatpush1.xpose.msra.mxu0 0.0
        %2640 = vmatprep.subr.mxu0 0.0
        %2641 = vmatpush1.xpose.msra.mxu0 0.0
        %2642 = vmatprep.subr.mxu0 0.0
        %2643 = vmatpush1.xpose.msra.mxu0 0.0
        %2644 = vmatprep.subr.mxu0 0.0
        %2645 = vmatpush1.xpose.msra.mxu0 0.0
        %2646 = vmatprep.subr.mxu0 0.0
        %2647 = vmatpush1.xpose.msra.mxu0 0.0
        %2648 = vmatprep.mubr.f32.mxu0 0.0
        %v2649 = vand.u32 %v2579, 4294901760
        %v2650 = vsub.f32 %v2579, %v2649
        %v2651 = vand.u32 %v2650, 4294901760
        %v2652 = vsub.f32 %v2650, %v2651
        %v2653 = vand.u32 %v2652, 4294901760
        %2654 = vmatmul.mubr.f32.gmra.mrb[0].mxu0 %v2653
        %v2655 = vpop.f32.mrb[0].mxu0
        %v2656 = vadd.f32 %v238, %v2655
        %v2657 = vpop.f32.mrb[0].mxu0
        %2658 = vdwg.mxu0
        %2659 = vmatprep.subr.mxu0 0.0
        %v2660 = vand.u32 %v2581, 4294901760
        %v2661 = vsub.f32 %v2581, %v2660
        %v2662 = vand.u32 %v2661, 4294901760
        %v2663 = vsub.f32 %v2661, %v2662
        %v2664 = vand.u32 %v2663, 4294901760
        %2665 = vmatpush1.xpose.msra.mxu0 %v2664
        %2666 = vmatprep.subr.mxu0 0.0
        %2667 = vmatpush1.xpose.msra.mxu0 0.0
        %2668 = vmatprep.subr.mxu0 0.0
        %2669 = vmatpush1.xpose.msra.mxu0 0.0
        %2670 = vmatprep.subr.mxu0 0.0
        %2671 = vmatpush1.xpose.msra.mxu0 0.0
        %2672 = vmatprep.subr.mxu0 0.0
        %2673 = vmatpush1.xpose.msra.mxu0 0.0
        %2674 = vmatprep.subr.mxu0 0.0
        %2675 = vmatpush1.xpose.msra.mxu0 0.0
        %2676 = vmatprep.subr.mxu0 0.0
        %2677 = vmatpush1.xpose.msra.mxu0 0.0
        %2678 = vmatprep.subr.mxu0 0.0
        %2679 = vmatpush1.xpose.msra.mxu0 0.0
        %2680 = vmatprep.subr.mxu0 0.0
        %2681 = vmatpush1.xpose.msra.mxu0 0.0
        %2682 = vmatprep.subr.mxu0 0.0
        %2683 = vmatpush1.xpose.msra.mxu0 0.0
        %2684 = vmatprep.subr.mxu0 0.0
        %2685 = vmatpush1.xpose.msra.mxu0 0.0
        %2686 = vmatprep.subr.mxu0 0.0
        %2687 = vmatpush1.xpose.msra.mxu0 0.0
        %2688 = vmatprep.subr.mxu0 0.0
        %2689 = vmatpush1.xpose.msra.mxu0 0.0
        %2690 = vmatprep.subr.mxu0 0.0
        %2691 = vmatpush1.xpose.msra.mxu0 0.0
        %2692 = vmatprep.subr.mxu0 0.0
        %2693 = vmatpush1.xpose.msra.mxu0 0.0
        %2694 = vmatprep.subr.mxu0 0.0
        %2695 = vmatpush1.xpose.msra.mxu0 0.0
        %2696 = vmatprep.subr.mxu0 0.0
        %2697 = vmatpush1.xpose.msra.mxu0 0.0
        %2698 = vmatprep.subr.mxu0 0.0
        %2699 = vmatpush1.xpose.msra.mxu0 0.0
        %2700 = vmatprep.subr.mxu0 0.0
        %2701 = vmatpush1.xpose.msra.mxu0 0.0
        %2702 = vmatprep.subr.mxu0 0.0
        %2703 = vmatpush1.xpose.msra.mxu0 0.0
        %2704 = vmatprep.subr.mxu0 0.0
        %2705 = vmatpush1.xpose.msra.mxu0 0.0
        %2706 = vmatprep.subr.mxu0 0.0
        %2707 = vmatpush1.xpose.msra.mxu0 0.0
        %2708 = vmatprep.subr.mxu0 0.0
        %2709 = vmatpush1.xpose.msra.mxu0 0.0
        %2710 = vmatprep.subr.mxu0 0.0
        %2711 = vmatpush1.xpose.msra.mxu0 0.0
        %2712 = vmatprep.subr.mxu0 0.0
        %2713 = vmatpush1.xpose.msra.mxu0 0.0
        %2714 = vmatprep.subr.mxu0 0.0
        %2715 = vmatpush1.xpose.msra.mxu0 0.0
        %2716 = vmatprep.subr.mxu0 0.0
        %2717 = vmatpush1.xpose.msra.mxu0 0.0
        %2718 = vmatprep.subr.mxu0 0.0
        %2719 = vmatpush1.xpose.msra.mxu0 0.0
        %2720 = vmatprep.subr.mxu0 0.0
        %2721 = vmatpush1.xpose.msra.mxu0 0.0
        %2722 = vmatprep.subr.mxu0 0.0
        %2723 = vmatpush1.xpose.msra.mxu0 0.0
        %2724 = vmatprep.subr.mxu0 0.0
        %2725 = vmatpush1.xpose.msra.mxu0 0.0
        %2726 = vmatprep.subr.mxu0 0.0
        %2727 = vmatpush1.xpose.msra.mxu0 0.0
        %2728 = vmatprep.mubr.f32.mxu0 0.0
        %v2729 = vand.u32 %v2579, 4294901760
        %2730 = vmatmul.mubr.f32.gmra.mrb[0].mxu0 %v2729
        %v2731 = vpop.f32.mrb[0].mxu0
        %v2732 = vadd.f32 %v2656, %v2731
        %v2733 = vpop.f32.mrb[0].mxu0
        %2734 = vdwg.mxu0
        %2735 = vmatprep.subr.mxu0 0.0
        %v2736 = vand.u32 %v2581, 4294901760
        %v2737 = vsub.f32 %v2581, %v2736
        %2738 = vmatpush1.xpose.msra.mxu0 %v2737
        %2739 = vmatprep.subr.mxu0 0.0
        %2740 = vmatpush1.xpose.msra.mxu0 0.0
        %2741 = vmatprep.subr.mxu0 0.0
        %2742 = vmatpush1.xpose.msra.mxu0 0.0
        %2743 = vmatprep.subr.mxu0 0.0
        %2744 = vmatpush1.xpose.msra.mxu0 0.0
        %2745 = vmatprep.subr.mxu0 0.0
        %2746 = vmatpush1.xpose.msra.mxu0 0.0
        %2747 = vmatprep.subr.mxu0 0.0
        %2748 = vmatpush1.xpose.msra.mxu0 0.0
        %2749 = vmatprep.subr.mxu0 0.0
        %2750 = vmatpush1.xpose.msra.mxu0 0.0
        %2751 = vmatprep.subr.mxu0 0.0
        %2752 = vmatpush1.xpose.msra.mxu0 0.0
        %2753 = vmatprep.subr.mxu0 0.0
        %2754 = vmatpush1.xpose.msra.mxu0 0.0
        %2755 = vmatprep.subr.mxu0 0.0
        %2756 = vmatpush1.xpose.msra.mxu0 0.0
        %2757 = vmatprep.subr.mxu0 0.0
        %2758 = vmatpush1.xpose.msra.mxu0 0.0
        %2759 = vmatprep.subr.mxu0 0.0
        %2760 = vmatpush1.xpose.msra.mxu0 0.0
        %2761 = vmatprep.subr.mxu0 0.0
        %2762 = vmatpush1.xpose.msra.mxu0 0.0
        %2763 = vmatprep.subr.mxu0 0.0
        %2764 = vmatpush1.xpose.msra.mxu0 0.0
        %2765 = vmatprep.subr.mxu0 0.0
        %2766 = vmatpush1.xpose.msra.mxu0 0.0
        %2767 = vmatprep.subr.mxu0 0.0
        %2768 = vmatpush1.xpose.msra.mxu0 0.0
        %2769 = vmatprep.subr.mxu0 0.0
        %2770 = vmatpush1.xpose.msra.mxu0 0.0
        %2771 = vmatprep.subr.mxu0 0.0
        %2772 = vmatpush1.xpose.msra.mxu0 0.0
        %2773 = vmatprep.subr.mxu0 0.0
        %2774 = vmatpush1.xpose.msra.mxu0 0.0
        %2775 = vmatprep.subr.mxu0 0.0
        %2776 = vmatpush1.xpose.msra.mxu0 0.0
        %2777 = vmatprep.subr.mxu0 0.0
        %2778 = vmatpush1.xpose.msra.mxu0 0.0
        %2779 = vmatprep.subr.mxu0 0.0
        %2780 = vmatpush1.xpose.msra.mxu0 0.0
        %2781 = vmatprep.subr.mxu0 0.0
        %2782 = vmatpush1.xpose.msra.mxu0 0.0
        %2783 = vmatprep.subr.mxu0 0.0
        %2784 = vmatpush1.xpose.msra.mxu0 0.0
        %2785 = vmatprep.subr.mxu0 0.0
        %2786 = vmatpush1.xpose.msra.mxu0 0.0
        %2787 = vmatprep.subr.mxu0 0.0
        %2788 = vmatpush1.xpose.msra.mxu0 0.0
        %2789 = vmatprep.subr.mxu0 0.0
        %2790 = vmatpush1.xpose.msra.mxu0 0.0
        %2791 = vmatprep.subr.mxu0 0.0
        %2792 = vmatpush1.xpose.msra.mxu0 0.0
        %2793 = vmatprep.subr.mxu0 0.0
        %2794 = vmatpush1.xpose.msra.mxu0 0.0
        %2795 = vmatprep.subr.mxu0 0.0
        %2796 = vmatpush1.xpose.msra.mxu0 0.0
        %2797 = vmatprep.subr.mxu0 0.0
        %2798 = vmatpush1.xpose.msra.mxu0 0.0
        %2799 = vmatprep.subr.mxu0 0.0
        %2800 = vmatpush1.xpose.msra.mxu0 0.0
        %2801 = vmatprep.mubr.f32.mxu0 0.0
        %v2802 = vand.u32 %v2579, 4294901760
        %v2803 = vsub.f32 %v2579, %v2802
        %2804 = vmatmul.mubr.f32.gmra.mrb[0].mxu0 %v2803
        %v2805 = vpop.f32.mrb[0].mxu0
        %v2806 = vadd.f32 %v2732, %v2805
        %v2807 = vpop.f32.mrb[0].mxu0
        %2808 = vdwg.mxu0
        %2809 = vmatprep.subr.mxu0 0.0
        %v2810 = vand.u32 %v2581, 4294901760
        %2811 = vmatpush1.xpose.msra.mxu0 %v2810
        %2812 = vmatprep.subr.mxu0 0.0
        %2813 = vmatpush1.xpose.msra.mxu0 0.0
        %2814 = vmatprep.subr.mxu0 0.0
        %2815 = vmatpush1.xpose.msra.mxu0 0.0
        %2816 = vmatprep.subr.mxu0 0.0
        %2817 = vmatpush1.xpose.msra.mxu0 0.0
        %2818 = vmatprep.subr.mxu0 0.0
        %2819 = vmatpush1.xpose.msra.mxu0 0.0
        %2820 = vmatprep.subr.mxu0 0.0
        %2821 = vmatpush1.xpose.msra.mxu0 0.0
        %2822 = vmatprep.subr.mxu0 0.0
        %2823 = vmatpush1.xpose.msra.mxu0 0.0
        %2824 = vmatprep.subr.mxu0 0.0
        %2825 = vmatpush1.xpose.msra.mxu0 0.0
        %2826 = vmatprep.subr.mxu0 0.0
        %2827 = vmatpush1.xpose.msra.mxu0 0.0
        %2828 = vmatprep.subr.mxu0 0.0
        %2829 = vmatpush1.xpose.msra.mxu0 0.0
        %2830 = vmatprep.subr.mxu0 0.0
        %2831 = vmatpush1.xpose.msra.mxu0 0.0
        %2832 = vmatprep.subr.mxu0 0.0
        %2833 = vmatpush1.xpose.msra.mxu0 0.0
        %2834 = vmatprep.subr.mxu0 0.0
        %2835 = vmatpush1.xpose.msra.mxu0 0.0
        %2836 = vmatprep.subr.mxu0 0.0
        %2837 = vmatpush1.xpose.msra.mxu0 0.0
        %2838 = vmatprep.subr.mxu0 0.0
        %2839 = vmatpush1.xpose.msra.mxu0 0.0
        %2840 = vmatprep.subr.mxu0 0.0
        %2841 = vmatpush1.xpose.msra.mxu0 0.0
        %2842 = vmatprep.subr.mxu0 0.0
        %2843 = vmatpush1.xpose.msra.mxu0 0.0
        %2844 = vmatprep.subr.mxu0 0.0
        %2845 = vmatpush1.xpose.msra.mxu0 0.0
        %2846 = vmatprep.subr.mxu0 0.0
        %2847 = vmatpush1.xpose.msra.mxu0 0.0
        %2848 = vmatprep.subr.mxu0 0.0
        %2849 = vmatpush1.xpose.msra.mxu0 0.0
        %2850 = vmatprep.subr.mxu0 0.0
        %2851 = vmatpush1.xpose.msra.mxu0 0.0
        %2852 = vmatprep.subr.mxu0 0.0
        %2853 = vmatpush1.xpose.msra.mxu0 0.0
        %2854 = vmatprep.subr.mxu0 0.0
        %2855 = vmatpush1.xpose.msra.mxu0 0.0
        %2856 = vmatprep.subr.mxu0 0.0
        %2857 = vmatpush1.xpose.msra.mxu0 0.0
        %2858 = vmatprep.subr.mxu0 0.0
        %2859 = vmatpush1.xpose.msra.mxu0 0.0
        %2860 = vmatprep.subr.mxu0 0.0
        %2861 = vmatpush1.xpose.msra.mxu0 0.0
        %2862 = vmatprep.subr.mxu0 0.0
        %2863 = vmatpush1.xpose.msra.mxu0 0.0
        %2864 = vmatprep.subr.mxu0 0.0
        %2865 = vmatpush1.xpose.msra.mxu0 0.0
        %2866 = vmatprep.subr.mxu0 0.0
        %2867 = vmatpush1.xpose.msra.mxu0 0.0
        %2868 = vmatprep.subr.mxu0 0.0
        %2869 = vmatpush1.xpose.msra.mxu0 0.0
        %2870 = vmatprep.subr.mxu0 0.0
        %2871 = vmatpush1.xpose.msra.mxu0 0.0
        %2872 = vmatprep.subr.mxu0 0.0
        %2873 = vmatpush1.xpose.msra.mxu0 0.0
        %2874 = vmatprep.mubr.f32.mxu0 0.0
        %v2875 = vand.u32 %v2579, 4294901760
        %v2876 = vsub.f32 %v2579, %v2875
        %v2877 = vand.u32 %v2876, 4294901760
        %2878 = vmatmul.mubr.f32.gmra.mrb[0].mxu0 %v2877
        %v2879 = vpop.f32.mrb[0].mxu0
        %v2880 = vadd.f32 %v2806, %v2879
        %v2881 = vpop.f32.mrb[0].mxu0
        %2882 = vdwg.mxu0
        %2883 = vmatprep.subr.mxu0 0.0
        %v2884 = vand.u32 %v2581, 4294901760
        %v2885 = vsub.f32 %v2581, %v2884
        %v2886 = vand.u32 %v2885, 4294901760
        %2887 = vmatpush1.xpose.msra.mxu0 %v2886
        %2888 = vmatprep.subr.mxu0 0.0
        %2889 = vmatpush1.xpose.msra.mxu0 0.0
        %2890 = vmatprep.subr.mxu0 0.0
        %2891 = vmatpush1.xpose.msra.mxu0 0.0
        %2892 = vmatprep.subr.mxu0 0.0
        %2893 = vmatpush1.xpose.msra.mxu0 0.0
        %2894 = vmatprep.subr.mxu0 0.0
        %2895 = vmatpush1.xpose.msra.mxu0 0.0
        %2896 = vmatprep.subr.mxu0 0.0
        %2897 = vmatpush1.xpose.msra.mxu0 0.0
        %2898 = vmatprep.subr.mxu0 0.0
        %2899 = vmatpush1.xpose.msra.mxu0 0.0
        %2900 = vmatprep.subr.mxu0 0.0
        %2901 = vmatpush1.xpose.msra.mxu0 0.0
        %2902 = vmatprep.subr.mxu0 0.0
        %2903 = vmatpush1.xpose.msra.mxu0 0.0
        %2904 = vmatprep.subr.mxu0 0.0
        %2905 = vmatpush1.xpose.msra.mxu0 0.0
        %2906 = vmatprep.subr.mxu0 0.0
        %2907 = vmatpush1.xpose.msra.mxu0 0.0
        %2908 = vmatprep.subr.mxu0 0.0
        %2909 = vmatpush1.xpose.msra.mxu0 0.0
        %2910 = vmatprep.subr.mxu0 0.0
        %2911 = vmatpush1.xpose.msra.mxu0 0.0
        %2912 = vmatprep.subr.mxu0 0.0
        %2913 = vmatpush1.xpose.msra.mxu0 0.0
        %2914 = vmatprep.subr.mxu0 0.0
        %2915 = vmatpush1.xpose.msra.mxu0 0.0
        %2916 = vmatprep.subr.mxu0 0.0
        %2917 = vmatpush1.xpose.msra.mxu0 0.0
        %2918 = vmatprep.subr.mxu0 0.0
        %2919 = vmatpush1.xpose.msra.mxu0 0.0
        %2920 = vmatprep.subr.mxu0 0.0
        %2921 = vmatpush1.xpose.msra.mxu0 0.0
        %2922 = vmatprep.subr.mxu0 0.0
        %2923 = vmatpush1.xpose.msra.mxu0 0.0
        %2924 = vmatprep.subr.mxu0 0.0
        %2925 = vmatpush1.xpose.msra.mxu0 0.0
        %2926 = vmatprep.subr.mxu0 0.0
        %2927 = vmatpush1.xpose.msra.mxu0 0.0
        %2928 = vmatprep.subr.mxu0 0.0
        %2929 = vmatpush1.xpose.msra.mxu0 0.0
        %2930 = vmatprep.subr.mxu0 0.0
        %2931 = vmatpush1.xpose.msra.mxu0 0.0
        %2932 = vmatprep.subr.mxu0 0.0
        %2933 = vmatpush1.xpose.msra.mxu0 0.0
        %2934 = vmatprep.subr.mxu0 0.0
        %2935 = vmatpush1.xpose.msra.mxu0 0.0
        %2936 = vmatprep.subr.mxu0 0.0
        %2937 = vmatpush1.xpose.msra.mxu0 0.0
        %2938 = vmatprep.subr.mxu0 0.0
        %2939 = vmatpush1.xpose.msra.mxu0 0.0
        %2940 = vmatprep.subr.mxu0 0.0
        %2941 = vmatpush1.xpose.msra.mxu0 0.0
        %2942 = vmatprep.subr.mxu0 0.0
        %2943 = vmatpush1.xpose.msra.mxu0 0.0
        %2944 = vmatprep.subr.mxu0 0.0
        %2945 = vmatpush1.xpose.msra.mxu0 0.0
        %2946 = vmatprep.subr.mxu0 0.0
        %2947 = vmatpush1.xpose.msra.mxu0 0.0
        %2948 = vmatprep.subr.mxu0 0.0
        %2949 = vmatpush1.xpose.msra.mxu0 0.0
        %2950 = vmatprep.mubr.f32.mxu0 0.0
        %v2951 = vand.u32 %v2579, 4294901760
        %2952 = vmatmul.mubr.f32.gmra.mrb[0].mxu0 %v2951
        %v2953 = vpop.f32.mrb[0].mxu0
        %v2954 = vadd.f32 %v2880, %v2953
        %v2955 = vpop.f32.mrb[0].mxu0
        %2956 = vdwg.mxu0
        %2957 = vmatprep.subr.mxu0 0.0
        %v2958 = vand.u32 %v2581, 4294901760
        %2959 = vmatpush1.xpose.msra.mxu0 %v2958
        %2960 = vmatprep.subr.mxu0 0.0
        %2961 = vmatpush1.xpose.msra.mxu0 0.0
        %2962 = vmatprep.subr.mxu0 0.0
        %2963 = vmatpush1.xpose.msra.mxu0 0.0
        %2964 = vmatprep.subr.mxu0 0.0
        %2965 = vmatpush1.xpose.msra.mxu0 0.0
        %2966 = vmatprep.subr.mxu0 0.0
        %2967 = vmatpush1.xpose.msra.mxu0 0.0
        %2968 = vmatprep.subr.mxu0 0.0
        %2969 = vmatpush1.xpose.msra.mxu0 0.0
        %2970 = vmatprep.subr.mxu0 0.0
        %2971 = vmatpush1.xpose.msra.mxu0 0.0
        %2972 = vmatprep.subr.mxu0 0.0
        %2973 = vmatpush1.xpose.msra.mxu0 0.0
        %2974 = vmatprep.subr.mxu0 0.0
        %2975 = vmatpush1.xpose.msra.mxu0 0.0
        %2976 = vmatprep.subr.mxu0 0.0
        %2977 = vmatpush1.xpose.msra.mxu0 0.0
        %2978 = vmatprep.subr.mxu0 0.0
        %2979 = vmatpush1.xpose.msra.mxu0 0.0
        %2980 = vmatprep.subr.mxu0 0.0
        %2981 = vmatpush1.xpose.msra.mxu0 0.0
        %2982 = vmatprep.subr.mxu0 0.0
        %2983 = vmatpush1.xpose.msra.mxu0 0.0
        %2984 = vmatprep.subr.mxu0 0.0
        %2985 = vmatpush1.xpose.msra.mxu0 0.0
        %2986 = vmatprep.subr.mxu0 0.0
        %2987 = vmatpush1.xpose.msra.mxu0 0.0
        %2988 = vmatprep.subr.mxu0 0.0
        %2989 = vmatpush1.xpose.msra.mxu0 0.0
        %2990 = vmatprep.subr.mxu0 0.0
        %2991 = vmatpush1.xpose.msra.mxu0 0.0
        %2992 = vmatprep.subr.mxu0 0.0
        %2993 = vmatpush1.xpose.msra.mxu0 0.0
        %2994 = vmatprep.subr.mxu0 0.0
        %2995 = vmatpush1.xpose.msra.mxu0 0.0
        %2996 = vmatprep.subr.mxu0 0.0
        %2997 = vmatpush1.xpose.msra.mxu0 0.0
        %2998 = vmatprep.subr.mxu0 0.0
        %2999 = vmatpush1.xpose.msra.mxu0 0.0
        %3000 = vmatprep.subr.mxu0 0.0
        %3001 = vmatpush1.xpose.msra.mxu0 0.0
        %3002 = vmatprep.subr.mxu0 0.0
        %3003 = vmatpush1.xpose.msra.mxu0 0.0
        %3004 = vmatprep.subr.mxu0 0.0
        %3005 = vmatpush1.xpose.msra.mxu0 0.0
        %3006 = vmatprep.subr.mxu0 0.0
        %3007 = vmatpush1.xpose.msra.mxu0 0.0
        %3008 = vmatprep.subr.mxu0 0.0
        %3009 = vmatpush1.xpose.msra.mxu0 0.0
        %3010 = vmatprep.subr.mxu0 0.0
        %3011 = vmatpush1.xpose.msra.mxu0 0.0
        %3012 = vmatprep.subr.mxu0 0.0
        %3013 = vmatpush1.xpose.msra.mxu0 0.0
        %3014 = vmatprep.subr.mxu0 0.0
        %3015 = vmatpush1.xpose.msra.mxu0 0.0
        %3016 = vmatprep.subr.mxu0 0.0
        %3017 = vmatpush1.xpose.msra.mxu0 0.0
        %3018 = vmatprep.subr.mxu0 0.0
        %3019 = vmatpush1.xpose.msra.mxu0 0.0
        %3020 = vmatprep.subr.mxu0 0.0
        %3021 = vmatpush1.xpose.msra.mxu0 0.0
        %3022 = vmatprep.mubr.f32.mxu0 0.0
        %v3023 = vand.u32 %v2579, 4294901760
        %3024 = vmatmul.mubr.f32.gmra.mrb[0].mxu0 %v3023
        %v3025 = vpop.f32.mrb[0].mxu0
        %v3026 = vadd.f32 %v2954, %v3025
        %v3027 = vpop.f32.mrb[0].mxu0
        %3028 = vdwg.mxu0
        %v3029 = vadd.f32 %v3026, %v1191
        %v3030 = vsel %vm736, %v3029, -inf
        %3031 = vmax.xlane.f32.xlu0 %v3030
        %v3032 = vpop.xlane.xlu0 %3031
        %v3033 = vsub.f32 %v3029, %v3032
        %v3034 = vmul.f32 %v3033, 1.442695
        %v3035 = vpow.pop %v3034
        %v3036 = vsel %vm736, %v3035, 0.0
        %3037 = vadd.xlane.f32.xlu0 %v3036
        %v3038 = vpop.xlane.xlu0 %3037
        %v3039 = vrcp.pop %v3038
        %v3040 = vmul.f32 %v3035, %v3039
        %3041 = vrot.lane.b32.xlu0 %v730, 48
        %v3042 = vpop.permute.xlu0 %3041
        %v3045 = vsel %vm736, %v3040, 0
        %3047 = vmatprep.subr.mxu0 0.0
        %v3048 = vand.u32 %v3042, 4294901760
        %3049 = vmatpush1.msra.mxu0 %v3048
        %3050 = vmatprep.subr.mxu0 0.0
        %3051 = vmatpush1.msra.mxu0 0.0
        %3052 = vmatprep.subr.mxu0 0.0
        %3053 = vmatpush1.msra.mxu0 0.0
        %3054 = vmatprep.subr.mxu0 0.0
        %3055 = vmatpush1.msra.mxu0 0.0
        %3056 = vmatprep.subr.mxu0 0.0
        %3057 = vmatpush1.msra.mxu0 0.0
        %3058 = vmatprep.subr.mxu0 0.0
        %3059 = vmatpush1.msra.mxu0 0.0
        %3060 = vmatprep.subr.mxu0 0.0
        %3061 = vmatpush1.msra.mxu0 0.0
        %3062 = vmatprep.subr.mxu0 0.0
        %3063 = vmatpush1.msra.mxu0 0.0
        %3064 = vmatprep.subr.mxu0 0.0
        %3065 = vmatpush1.msra.mxu0 0.0
        %3066 = vmatprep.subr.mxu0 0.0
        %3067 = vmatpush1.msra.mxu0 0.0
        %3068 = vmatprep.subr.mxu0 0.0
        %3069 = vmatpush1.msra.mxu0 0.0
        %3070 = vmatprep.subr.mxu0 0.0
        %3071 = vmatpush1.msra.mxu0 0.0
        %3072 = vmatprep.subr.mxu0 0.0
        %3073 = vmatpush1.msra.mxu0 0.0
        %3074 = vmatprep.subr.mxu0 0.0
        %3075 = vmatpush1.msra.mxu0 0.0
        %3076 = vmatprep.subr.mxu0 0.0
        %3077 = vmatpush1.msra.mxu0 0.0
        %3078 = vmatprep.subr.mxu0 0.0
        %3079 = vmatpush1.msra.mxu0 0.0
        %3080 = vmatprep.subr.mxu0 0.0
        %3081 = vmatpush1.msra.mxu0 0.0
        %3082 = vmatprep.subr.mxu0 0.0
        %3083 = vmatpush1.msra.mxu0 0.0
        %3084 = vmatprep.subr.mxu0 0.0
        %3085 = vmatpush1.msra.mxu0 0.0
        %3086 = vmatprep.subr.mxu0 0.0
        %3087 = vmatpush1.msra.mxu0 0.0
        %3088 = vmatprep.subr.mxu0 0.0
        %3089 = vmatpush1.msra.mxu0 0.0
        %3090 = vmatprep.subr.mxu0 0.0
        %3091 = vmatpush1.msra.mxu0 0.0
        %3092 = vmatprep.subr.mxu0 0.0
        %3093 = vmatpush1.msra.mxu0 0.0
        %3094 = vmatprep.subr.mxu0 0.0
        %3095 = vmatpush1.msra.mxu0 0.0
        %3096 = vmatprep.subr.mxu0 0.0
        %3097 = vmatpush1.msra.mxu0 0.0
        %3098 = vmatprep.subr.mxu0 0.0
        %3099 = vmatpush1.msra.mxu0 0.0
        %3100 = vmatprep.subr.mxu0 0.0
        %3101 = vmatpush1.msra.mxu0 0.0
        %3102 = vmatprep.subr.mxu0 0.0
        %3103 = vmatpush1.msra.mxu0 0.0
        %3104 = vmatprep.subr.mxu0 0.0
        %3105 = vmatpush1.msra.mxu0 0.0
        %3106 = vmatprep.subr.mxu0 0.0
        %3107 = vmatpush1.msra.mxu0 0.0
        %3108 = vmatprep.subr.mxu0 0.0
        %3109 = vmatpush1.msra.mxu0 0.0
        %3110 = vmatprep.subr.mxu0 0.0
        %3111 = vmatpush1.msra.mxu0 0.0
        %3112 = vmatprep.mubr.f32.mxu0 0.0
        %v3113 = vand.u32 %v3045, 4294901760
        %v3114 = vsub.f32 %v3045, %v3113
        %v3115 = vand.u32 %v3114, 4294901760
        %v3116 = vsub.f32 %v3114, %v3115
        %v3117 = vand.u32 %v3116, 4294901760
        %3118 = vmatmul.mubr.f32.gmra.mrb[0].mxu0 %v3117
        %v3119 = vpop.f32.mrb[0].mxu0
        %v3120 = vadd.f32 0.0, %v3119
        %v3121 = vpop.f32.mrb[0].mxu0
        %3122 = vdwg.mxu0
        %3123 = vmatprep.subr.mxu0 0.0
        %v3124 = vand.u32 %v3042, 4294901760
        %v3125 = vsub.f32 %v3042, %v3124
        %v3126 = vand.u32 %v3125, 4294901760
        %v3127 = vsub.f32 %v3125, %v3126
        %v3128 = vand.u32 %v3127, 4294901760
        %3129 = vmatpush1.msra.mxu0 %v3128
        %3130 = vmatprep.subr.mxu0 0.0
        %3131 = vmatpush1.msra.mxu0 0.0
        %3132 = vmatprep.subr.mxu0 0.0
        %3133 = vmatpush1.msra.mxu0 0.0
        %3134 = vmatprep.subr.mxu0 0.0
        %3135 = vmatpush1.msra.mxu0 0.0
        %3136 = vmatprep.subr.mxu0 0.0
        %3137 = vmatpush1.msra.mxu0 0.0
        %3138 = vmatprep.subr.mxu0 0.0
        %3139 = vmatpush1.msra.mxu0 0.0
        %3140 = vmatprep.subr.mxu0 0.0
        %3141 = vmatpush1.msra.mxu0 0.0
        %3142 = vmatprep.subr.mxu0 0.0
        %3143 = vmatpush1.msra.mxu0 0.0
        %3144 = vmatprep.subr.mxu0 0.0
        %3145 = vmatpush1.msra.mxu0 0.0
        %3146 = vmatprep.subr.mxu0 0.0
        %3147 = vmatpush1.msra.mxu0 0.0
        %3148 = vmatprep.subr.mxu0 0.0
        %3149 = vmatpush1.msra.mxu0 0.0
        %3150 = vmatprep.subr.mxu0 0.0
        %3151 = vmatpush1.msra.mxu0 0.0
        %3152 = vmatprep.subr.mxu0 0.0
        %3153 = vmatpush1.msra.mxu0 0.0
        %3154 = vmatprep.subr.mxu0 0.0
        %3155 = vmatpush1.msra.mxu0 0.0
        %3156 = vmatprep.subr.mxu0 0.0
        %3157 = vmatpush1.msra.mxu0 0.0
        %3158 = vmatprep.subr.mxu0 0.0
        %3159 = vmatpush1.msra.mxu0 0.0
        %3160 = vmatprep.subr.mxu0 0.0
        %3161 = vmatpush1.msra.mxu0 0.0
        %3162 = vmatprep.subr.mxu0 0.0
        %3163 = vmatpush1.msra.mxu0 0.0
        %3164 = vmatprep.subr.mxu0 0.0
        %3165 = vmatpush1.msra.mxu0 0.0
        %3166 = vmatprep.subr.mxu0 0.0
        %3167 = vmatpush1.msra.mxu0 0.0
        %3168 = vmatprep.subr.mxu0 0.0
        %3169 = vmatpush1.msra.mxu0 0.0
        %3170 = vmatprep.subr.mxu0 0.0
        %3171 = vmatpush1.msra.mxu0 0.0
        %3172 = vmatprep.subr.mxu0 0.0
        %3173 = vmatpush1.msra.mxu0 0.0
        %3174 = vmatprep.subr.mxu0 0.0
        %3175 = vmatpush1.msra.mxu0 0.0
        %3176 = vmatprep.subr.mxu0 0.0
        %3177 = vmatpush1.msra.mxu0 0.0
        %3178 = vmatprep.subr.mxu0 0.0
        %3179 = vmatpush1.msra.mxu0 0.0
        %3180 = vmatprep.subr.mxu0 0.0
        %3181 = vmatpush1.msra.mxu0 0.0
        %3182 = vmatprep.subr.mxu0 0.0
        %3183 = vmatpush1.msra.mxu0 0.0
        %3184 = vmatprep.subr.mxu0 0.0
        %3185 = vmatpush1.msra.mxu0 0.0
        %3186 = vmatprep.subr.mxu0 0.0
        %3187 = vmatpush1.msra.mxu0 0.0
        %3188 = vmatprep.subr.mxu0 0.0
        %3189 = vmatpush1.msra.mxu0 0.0
        %3190 = vmatprep.subr.mxu0 0.0
        %3191 = vmatpush1.msra.mxu0 0.0
        %3192 = vmatprep.mubr.f32.mxu0 0.0
        %v3193 = vand.u32 %v3045, 4294901760
        %3194 = vmatmul.mubr.f32.gmra.mrb[0].mxu0 %v3193
        %v3195 = vpop.f32.mrb[0].mxu0
        %v3196 = vadd.f32 %v3120, %v3195
        %v3197 = vpop.f32.mrb[0].mxu0
        %3198 = vdwg.mxu0
        %3199 = vmatprep.subr.mxu0 0.0
        %v3200 = vand.u32 %v3042, 4294901760
        %v3201 = vsub.f32 %v3042, %v3200
        %3202 = vmatpush1.msra.mxu0 %v3201
        %3203 = vmatprep.subr.mxu0 0.0
        %3204 = vmatpush1.msra.mxu0 0.0
        %3205 = vmatprep.subr.mxu0 0.0
        %3206 = vmatpush1.msra.mxu0 0.0
        %3207 = vmatprep.subr.mxu0 0.0
        %3208 = vmatpush1.msra.mxu0 0.0
        %3209 = vmatprep.subr.mxu0 0.0
        %3210 = vmatpush1.msra.mxu0 0.0
        %3211 = vmatprep.subr.mxu0 0.0
        %3212 = vmatpush1.msra.mxu0 0.0
        %3213 = vmatprep.subr.mxu0 0.0
        %3214 = vmatpush1.msra.mxu0 0.0
        %3215 = vmatprep.subr.mxu0 0.0
        %3216 = vmatpush1.msra.mxu0 0.0
        %3217 = vmatprep.subr.mxu0 0.0
        %3218 = vmatpush1.msra.mxu0 0.0
        %3219 = vmatprep.subr.mxu0 0.0
        %3220 = vmatpush1.msra.mxu0 0.0
        %3221 = vmatprep.subr.mxu0 0.0
        %3222 = vmatpush1.msra.mxu0 0.0
        %3223 = vmatprep.subr.mxu0 0.0
        %3224 = vmatpush1.msra.mxu0 0.0
        %3225 = vmatprep.subr.mxu0 0.0
        %3226 = vmatpush1.msra.mxu0 0.0
        %3227 = vmatprep.subr.mxu0 0.0
        %3228 = vmatpush1.msra.mxu0 0.0
        %3229 = vmatprep.subr.mxu0 0.0
        %3230 = vmatpush1.msra.mxu0 0.0
        %3231 = vmatprep.subr.mxu0 0.0
        %3232 = vmatpush1.msra.mxu0 0.0
        %3233 = vmatprep.subr.mxu0 0.0
        %3234 = vmatpush1.msra.mxu0 0.0
        %3235 = vmatprep.subr.mxu0 0.0
        %3236 = vmatpush1.msra.mxu0 0.0
        %3237 = vmatprep.subr.mxu0 0.0
        %3238 = vmatpush1.msra.mxu0 0.0
        %3239 = vmatprep.subr.mxu0 0.0
        %3240 = vmatpush1.msra.mxu0 0.0
        %3241 = vmatprep.subr.mxu0 0.0
        %3242 = vmatpush1.msra.mxu0 0.0
        %3243 = vmatprep.subr.mxu0 0.0
        %3244 = vmatpush1.msra.mxu0 0.0
        %3245 = vmatprep.subr.mxu0 0.0
        %3246 = vmatpush1.msra.mxu0 0.0
        %3247 = vmatprep.subr.mxu0 0.0
        %3248 = vmatpush1.msra.mxu0 0.0
        %3249 = vmatprep.subr.mxu0 0.0
        %3250 = vmatpush1.msra.mxu0 0.0
        %3251 = vmatprep.subr.mxu0 0.0
        %3252 = vmatpush1.msra.mxu0 0.0
        %3253 = vmatprep.subr.mxu0 0.0
        %3254 = vmatpush1.msra.mxu0 0.0
        %3255 = vmatprep.subr.mxu0 0.0
        %3256 = vmatpush1.msra.mxu0 0.0
        %3257 = vmatprep.subr.mxu0 0.0
        %3258 = vmatpush1.msra.mxu0 0.0
        %3259 = vmatprep.subr.mxu0 0.0
        %3260 = vmatpush1.msra.mxu0 0.0
        %3261 = vmatprep.subr.mxu0 0.0
        %3262 = vmatpush1.msra.mxu0 0.0
        %3263 = vmatprep.subr.mxu0 0.0
        %3264 = vmatpush1.msra.mxu0 0.0
        %3265 = vmatprep.mubr.f32.mxu0 0.0
        %v3266 = vand.u32 %v3045, 4294901760
        %v3267 = vsub.f32 %v3045, %v3266
        %3268 = vmatmul.mubr.f32.gmra.mrb[0].mxu0 %v3267
        %v3269 = vpop.f32.mrb[0].mxu0
        %v3270 = vadd.f32 %v3196, %v3269
        %v3271 = vpop.f32.mrb[0].mxu0
        %3272 = vdwg.mxu0
        %3273 = vmatprep.subr.mxu0 0.0
        %v3274 = vand.u32 %v3042, 4294901760
        %3275 = vmatpush1.msra.mxu0 %v3274
        %3276 = vmatprep.subr.mxu0 0.0
        %3277 = vmatpush1.msra.mxu0 0.0
        %3278 = vmatprep.subr.mxu0 0.0
        %3279 = vmatpush1.msra.mxu0 0.0
        %3280 = vmatprep.subr.mxu0 0.0
        %3281 = vmatpush1.msra.mxu0 0.0
        %3282 = vmatprep.subr.mxu0 0.0
        %3283 = vmatpush1.msra.mxu0 0.0
        %3284 = vmatprep.subr.mxu0 0.0
        %3285 = vmatpush1.msra.mxu0 0.0
        %3286 = vmatprep.subr.mxu0 0.0
        %3287 = vmatpush1.msra.mxu0 0.0
        %3288 = vmatprep.subr.mxu0 0.0
        %3289 = vmatpush1.msra.mxu0 0.0
        %3290 = vmatprep.subr.mxu0 0.0
        %3291 = vmatpush1.msra.mxu0 0.0
        %3292 = vmatprep.subr.mxu0 0.0
        %3293 = vmatpush1.msra.mxu0 0.0
        %3294 = vmatprep.subr.mxu0 0.0
        %3295 = vmatpush1.msra.mxu0 0.0
        %3296 = vmatprep.subr.mxu0 0.0
        %3297 = vmatpush1.msra.mxu0 0.0
        %3298 = vmatprep.subr.mxu0 0.0
        %3299 = vmatpush1.msra.mxu0 0.0
        %3300 = vmatprep.subr.mxu0 0.0
        %3301 = vmatpush1.msra.mxu0 0.0
        %3302 = vmatprep.subr.mxu0 0.0
        %3303 = vmatpush1.msra.mxu0 0.0
        %3304 = vmatprep.subr.mxu0 0.0
        %3305 = vmatpush1.msra.mxu0 0.0
        %3306 = vmatprep.subr.mxu0 0.0
        %3307 = vmatpush1.msra.mxu0 0.0
        %3308 = vmatprep.subr.mxu0 0.0
        %3309 = vmatpush1.msra.mxu0 0.0
        %3310 = vmatprep.subr.mxu0 0.0
        %3311 = vmatpush1.msra.mxu0 0.0
        %3312 = vmatprep.subr.mxu0 0.0
        %3313 = vmatpush1.msra.mxu0 0.0
        %3314 = vmatprep.subr.mxu0 0.0
        %3315 = vmatpush1.msra.mxu0 0.0
        %3316 = vmatprep.subr.mxu0 0.0
        %3317 = vmatpush1.msra.mxu0 0.0
        %3318 = vmatprep.subr.mxu0 0.0
        %3319 = vmatpush1.msra.mxu0 0.0
        %3320 = vmatprep.subr.mxu0 0.0
        %3321 = vmatpush1.msra.mxu0 0.0
        %3322 = vmatprep.subr.mxu0 0.0
        %3323 = vmatpush1.msra.mxu0 0.0
        %3324 = vmatprep.subr.mxu0 0.0
        %3325 = vmatpush1.msra.mxu0 0.0
        %3326 = vmatprep.subr.mxu0 0.0
        %3327 = vmatpush1.msra.mxu0 0.0
        %3328 = vmatprep.subr.mxu0 0.0
        %3329 = vmatpush1.msra.mxu0 0.0
        %3330 = vmatprep.subr.mxu0 0.0
        %3331 = vmatpush1.msra.mxu0 0.0
        %3332 = vmatprep.subr.mxu0 0.0
        %3333 = vmatpush1.msra.mxu0 0.0
        %3334 = vmatprep.subr.mxu0 0.0
        %3335 = vmatpush1.msra.mxu0 0.0
        %3336 = vmatprep.subr.mxu0 0.0
        %3337 = vmatpush1.msra.mxu0 0.0
        %3338 = vmatprep.mubr.f32.mxu0 0.0
        %v3339 = vand.u32 %v3045, 4294901760
        %v3340 = vsub.f32 %v3045, %v3339
        %v3341 = vand.u32 %v3340, 4294901760
        %3342 = vmatmul.mubr.f32.gmra.mrb[0].mxu0 %v3341
        %v3343 = vpop.f32.mrb[0].mxu0
        %v3344 = vadd.f32 %v3270, %v3343
        %v3345 = vpop.f32.mrb[0].mxu0
        %3346 = vdwg.mxu0
        %3347 = vmatprep.subr.mxu0 0.0
        %v3348 = vand.u32 %v3042, 4294901760
        %v3349 = vsub.f32 %v3042, %v3348
        %v3350 = vand.u32 %v3349, 4294901760
        %3351 = vmatpush1.msra.mxu0 %v3350
        %3352 = vmatprep.subr.mxu0 0.0
        %3353 = vmatpush1.msra.mxu0 0.0
        %3354 = vmatprep.subr.mxu0 0.0
        %3355 = vmatpush1.msra.mxu0 0.0
        %3356 = vmatprep.subr.mxu0 0.0
        %3357 = vmatpush1.msra.mxu0 0.0
        %3358 = vmatprep.subr.mxu0 0.0
        %3359 = vmatpush1.msra.mxu0 0.0
        %3360 = vmatprep.subr.mxu0 0.0
        %3361 = vmatpush1.msra.mxu0 0.0
        %3362 = vmatprep.subr.mxu0 0.0
        %3363 = vmatpush1.msra.mxu0 0.0
        %3364 = vmatprep.subr.mxu0 0.0
        %3365 = vmatpush1.msra.mxu0 0.0
        %3366 = vmatprep.subr.mxu0 0.0
        %3367 = vmatpush1.msra.mxu0 0.0
        %3368 = vmatprep.subr.mxu0 0.0
        %3369 = vmatpush1.msra.mxu0 0.0
        %3370 = vmatprep.subr.mxu0 0.0
        %3371 = vmatpush1.msra.mxu0 0.0
        %3372 = vmatprep.subr.mxu0 0.0
        %3373 = vmatpush1.msra.mxu0 0.0
        %3374 = vmatprep.subr.mxu0 0.0
        %3375 = vmatpush1.msra.mxu0 0.0
        %3376 = vmatprep.subr.mxu0 0.0
        %3377 = vmatpush1.msra.mxu0 0.0
        %3378 = vmatprep.subr.mxu0 0.0
        %3379 = vmatpush1.msra.mxu0 0.0
        %3380 = vmatprep.subr.mxu0 0.0
        %3381 = vmatpush1.msra.mxu0 0.0
        %3382 = vmatprep.subr.mxu0 0.0
        %3383 = vmatpush1.msra.mxu0 0.0
        %3384 = vmatprep.subr.mxu0 0.0
        %3385 = vmatpush1.msra.mxu0 0.0
        %3386 = vmatprep.subr.mxu0 0.0
        %3387 = vmatpush1.msra.mxu0 0.0
        %3388 = vmatprep.subr.mxu0 0.0
        %3389 = vmatpush1.msra.mxu0 0.0
        %3390 = vmatprep.subr.mxu0 0.0
        %3391 = vmatpush1.msra.mxu0 0.0
        %3392 = vmatprep.subr.mxu0 0.0
        %3393 = vmatpush1.msra.mxu0 0.0
        %3394 = vmatprep.subr.mxu0 0.0
        %3395 = vmatpush1.msra.mxu0 0.0
        %3396 = vmatprep.subr.mxu0 0.0
        %3397 = vmatpush1.msra.mxu0 0.0
        %3398 = vmatprep.subr.mxu0 0.0
        %3399 = vmatpush1.msra.mxu0 0.0
        %3400 = vmatprep.subr.mxu0 0.0
        %3401 = vmatpush1.msra.mxu0 0.0
        %3402 = vmatprep.subr.mxu0 0.0
        %3403 = vmatpush1.msra.mxu0 0.0
        %3404 = vmatprep.subr.mxu0 0.0
        %3405 = vmatpush1.msra.mxu0 0.0
        %3406 = vmatprep.subr.mxu0 0.0
        %3407 = vmatpush1.msra.mxu0 0.0
        %3408 = vmatprep.subr.mxu0 0.0
        %3409 = vmatpush1.msra.mxu0 0.0
        %3410 = vmatprep.subr.mxu0 0.0
        %3411 = vmatpush1.msra.mxu0 0.0
        %3412 = vmatprep.subr.mxu0 0.0
        %3413 = vmatpush1.msra.mxu0 0.0
        %3414 = vmatprep.mubr.f32.mxu0 0.0
        %v3415 = vand.u32 %v3045, 4294901760
        %3416 = vmatmul.mubr.f32.gmra.mrb[0].mxu0 %v3415
        %v3417 = vpop.f32.mrb[0].mxu0
        %v3418 = vadd.f32 %v3344, %v3417
        %v3419 = vpop.f32.mrb[0].mxu0
        %3420 = vdwg.mxu0
        %3421 = vmatprep.subr.mxu0 0.0
        %v3422 = vand.u32 %v3042, 4294901760
        %3423 = vmatpush1.msra.mxu0 %v3422
        %3424 = vmatprep.subr.mxu0 0.0
        %3425 = vmatpush1.msra.mxu0 0.0
        %3426 = vmatprep.subr.mxu0 0.0
        %3427 = vmatpush1.msra.mxu0 0.0
        %3428 = vmatprep.subr.mxu0 0.0
        %3429 = vmatpush1.msra.mxu0 0.0
        %3430 = vmatprep.subr.mxu0 0.0
        %3431 = vmatpush1.msra.mxu0 0.0
        %3432 = vmatprep.subr.mxu0 0.0
        %3433 = vmatpush1.msra.mxu0 0.0
        %3434 = vmatprep.subr.mxu0 0.0
        %3435 = vmatpush1.msra.mxu0 0.0
        %3436 = vmatprep.subr.mxu0 0.0
        %3437 = vmatpush1.msra.mxu0 0.0
        %3438 = vmatprep.subr.mxu0 0.0
        %3439 = vmatpush1.msra.mxu0 0.0
        %3440 = vmatprep.subr.mxu0 0.0
        %3441 = vmatpush1.msra.mxu0 0.0
        %3442 = vmatprep.subr.mxu0 0.0
        %3443 = vmatpush1.msra.mxu0 0.0
        %3444 = vmatprep.subr.mxu0 0.0
        %3445 = vmatpush1.msra.mxu0 0.0
        %3446 = vmatprep.subr.mxu0 0.0
        %3447 = vmatpush1.msra.mxu0 0.0
        %3448 = vmatprep.subr.mxu0 0.0
        %3449 = vmatpush1.msra.mxu0 0.0
        %3450 = vmatprep.subr.mxu0 0.0
        %3451 = vmatpush1.msra.mxu0 0.0
        %3452 = vmatprep.subr.mxu0 0.0
        %3453 = vmatpush1.msra.mxu0 0.0
        %3454 = vmatprep.subr.mxu0 0.0
        %3455 = vmatpush1.msra.mxu0 0.0
        %3456 = vmatprep.subr.mxu0 0.0
        %3457 = vmatpush1.msra.mxu0 0.0
        %3458 = vmatprep.subr.mxu0 0.0
        %3459 = vmatpush1.msra.mxu0 0.0
        %3460 = vmatprep.subr.mxu0 0.0
        %3461 = vmatpush1.msra.mxu0 0.0
        %3462 = vmatprep.subr.mxu0 0.0
        %3463 = vmatpush1.msra.mxu0 0.0
        %3464 = vmatprep.subr.mxu0 0.0
        %3465 = vmatpush1.msra.mxu0 0.0
        %3466 = vmatprep.subr.mxu0 0.0
        %3467 = vmatpush1.msra.mxu0 0.0
        %3468 = vmatprep.subr.mxu0 0.0
        %3469 = vmatpush1.msra.mxu0 0.0
        %3470 = vmatprep.subr.mxu0 0.0
        %3471 = vmatpush1.msra.mxu0 0.0
        %3472 = vmatprep.subr.mxu0 0.0
        %3473 = vmatpush1.msra.mxu0 0.0
        %3474 = vmatprep.subr.mxu0 0.0
        %3475 = vmatpush1.msra.mxu0 0.0
        %3476 = vmatprep.subr.mxu0 0.0
        %3477 = vmatpush1.msra.mxu0 0.0
        %3478 = vmatprep.subr.mxu0 0.0
        %3479 = vmatpush1.msra.mxu0 0.0
        %3480 = vmatprep.subr.mxu0 0.0
        %3481 = vmatpush1.msra.mxu0 0.0
        %3482 = vmatprep.subr.mxu0 0.0
        %3483 = vmatpush1.msra.mxu0 0.0
        %3484 = vmatprep.subr.mxu0 0.0
        %3485 = vmatpush1.msra.mxu0 0.0
        %3486 = vmatprep.mubr.f32.mxu0 0.0
        %v3487 = vand.u32 %v3045, 4294901760
        %3488 = vmatmul.mubr.f32.gmra.mrb[0].mxu0 %v3487
        %v3489 = vpop.f32.mrb[0].mxu0
        %v3490 = vadd.f32 %v3418, %v3489
        %v3491 = vpop.f32.mrb[0].mxu0
        %3492 = vdwg.mxu0
        %3493 = vrot.lane.b32.xlu0 %v730, 104
        %v3494 = vpop.permute.xlu0 %3493
        %3495 = vrot.lane.b32.xlu0 %v730, 72
        %v3496 = vpop.permute.xlu0 %3495
        %v3497 = vsel %vm736, %v3494, 0
        %v3499 = vsel %vm736, %v3496, 0
        %3501 = vmatprep.subr.mxu0 0.0
        %v3502 = vand.u32 %v3499, 4294901760
        %3503 = vmatpush1.xpose.msra.mxu0 %v3502
        %3504 = vmatprep.subr.mxu0 0.0
        %3505 = vmatpush1.xpose.msra.mxu0 0.0
        %3506 = vmatprep.subr.mxu0 0.0
        %3507 = vmatpush1.xpose.msra.mxu0 0.0
        %3508 = vmatprep.subr.mxu0 0.0
        %3509 = vmatpush1.xpose.msra.mxu0 0.0
        %3510 = vmatprep.subr.mxu0 0.0
        %3511 = vmatpush1.xpose.msra.mxu0 0.0
        %3512 = vmatprep.subr.mxu0 0.0
        %3513 = vmatpush1.xpose.msra.mxu0 0.0
        %3514 = vmatprep.subr.mxu0 0.0
        %3515 = vmatpush1.xpose.msra.mxu0 0.0
        %3516 = vmatprep.subr.mxu0 0.0
        %3517 = vmatpush1.xpose.msra.mxu0 0.0
        %3518 = vmatprep.subr.mxu0 0.0
        %3519 = vmatpush1.xpose.msra.mxu0 0.0
        %3520 = vmatprep.subr.mxu0 0.0
        %3521 = vmatpush1.xpose.msra.mxu0 0.0
        %3522 = vmatprep.subr.mxu0 0.0
        %3523 = vmatpush1.xpose.msra.mxu0 0.0
        %3524 = vmatprep.subr.mxu0 0.0
        %3525 = vmatpush1.xpose.msra.mxu0 0.0
        %3526 = vmatprep.subr.mxu0 0.0
        %3527 = vmatpush1.xpose.msra.mxu0 0.0
        %3528 = vmatprep.subr.mxu0 0.0
        %3529 = vmatpush1.xpose.msra.mxu0 0.0
        %3530 = vmatprep.subr.mxu0 0.0
        %3531 = vmatpush1.xpose.msra.mxu0 0.0
        %3532 = vmatprep.subr.mxu0 0.0
        %3533 = vmatpush1.xpose.msra.mxu0 0.0
        %3534 = vmatprep.subr.mxu0 0.0
        %3535 = vmatpush1.xpose.msra.mxu0 0.0
        %3536 = vmatprep.subr.mxu0 0.0
        %3537 = vmatpush1.xpose.msra.mxu0 0.0
        %3538 = vmatprep.subr.mxu0 0.0
        %3539 = vmatpush1.xpose.msra.mxu0 0.0
        %3540 = vmatprep.subr.mxu0 0.0
        %3541 = vmatpush1.xpose.msra.mxu0 0.0
        %3542 = vmatprep.subr.mxu0 0.0
        %3543 = vmatpush1.xpose.msra.mxu0 0.0
        %3544 = vmatprep.subr.mxu0 0.0
        %3545 = vmatpush1.xpose.msra.mxu0 0.0
        %3546 = vmatprep.subr.mxu0 0.0
        %3547 = vmatpush1.xpose.msra.mxu0 0.0
        %3548 = vmatprep.subr.mxu0 0.0
        %3549 = vmatpush1.xpose.msra.mxu0 0.0
        %3550 = vmatprep.subr.mxu0 0.0
        %3551 = vmatpush1.xpose.msra.mxu0 0.0
        %3552 = vmatprep.subr.mxu0 0.0
        %3553 = vmatpush1.xpose.msra.mxu0 0.0
        %3554 = vmatprep.subr.mxu0 0.0
        %3555 = vmatpush1.xpose.msra.mxu0 0.0
        %3556 = vmatprep.subr.mxu0 0.0
        %3557 = vmatpush1.xpose.msra.mxu0 0.0
        %3558 = vmatprep.subr.mxu0 0.0
        %3559 = vmatpush1.xpose.msra.mxu0 0.0
        %3560 = vmatprep.subr.mxu0 0.0
        %3561 = vmatpush1.xpose.msra.mxu0 0.0
        %3562 = vmatprep.subr.mxu0 0.0
        %3563 = vmatpush1.xpose.msra.mxu0 0.0
        %3564 = vmatprep.subr.mxu0 0.0
        %3565 = vmatpush1.xpose.msra.mxu0 0.0
        %3566 = vmatprep.mubr.f32.mxu0 0.0
        %v3567 = vand.u32 %v3497, 4294901760
        %v3568 = vsub.f32 %v3497, %v3567
        %v3569 = vand.u32 %v3568, 4294901760
        %v3570 = vsub.f32 %v3568, %v3569
        %v3571 = vand.u32 %v3570, 4294901760
        %3572 = vmatmul.mubr.f32.gmra.mrb[0].mxu0 %v3571
        %v3573 = vpop.f32.mrb[0].mxu0
        %v3574 = vadd.f32 %v239, %v3573
        %v3575 = vpop.f32.mrb[0].mxu0
        %3576 = vdwg.mxu0
        %3577 = vmatprep.subr.mxu0 0.0
        %v3578 = vand.u32 %v3499, 4294901760
        %v3579 = vsub.f32 %v3499, %v3578
        %v3580 = vand.u32 %v3579, 4294901760
        %v3581 = vsub.f32 %v3579, %v3580
        %v3582 = vand.u32 %v3581, 4294901760
        %3583 = vmatpush1.xpose.msra.mxu0 %v3582
        %3584 = vmatprep.subr.mxu0 0.0
        %3585 = vmatpush1.xpose.msra.mxu0 0.0
        %3586 = vmatprep.subr.mxu0 0.0
        %3587 = vmatpush1.xpose.msra.mxu0 0.0
        %3588 = vmatprep.subr.mxu0 0.0
        %3589 = vmatpush1.xpose.msra.mxu0 0.0
        %3590 = vmatprep.subr.mxu0 0.0
        %3591 = vmatpush1.xpose.msra.mxu0 0.0
        %3592 = vmatprep.subr.mxu0 0.0
        %3593 = vmatpush1.xpose.msra.mxu0 0.0
        %3594 = vmatprep.subr.mxu0 0.0
        %3595 = vmatpush1.xpose.msra.mxu0 0.0
        %3596 = vmatprep.subr.mxu0 0.0
        %3597 = vmatpush1.xpose.msra.mxu0 0.0
        %3598 = vmatprep.subr.mxu0 0.0
        %3599 = vmatpush1.xpose.msra.mxu0 0.0
        %3600 = vmatprep.subr.mxu0 0.0
        %3601 = vmatpush1.xpose.msra.mxu0 0.0
        %3602 = vmatprep.subr.mxu0 0.0
        %3603 = vmatpush1.xpose.msra.mxu0 0.0
        %3604 = vmatprep.subr.mxu0 0.0
        %3605 = vmatpush1.xpose.msra.mxu0 0.0
        %3606 = vmatprep.subr.mxu0 0.0
        %3607 = vmatpush1.xpose.msra.mxu0 0.0
        %3608 = vmatprep.subr.mxu0 0.0
        %3609 = vmatpush1.xpose.msra.mxu0 0.0
        %3610 = vmatprep.subr.mxu0 0.0
        %3611 = vmatpush1.xpose.msra.mxu0 0.0
        %3612 = vmatprep.subr.mxu0 0.0
        %3613 = vmatpush1.xpose.msra.mxu0 0.0
        %3614 = vmatprep.subr.mxu0 0.0
        %3615 = vmatpush1.xpose.msra.mxu0 0.0
        %3616 = vmatprep.subr.mxu0 0.0
        %3617 = vmatpush1.xpose.msra.mxu0 0.0
        %3618 = vmatprep.subr.mxu0 0.0
        %3619 = vmatpush1.xpose.msra.mxu0 0.0
        %3620 = vmatprep.subr.mxu0 0.0
        %3621 = vmatpush1.xpose.msra.mxu0 0.0
        %3622 = vmatprep.subr.mxu0 0.0
        %3623 = vmatpush1.xpose.msra.mxu0 0.0
        %3624 = vmatprep.subr.mxu0 0.0
        %3625 = vmatpush1.xpose.msra.mxu0 0.0
        %3626 = vmatprep.subr.mxu0 0.0
        %3627 = vmatpush1.xpose.msra.mxu0 0.0
        %3628 = vmatprep.subr.mxu0 0.0
        %3629 = vmatpush1.xpose.msra.mxu0 0.0
        %3630 = vmatprep.subr.mxu0 0.0
        %3631 = vmatpush1.xpose.msra.mxu0 0.0
        %3632 = vmatprep.subr.mxu0 0.0
        %3633 = vmatpush1.xpose.msra.mxu0 0.0
        %3634 = vmatprep.subr.mxu0 0.0
        %3635 = vmatpush1.xpose.msra.mxu0 0.0
        %3636 = vmatprep.subr.mxu0 0.0
        %3637 = vmatpush1.xpose.msra.mxu0 0.0
        %3638 = vmatprep.subr.mxu0 0.0
        %3639 = vmatpush1.xpose.msra.mxu0 0.0
        %3640 = vmatprep.subr.mxu0 0.0
        %3641 = vmatpush1.xpose.msra.mxu0 0.0
        %3642 = vmatprep.subr.mxu0 0.0
        %3643 = vmatpush1.xpose.msra.mxu0 0.0
        %3644 = vmatprep.subr.mxu0 0.0
        %3645 = vmatpush1.xpose.msra.mxu0 0.0
        %3646 = vmatprep.mubr.f32.mxu0 0.0
        %v3647 = vand.u32 %v3497, 4294901760
        %3648 = vmatmul.mubr.f32.gmra.mrb[0].mxu0 %v3647
        %v3649 = vpop.f32.mrb[0].mxu0
        %v3650 = vadd.f32 %v3574, %v3649
        %v3651 = vpop.f32.mrb[0].mxu0
        %3652 = vdwg.mxu0
        %3653 = vmatprep.subr.mxu0 0.0
        %v3654 = vand.u32 %v3499, 4294901760
        %v3655 = vsub.f32 %v3499, %v3654
        %3656 = vmatpush1.xpose.msra.mxu0 %v3655
        %3657 = vmatprep.subr.mxu0 0.0
        %3658 = vmatpush1.xpose.msra.mxu0 0.0
        %3659 = vmatprep.subr.mxu0 0.0
        %3660 = vmatpush1.xpose.msra.mxu0 0.0
        %3661 = vmatprep.subr.mxu0 0.0
        %3662 = vmatpush1.xpose.msra.mxu0 0.0
        %3663 = vmatprep.subr.mxu0 0.0
        %3664 = vmatpush1.xpose.msra.mxu0 0.0
        %3665 = vmatprep.subr.mxu0 0.0
        %3666 = vmatpush1.xpose.msra.mxu0 0.0
        %3667 = vmatprep.subr.mxu0 0.0
        %3668 = vmatpush1.xpose.msra.mxu0 0.0
        %3669 = vmatprep.subr.mxu0 0.0
        %3670 = vmatpush1.xpose.msra.mxu0 0.0
        %3671 = vmatprep.subr.mxu0 0.0
        %3672 = vmatpush1.xpose.msra.mxu0 0.0
        %3673 = vmatprep.subr.mxu0 0.0
        %3674 = vmatpush1.xpose.msra.mxu0 0.0
        %3675 = vmatprep.subr.mxu0 0.0
        %3676 = vmatpush1.xpose.msra.mxu0 0.0
        %3677 = vmatprep.subr.mxu0 0.0
        %3678 = vmatpush1.xpose.msra.mxu0 0.0
        %3679 = vmatprep.subr.mxu0 0.0
        %3680 = vmatpush1.xpose.msra.mxu0 0.0
        %3681 = vmatprep.subr.mxu0 0.0
        %3682 = vmatpush1.xpose.msra.mxu0 0.0
        %3683 = vmatprep.subr.mxu0 0.0
        %3684 = vmatpush1.xpose.msra.mxu0 0.0
        %3685 = vmatprep.subr.mxu0 0.0
        %3686 = vmatpush1.xpose.msra.mxu0 0.0
        %3687 = vmatprep.subr.mxu0 0.0
        %3688 = vmatpush1.xpose.msra.mxu0 0.0
        %3689 = vmatprep.subr.mxu0 0.0
        %3690 = vmatpush1.xpose.msra.mxu0 0.0
        %3691 = vmatprep.subr.mxu0 0.0
        %3692 = vmatpush1.xpose.msra.mxu0 0.0
        %3693 = vmatprep.subr.mxu0 0.0
        %3694 = vmatpush1.xpose.msra.mxu0 0.0
        %3695 = vmatprep.subr.mxu0 0.0
        %3696 = vmatpush1.xpose.msra.mxu0 0.0
        %3697 = vmatprep.subr.mxu0 0.0
        %3698 = vmatpush1.xpose.msra.mxu0 0.0
        %3699 = vmatprep.subr.mxu0 0.0
        %3700 = vmatpush1.xpose.msra.mxu0 0.0
        %3701 = vmatprep.subr.mxu0 0.0
        %3702 = vmatpush1.xpose.msra.mxu0 0.0
        %3703 = vmatprep.subr.mxu0 0.0
        %3704 = vmatpush1.xpose.msra.mxu0 0.0
        %3705 = vmatprep.subr.mxu0 0.0
        %3706 = vmatpush1.xpose.msra.mxu0 0.0
        %3707 = vmatprep.subr.mxu0 0.0
        %3708 = vmatpush1.xpose.msra.mxu0 0.0
        %3709 = vmatprep.subr.mxu0 0.0
        %3710 = vmatpush1.xpose.msra.mxu0 0.0
        %3711 = vmatprep.subr.mxu0 0.0
        %3712 = vmatpush1.xpose.msra.mxu0 0.0
        %3713 = vmatprep.subr.mxu0 0.0
        %3714 = vmatpush1.xpose.msra.mxu0 0.0
        %3715 = vmatprep.subr.mxu0 0.0
        %3716 = vmatpush1.xpose.msra.mxu0 0.0
        %3717 = vmatprep.subr.mxu0 0.0
        %3718 = vmatpush1.xpose.msra.mxu0 0.0
        %3719 = vmatprep.mubr.f32.mxu0 0.0
        %v3720 = vand.u32 %v3497, 4294901760
        %v3721 = vsub.f32 %v3497, %v3720
        %3722 = vmatmul.mubr.f32.gmra.mrb[0].mxu0 %v3721
        %v3723 = vpop.f32.mrb[0].mxu0
        %v3724 = vadd.f32 %v3650, %v3723
        %v3725 = vpop.f32.mrb[0].mxu0
        %3726 = vdwg.mxu0
        %3727 = vmatprep.subr.mxu0 0.0
        %v3728 = vand.u32 %v3499, 4294901760
        %3729 = vmatpush1.xpose.msra.mxu0 %v3728
        %3730 = vmatprep.subr.mxu0 0.0
        %3731 = vmatpush1.xpose.msra.mxu0 0.0
        %3732 = vmatprep.subr.mxu0 0.0
        %3733 = vmatpush1.xpose.msra.mxu0 0.0
        %3734 = vmatprep.subr.mxu0 0.0
        %3735 = vmatpush1.xpose.msra.mxu0 0.0
        %3736 = vmatprep.subr.mxu0 0.0
        %3737 = vmatpush1.xpose.msra.mxu0 0.0
        %3738 = vmatprep.subr.mxu0 0.0
        %3739 = vmatpush1.xpose.msra.mxu0 0.0
        %3740 = vmatprep.subr.mxu0 0.0
        %3741 = vmatpush1.xpose.msra.mxu0 0.0
        %3742 = vmatprep.subr.mxu0 0.0
        %3743 = vmatpush1.xpose.msra.mxu0 0.0
        %3744 = vmatprep.subr.mxu0 0.0
        %3745 = vmatpush1.xpose.msra.mxu0 0.0
        %3746 = vmatprep.subr.mxu0 0.0
        %3747 = vmatpush1.xpose.msra.mxu0 0.0
        %3748 = vmatprep.subr.mxu0 0.0
        %3749 = vmatpush1.xpose.msra.mxu0 0.0
        %3750 = vmatprep.subr.mxu0 0.0
        %3751 = vmatpush1.xpose.msra.mxu0 0.0
        %3752 = vmatprep.subr.mxu0 0.0
        %3753 = vmatpush1.xpose.msra.mxu0 0.0
        %3754 = vmatprep.subr.mxu0 0.0
        %3755 = vmatpush1.xpose.msra.mxu0 0.0
        %3756 = vmatprep.subr.mxu0 0.0
        %3757 = vmatpush1.xpose.msra.mxu0 0.0
        %3758 = vmatprep.subr.mxu0 0.0
        %3759 = vmatpush1.xpose.msra.mxu0 0.0
        %3760 = vmatprep.subr.mxu0 0.0
        %3761 = vmatpush1.xpose.msra.mxu0 0.0
        %3762 = vmatprep.subr.mxu0 0.0
        %3763 = vmatpush1.xpose.msra.mxu0 0.0
        %3764 = vmatprep.subr.mxu0 0.0
        %3765 = vmatpush1.xpose.msra.mxu0 0.0
        %3766 = vmatprep.subr.mxu0 0.0
        %3767 = vmatpush1.xpose.msra.mxu0 0.0
        %3768 = vmatprep.subr.mxu0 0.0
        %3769 = vmatpush1.xpose.msra.mxu0 0.0
        %3770 = vmatprep.subr.mxu0 0.0
        %3771 = vmatpush1.xpose.msra.mxu0 0.0
        %3772 = vmatprep.subr.mxu0 0.0
        %3773 = vmatpush1.xpose.msra.mxu0 0.0
        %3774 = vmatprep.subr.mxu0 0.0
        %3775 = vmatpush1.xpose.msra.mxu0 0.0
        %3776 = vmatprep.subr.mxu0 0.0
        %3777 = vmatpush1.xpose.msra.mxu0 0.0
        %3778 = vmatprep.subr.mxu0 0.0
        %3779 = vmatpush1.xpose.msra.mxu0 0.0
        %3780 = vmatprep.subr.mxu0 0.0
        %3781 = vmatpush1.xpose.msra.mxu0 0.0
        %3782 = vmatprep.subr.mxu0 0.0
        %3783 = vmatpush1.xpose.msra.mxu0 0.0
        %3784 = vmatprep.subr.mxu0 0.0
        %3785 = vmatpush1.xpose.msra.mxu0 0.0
        %3786 = vmatprep.subr.mxu0 0.0
        %3787 = vmatpush1.xpose.msra.mxu0 0.0
        %3788 = vmatprep.subr.mxu0 0.0
        %3789 = vmatpush1.xpose.msra.mxu0 0.0
        %3790 = vmatprep.subr.mxu0 0.0
        %3791 = vmatpush1.xpose.msra.mxu0 0.0
        %3792 = vmatprep.mubr.f32.mxu0 0.0
        %v3793 = vand.u32 %v3497, 4294901760
        %v3794 = vsub.f32 %v3497, %v3793
        %v3795 = vand.u32 %v3794, 4294901760
        %3796 = vmatmul.mubr.f32.gmra.mrb[0].mxu0 %v3795
        %v3797 = vpop.f32.mrb[0].mxu0
        %v3798 = vadd.f32 %v3724, %v3797
        %v3799 = vpop.f32.mrb[0].mxu0
        %3800 = vdwg.mxu0
        %3801 = vmatprep.subr.mxu0 0.0
        %v3802 = vand.u32 %v3499, 4294901760
        %v3803 = vsub.f32 %v3499, %v3802
        %v3804 = vand.u32 %v3803, 4294901760
        %3805 = vmatpush1.xpose.msra.mxu0 %v3804
        %3806 = vmatprep.subr.mxu0 0.0
        %3807 = vmatpush1.xpose.msra.mxu0 0.0
        %3808 = vmatprep.subr.mxu0 0.0
        %3809 = vmatpush1.xpose.msra.mxu0 0.0
        %3810 = vmatprep.subr.mxu0 0.0
        %3811 = vmatpush1.xpose.msra.mxu0 0.0
        %3812 = vmatprep.subr.mxu0 0.0
        %3813 = vmatpush1.xpose.msra.mxu0 0.0
        %3814 = vmatprep.subr.mxu0 0.0
        %3815 = vmatpush1.xpose.msra.mxu0 0.0
        %3816 = vmatprep.subr.mxu0 0.0
        %3817 = vmatpush1.xpose.msra.mxu0 0.0
        %3818 = vmatprep.subr.mxu0 0.0
        %3819 = vmatpush1.xpose.msra.mxu0 0.0
        %3820 = vmatprep.subr.mxu0 0.0
        %3821 = vmatpush1.xpose.msra.mxu0 0.0
        %3822 = vmatprep.subr.mxu0 0.0
        %3823 = vmatpush1.xpose.msra.mxu0 0.0
        %3824 = vmatprep.subr.mxu0 0.0
        %3825 = vmatpush1.xpose.msra.mxu0 0.0
        %3826 = vmatprep.subr.mxu0 0.0
        %3827 = vmatpush1.xpose.msra.mxu0 0.0
        %3828 = vmatprep.subr.mxu0 0.0
        %3829 = vmatpush1.xpose.msra.mxu0 0.0
        %3830 = vmatprep.subr.mxu0 0.0
        %3831 = vmatpush1.xpose.msra.mxu0 0.0
        %3832 = vmatprep.subr.mxu0 0.0
        %3833 = vmatpush1.xpose.msra.mxu0 0.0
        %3834 = vmatprep.subr.mxu0 0.0
        %3835 = vmatpush1.xpose.msra.mxu0 0.0
        %3836 = vmatprep.subr.mxu0 0.0
        %3837 = vmatpush1.xpose.msra.mxu0 0.0
        %3838 = vmatprep.subr.mxu0 0.0
        %3839 = vmatpush1.xpose.msra.mxu0 0.0
        %3840 = vmatprep.subr.mxu0 0.0
        %3841 = vmatpush1.xpose.msra.mxu0 0.0
        %3842 = vmatprep.subr.mxu0 0.0
        %3843 = vmatpush1.xpose.msra.mxu0 0.0
        %3844 = vmatprep.subr.mxu0 0.0
        %3845 = vmatpush1.xpose.msra.mxu0 0.0
        %3846 = vmatprep.subr.mxu0 0.0
        %3847 = vmatpush1.xpose.msra.mxu0 0.0
        %3848 = vmatprep.subr.mxu0 0.0
        %3849 = vmatpush1.xpose.msra.mxu0 0.0
        %3850 = vmatprep.subr.mxu0 0.0
        %3851 = vmatpush1.xpose.msra.mxu0 0.0
        %3852 = vmatprep.subr.mxu0 0.0
        %3853 = vmatpush1.xpose.msra.mxu0 0.0
        %3854 = vmatprep.subr.mxu0 0.0
        %3855 = vmatpush1.xpose.msra.mxu0 0.0
        %3856 = vmatprep.subr.mxu0 0.0
        %3857 = vmatpush1.xpose.msra.mxu0 0.0
        %3858 = vmatprep.subr.mxu0 0.0
        %3859 = vmatpush1.xpose.msra.mxu0 0.0
        %3860 = vmatprep.subr.mxu0 0.0
        %3861 = vmatpush1.xpose.msra.mxu0 0.0
        %3862 = vmatprep.subr.mxu0 0.0
        %3863 = vmatpush1.xpose.msra.mxu0 0.0
        %3864 = vmatprep.subr.mxu0 0.0
        %3865 = vmatpush1.xpose.msra.mxu0 0.0
        %3866 = vmatprep.subr.mxu0 0.0
        %3867 = vmatpush1.xpose.msra.mxu0 0.0
        %3868 = vmatprep.mubr.f32.mxu0 0.0
        %v3869 = vand.u32 %v3497, 4294901760
        %3870 = vmatmul.mubr.f32.gmra.mrb[0].mxu0 %v3869
        %v3871 = vpop.f32.mrb[0].mxu0
        %v3872 = vadd.f32 %v3798, %v3871
        %v3873 = vpop.f32.mrb[0].mxu0
        %3874 = vdwg.mxu0
        %3875 = vmatprep.subr.mxu0 0.0
        %v3876 = vand.u32 %v3499, 4294901760
        %3877 = vmatpush1.xpose.msra.mxu0 %v3876
        %3878 = vmatprep.subr.mxu0 0.0
        %3879 = vmatpush1.xpose.msra.mxu0 0.0
        %3880 = vmatprep.subr.mxu0 0.0
        %3881 = vmatpush1.xpose.msra.mxu0 0.0
        %3882 = vmatprep.subr.mxu0 0.0
        %3883 = vmatpush1.xpose.msra.mxu0 0.0
        %3884 = vmatprep.subr.mxu0 0.0
        %3885 = vmatpush1.xpose.msra.mxu0 0.0
        %3886 = vmatprep.subr.mxu0 0.0
        %3887 = vmatpush1.xpose.msra.mxu0 0.0
        %3888 = vmatprep.subr.mxu0 0.0
        %3889 = vmatpush1.xpose.msra.mxu0 0.0
        %3890 = vmatprep.subr.mxu0 0.0
        %3891 = vmatpush1.xpose.msra.mxu0 0.0
        %3892 = vmatprep.subr.mxu0 0.0
        %3893 = vmatpush1.xpose.msra.mxu0 0.0
        %3894 = vmatprep.subr.mxu0 0.0
        %3895 = vmatpush1.xpose.msra.mxu0 0.0
        %3896 = vmatprep.subr.mxu0 0.0
        %3897 = vmatpush1.xpose.msra.mxu0 0.0
        %3898 = vmatprep.subr.mxu0 0.0
        %3899 = vmatpush1.xpose.msra.mxu0 0.0
        %3900 = vmatprep.subr.mxu0 0.0
        %3901 = vmatpush1.xpose.msra.mxu0 0.0
        %3902 = vmatprep.subr.mxu0 0.0
        %3903 = vmatpush1.xpose.msra.mxu0 0.0
        %3904 = vmatprep.subr.mxu0 0.0
        %3905 = vmatpush1.xpose.msra.mxu0 0.0
        %3906 = vmatprep.subr.mxu0 0.0
        %3907 = vmatpush1.xpose.msra.mxu0 0.0
        %3908 = vmatprep.subr.mxu0 0.0
        %3909 = vmatpush1.xpose.msra.mxu0 0.0
        %3910 = vmatprep.subr.mxu0 0.0
        %3911 = vmatpush1.xpose.msra.mxu0 0.0
        %3912 = vmatprep.subr.mxu0 0.0
        %3913 = vmatpush1.xpose.msra.mxu0 0.0
        %3914 = vmatprep.subr.mxu0 0.0
        %3915 = vmatpush1.xpose.msra.mxu0 0.0
        %3916 = vmatprep.subr.mxu0 0.0
        %3917 = vmatpush1.xpose.msra.mxu0 0.0
        %3918 = vmatprep.subr.mxu0 0.0
        %3919 = vmatpush1.xpose.msra.mxu0 0.0
        %3920 = vmatprep.subr.mxu0 0.0
        %3921 = vmatpush1.xpose.msra.mxu0 0.0
        %3922 = vmatprep.subr.mxu0 0.0
        %3923 = vmatpush1.xpose.msra.mxu0 0.0
        %3924 = vmatprep.subr.mxu0 0.0
        %3925 = vmatpush1.xpose.msra.mxu0 0.0
        %3926 = vmatprep.subr.mxu0 0.0
        %3927 = vmatpush1.xpose.msra.mxu0 0.0
        %3928 = vmatprep.subr.mxu0 0.0
        %3929 = vmatpush1.xpose.msra.mxu0 0.0
        %3930 = vmatprep.subr.mxu0 0.0
        %3931 = vmatpush1.xpose.msra.mxu0 0.0
        %3932 = vmatprep.subr.mxu0 0.0
        %3933 = vmatpush1.xpose.msra.mxu0 0.0
        %3934 = vmatprep.subr.mxu0 0.0
        %3935 = vmatpush1.xpose.msra.mxu0 0.0
        %3936 = vmatprep.subr.mxu0 0.0
        %3937 = vmatpush1.xpose.msra.mxu0 0.0
        %3938 = vmatprep.subr.mxu0 0.0
        %3939 = vmatpush1.xpose.msra.mxu0 0.0
        %3940 = vmatprep.mubr.f32.mxu0 0.0
        %v3941 = vand.u32 %v3497, 4294901760
        %3942 = vmatmul.mubr.f32.gmra.mrb[0].mxu0 %v3941
        %v3943 = vpop.f32.mrb[0].mxu0
        %v3944 = vadd.f32 %v3872, %v3943
        %v3945 = vpop.f32.mrb[0].mxu0
        %3946 = vdwg.mxu0
        %v3947 = vadd.f32 %v3944, %v1191
        %v3948 = vsel %vm736, %v3947, -inf
        %3949 = vmax.xlane.f32.xlu0 %v3948
        %v3950 = vpop.xlane.xlu0 %3949
        %v3951 = vsub.f32 %v3947, %v3950
        %v3952 = vmul.f32 %v3951, 1.442695
        %v3953 = vpow.pop %v3952
        %v3954 = vsel %vm736, %v3953, 0.0
        %3955 = vadd.xlane.f32.xlu0 %v3954
        %v3956 = vpop.xlane.xlu0 %3955
        %v3957 = vrcp.pop %v3956
        %v3958 = vmul.f32 %v3953, %v3957
        %3959 = vrot.lane.b32.xlu0 %v730, 40
        %v3960 = vpop.permute.xlu0 %3959
        %v3963 = vsel %vm736, %v3958, 0
        %3965 = vmatprep.subr.mxu0 0.0
        %v3966 = vand.u32 %v3960, 4294901760
        %3967 = vmatpush1.msra.mxu0 %v3966
        %3968 = vmatprep.subr.mxu0 0.0
        %3969 = vmatpush1.msra.mxu0 0.0
        %3970 = vmatprep.subr.mxu0 0.0
        %3971 = vmatpush1.msra.mxu0 0.0
        %3972 = vmatprep.subr.mxu0 0.0
        %3973 = vmatpush1.msra.mxu0 0.0
        %3974 = vmatprep.subr.mxu0 0.0
        %3975 = vmatpush1.msra.mxu0 0.0
        %3976 = vmatprep.subr.mxu0 0.0
        %3977 = vmatpush1.msra.mxu0 0.0
        %3978 = vmatprep.subr.mxu0 0.0
        %3979 = vmatpush1.msra.mxu0 0.0
        %3980 = vmatprep.subr.mxu0 0.0
        %3981 = vmatpush1.msra.mxu0 0.0
        %3982 = vmatprep.subr.mxu0 0.0
        %3983 = vmatpush1.msra.mxu0 0.0
        %3984 = vmatprep.subr.mxu0 0.0
        %3985 = vmatpush1.msra.mxu0 0.0
        %3986 = vmatprep.subr.mxu0 0.0
        %3987 = vmatpush1.msra.mxu0 0.0
        %3988 = vmatprep.subr.mxu0 0.0
        %3989 = vmatpush1.msra.mxu0 0.0
        %3990 = vmatprep.subr.mxu0 0.0
        %3991 = vmatpush1.msra.mxu0 0.0
        %3992 = vmatprep.subr.mxu0 0.0
        %3993 = vmatpush1.msra.mxu0 0.0
        %3994 = vmatprep.subr.mxu0 0.0
        %3995 = vmatpush1.msra.mxu0 0.0
        %3996 = vmatprep.subr.mxu0 0.0
        %3997 = vmatpush1.msra.mxu0 0.0
        %3998 = vmatprep.subr.mxu0 0.0
        %3999 = vmatpush1.msra.mxu0 0.0
        %4000 = vmatprep.subr.mxu0 0.0
        %4001 = vmatpush1.msra.mxu0 0.0
        %4002 = vmatprep.subr.mxu0 0.0
        %4003 = vmatpush1.msra.mxu0 0.0
        %4004 = vmatprep.subr.mxu0 0.0
        %4005 = vmatpush1.msra.mxu0 0.0
        %4006 = vmatprep.subr.mxu0 0.0
        %4007 = vmatpush1.msra.mxu0 0.0
        %4008 = vmatprep.subr.mxu0 0.0
        %4009 = vmatpush1.msra.mxu0 0.0
        %4010 = vmatprep.subr.mxu0 0.0
        %4011 = vmatpush1.msra.mxu0 0.0
        %4012 = vmatprep.subr.mxu0 0.0
        %4013 = vmatpush1.msra.mxu0 0.0
        %4014 = vmatprep.subr.mxu0 0.0
        %4015 = vmatpush1.msra.mxu0 0.0
        %4016 = vmatprep.subr.mxu0 0.0
        %4017 = vmatpush1.msra.mxu0 0.0
        %4018 = vmatprep.subr.mxu0 0.0
        %4019 = vmatpush1.msra.mxu0 0.0
        %4020 = vmatprep.subr.mxu0 0.0
        %4021 = vmatpush1.msra.mxu0 0.0
        %4022 = vmatprep.subr.mxu0 0.0
        %4023 = vmatpush1.msra.mxu0 0.0
        %4024 = vmatprep.subr.mxu0 0.0
        %4025 = vmatpush1.msra.mxu0 0.0
        %4026 = vmatprep.subr.mxu0 0.0
        %4027 = vmatpush1.msra.mxu0 0.0
        %4028 = vmatprep.subr.mxu0 0.0
        %4029 = vmatpush1.msra.mxu0 0.0
        %4030 = vmatprep.mubr.f32.mxu0 0.0
        %v4031 = vand.u32 %v3963, 4294901760
        %v4032 = vsub.f32 %v3963, %v4031
        %v4033 = vand.u32 %v4032, 4294901760
        %v4034 = vsub.f32 %v4032, %v4033
        %v4035 = vand.u32 %v4034, 4294901760
        %4036 = vmatmul.mubr.f32.gmra.mrb[0].mxu0 %v4035
        %v4037 = vpop.f32.mrb[0].mxu0
        %v4038 = vadd.f32 0.0, %v4037
        %v4039 = vpop.f32.mrb[0].mxu0
        %4040 = vdwg.mxu0
        %4041 = vmatprep.subr.mxu0 0.0
        %v4042 = vand.u32 %v3960, 4294901760
        %v4043 = vsub.f32 %v3960, %v4042
        %v4044 = vand.u32 %v4043, 4294901760
        %v4045 = vsub.f32 %v4043, %v4044
        %v4046 = vand.u32 %v4045, 4294901760
        %4047 = vmatpush1.msra.mxu0 %v4046
        %4048 = vmatprep.subr.mxu0 0.0
        %4049 = vmatpush1.msra.mxu0 0.0
        %4050 = vmatprep.subr.mxu0 0.0
        %4051 = vmatpush1.msra.mxu0 0.0
        %4052 = vmatprep.subr.mxu0 0.0
        %4053 = vmatpush1.msra.mxu0 0.0
        %4054 = vmatprep.subr.mxu0 0.0
        %4055 = vmatpush1.msra.mxu0 0.0
        %4056 = vmatprep.subr.mxu0 0.0
        %4057 = vmatpush1.msra.mxu0 0.0
        %4058 = vmatprep.subr.mxu0 0.0
        %4059 = vmatpush1.msra.mxu0 0.0
        %4060 = vmatprep.subr.mxu0 0.0
        %4061 = vmatpush1.msra.mxu0 0.0
        %4062 = vmatprep.subr.mxu0 0.0
        %4063 = vmatpush1.msra.mxu0 0.0
        %4064 = vmatprep.subr.mxu0 0.0
        %4065 = vmatpush1.msra.mxu0 0.0
        %4066 = vmatprep.subr.mxu0 0.0
        %4067 = vmatpush1.msra.mxu0 0.0
        %4068 = vmatprep.subr.mxu0 0.0
        %4069 = vmatpush1.msra.mxu0 0.0
        %4070 = vmatprep.subr.mxu0 0.0
        %4071 = vmatpush1.msra.mxu0 0.0
        %4072 = vmatprep.subr.mxu0 0.0
        %4073 = vmatpush1.msra.mxu0 0.0
        %4074 = vmatprep.subr.mxu0 0.0
        %4075 = vmatpush1.msra.mxu0 0.0
        %4076 = vmatprep.subr.mxu0 0.0
        %4077 = vmatpush1.msra.mxu0 0.0
        %4078 = vmatprep.subr.mxu0 0.0
        %4079 = vmatpush1.msra.mxu0 0.0
        %4080 = vmatprep.subr.mxu0 0.0
        %4081 = vmatpush1.msra.mxu0 0.0
        %4082 = vmatprep.subr.mxu0 0.0
        %4083 = vmatpush1.msra.mxu0 0.0
        %4084 = vmatprep.subr.mxu0 0.0
        %4085 = vmatpush1.msra.mxu0 0.0
        %4086 = vmatprep.subr.mxu0 0.0
        %4087 = vmatpush1.msra.mxu0 0.0
        %4088 = vmatprep.subr.mxu0 0.0
        %4089 = vmatpush1.msra.mxu0 0.0
        %4090 = vmatprep.subr.mxu0 0.0
        %4091 = vmatpush1.msra.mxu0 0.0
        %4092 = vmatprep.subr.mxu0 0.0
        %4093 = vmatpush1.msra.mxu0 0.0
        %4094 = vmatprep.subr.mxu0 0.0
        %4095 = vmatpush1.msra.mxu0 0.0
        %4096 = vmatprep.subr.mxu0 0.0
        %4097 = vmatpush1.msra.mxu0 0.0
        %4098 = vmatprep.subr.mxu0 0.0
        %4099 = vmatpush1.msra.mxu0 0.0
        %4100 = vmatprep.subr.mxu0 0.0
        %4101 = vmatpush1.msra.mxu0 0.0
        %4102 = vmatprep.subr.mxu0 0.0
        %4103 = vmatpush1.msra.mxu0 0.0
        %4104 = vmatprep.subr.mxu0 0.0
        %4105 = vmatpush1.msra.mxu0 0.0
        %4106 = vmatprep.subr.mxu0 0.0
        %4107 = vmatpush1.msra.mxu0 0.0
        %4108 = vmatprep.subr.mxu0 0.0
        %4109 = vmatpush1.msra.mxu0 0.0
        %4110 = vmatprep.mubr.f32.mxu0 0.0
        %v4111 = vand.u32 %v3963, 4294901760
        %4112 = vmatmul.mubr.f32.gmra.mrb[0].mxu0 %v4111
        %v4113 = vpop.f32.mrb[0].mxu0
        %v4114 = vadd.f32 %v4038, %v4113
        %v4115 = vpop.f32.mrb[0].mxu0
        %4116 = vdwg.mxu0
        %4117 = vmatprep.subr.mxu0 0.0
        %v4118 = vand.u32 %v3960, 4294901760
        %v4119 = vsub.f32 %v3960, %v4118
        %4120 = vmatpush1.msra.mxu0 %v4119
        %4121 = vmatprep.subr.mxu0 0.0
        %4122 = vmatpush1.msra.mxu0 0.0
        %4123 = vmatprep.subr.mxu0 0.0
        %4124 = vmatpush1.msra.mxu0 0.0
        %4125 = vmatprep.subr.mxu0 0.0
        %4126 = vmatpush1.msra.mxu0 0.0
        %4127 = vmatprep.subr.mxu0 0.0
        %4128 = vmatpush1.msra.mxu0 0.0
        %4129 = vmatprep.subr.mxu0 0.0
        %4130 = vmatpush1.msra.mxu0 0.0
        %4131 = vmatprep.subr.mxu0 0.0
        %4132 = vmatpush1.msra.mxu0 0.0
        %4133 = vmatprep.subr.mxu0 0.0
        %4134 = vmatpush1.msra.mxu0 0.0
        %4135 = vmatprep.subr.mxu0 0.0
        %4136 = vmatpush1.msra.mxu0 0.0
        %4137 = vmatprep.subr.mxu0 0.0
        %4138 = vmatpush1.msra.mxu0 0.0
        %4139 = vmatprep.subr.mxu0 0.0
        %4140 = vmatpush1.msra.mxu0 0.0
        %4141 = vmatprep.subr.mxu0 0.0
        %4142 = vmatpush1.msra.mxu0 0.0
        %4143 = vmatprep.subr.mxu0 0.0
        %4144 = vmatpush1.msra.mxu0 0.0
        %4145 = vmatprep.subr.mxu0 0.0
        %4146 = vmatpush1.msra.mxu0 0.0
        %4147 = vmatprep.subr.mxu0 0.0
        %4148 = vmatpush1.msra.mxu0 0.0
        %4149 = vmatprep.subr.mxu0 0.0
        %4150 = vmatpush1.msra.mxu0 0.0
        %4151 = vmatprep.subr.mxu0 0.0
        %4152 = vmatpush1.msra.mxu0 0.0
        %4153 = vmatprep.subr.mxu0 0.0
        %4154 = vmatpush1.msra.mxu0 0.0
        %4155 = vmatprep.subr.mxu0 0.0
        %4156 = vmatpush1.msra.mxu0 0.0
        %4157 = vmatprep.subr.mxu0 0.0
        %4158 = vmatpush1.msra.mxu0 0.0
        %4159 = vmatprep.subr.mxu0 0.0
        %4160 = vmatpush1.msra.mxu0 0.0
        %4161 = vmatprep.subr.mxu0 0.0
        %4162 = vmatpush1.msra.mxu0 0.0
        %4163 = vmatprep.subr.mxu0 0.0
        %4164 = vmatpush1.msra.mxu0 0.0
        %4165 = vmatprep.subr.mxu0 0.0
        %4166 = vmatpush1.msra.mxu0 0.0
        %4167 = vmatprep.subr.mxu0 0.0
        %4168 = vmatpush1.msra.mxu0 0.0
        %4169 = vmatprep.subr.mxu0 0.0
        %4170 = vmatpush1.msra.mxu0 0.0
        %4171 = vmatprep.subr.mxu0 0.0
        %4172 = vmatpush1.msra.mxu0 0.0
        %4173 = vmatprep.subr.mxu0 0.0
        %4174 = vmatpush1.msra.mxu0 0.0
        %4175 = vmatprep.subr.mxu0 0.0
        %4176 = vmatpush1.msra.mxu0 0.0
        %4177 = vmatprep.subr.mxu0 0.0
        %4178 = vmatpush1.msra.mxu0 0.0
        %4179 = vmatprep.subr.mxu0 0.0
        %4180 = vmatpush1.msra.mxu0 0.0
        %4181 = vmatprep.subr.mxu0 0.0
        %4182 = vmatpush1.msra.mxu0 0.0
        %4183 = vmatprep.mubr.f32.mxu0 0.0
        %v4184 = vand.u32 %v3963, 4294901760
        %v4185 = vsub.f32 %v3963, %v4184
        %4186 = vmatmul.mubr.f32.gmra.mrb[0].mxu0 %v4185
        %v4187 = vpop.f32.mrb[0].mxu0
        %v4188 = vadd.f32 %v4114, %v4187
        %v4189 = vpop.f32.mrb[0].mxu0
        %4190 = vdwg.mxu0
        %4191 = vmatprep.subr.mxu0 0.0
        %v4192 = vand.u32 %v3960, 4294901760
        %4193 = vmatpush1.msra.mxu0 %v4192
        %4194 = vmatprep.subr.mxu0 0.0
        %4195 = vmatpush1.msra.mxu0 0.0
        %4196 = vmatprep.subr.mxu0 0.0
        %4197 = vmatpush1.msra.mxu0 0.0
        %4198 = vmatprep.subr.mxu0 0.0
        %4199 = vmatpush1.msra.mxu0 0.0
        %4200 = vmatprep.subr.mxu0 0.0
        %4201 = vmatpush1.msra.mxu0 0.0
        %4202 = vmatprep.subr.mxu0 0.0
        %4203 = vmatpush1.msra.mxu0 0.0
        %4204 = vmatprep.subr.mxu0 0.0
        %4205 = vmatpush1.msra.mxu0 0.0
        %4206 = vmatprep.subr.mxu0 0.0
        %4207 = vmatpush1.msra.mxu0 0.0
        %4208 = vmatprep.subr.mxu0 0.0
        %4209 = vmatpush1.msra.mxu0 0.0
        %4210 = vmatprep.subr.mxu0 0.0
        %4211 = vmatpush1.msra.mxu0 0.0
        %4212 = vmatprep.subr.mxu0 0.0
        %4213 = vmatpush1.msra.mxu0 0.0
        %4214 = vmatprep.subr.mxu0 0.0
        %4215 = vmatpush1.msra.mxu0 0.0
        %4216 = vmatprep.subr.mxu0 0.0
        %4217 = vmatpush1.msra.mxu0 0.0
        %4218 = vmatprep.subr.mxu0 0.0
        %4219 = vmatpush1.msra.mxu0 0.0
        %4220 = vmatprep.subr.mxu0 0.0
        %4221 = vmatpush1.msra.mxu0 0.0
        %4222 = vmatprep.subr.mxu0 0.0
        %4223 = vmatpush1.msra.mxu0 0.0
        %4224 = vmatprep.subr.mxu0 0.0
        %4225 = vmatpush1.msra.mxu0 0.0
        %4226 = vmatprep.subr.mxu0 0.0
        %4227 = vmatpush1.msra.mxu0 0.0
        %4228 = vmatprep.subr.mxu0 0.0
        %4229 = vmatpush1.msra.mxu0 0.0
        %4230 = vmatprep.subr.mxu0 0.0
        %4231 = vmatpush1.msra.mxu0 0.0
        %4232 = vmatprep.subr.mxu0 0.0
        %4233 = vmatpush1.msra.mxu0 0.0
        %4234 = vmatprep.subr.mxu0 0.0
        %4235 = vmatpush1.msra.mxu0 0.0
        %4236 = vmatprep.subr.mxu0 0.0
        %4237 = vmatpush1.msra.mxu0 0.0
        %4238 = vmatprep.subr.mxu0 0.0
        %4239 = vmatpush1.msra.mxu0 0.0
        %4240 = vmatprep.subr.mxu0 0.0
        %4241 = vmatpush1.msra.mxu0 0.0
        %4242 = vmatprep.subr.mxu0 0.0
        %4243 = vmatpush1.msra.mxu0 0.0
        %4244 = vmatprep.subr.mxu0 0.0
        %4245 = vmatpush1.msra.mxu0 0.0
        %4246 = vmatprep.subr.mxu0 0.0
        %4247 = vmatpush1.msra.mxu0 0.0
        %4248 = vmatprep.subr.mxu0 0.0
        %4249 = vmatpush1.msra.mxu0 0.0
        %4250 = vmatprep.subr.mxu0 0.0
        %4251 = vmatpush1.msra.mxu0 0.0
        %4252 = vmatprep.subr.mxu0 0.0
        %4253 = vmatpush1.msra.mxu0 0.0
        %4254 = vmatprep.subr.mxu0 0.0
        %4255 = vmatpush1.msra.mxu0 0.0
        %4256 = vmatprep.mubr.f32.mxu0 0.0
        %v4257 = vand.u32 %v3963, 4294901760
        %v4258 = vsub.f32 %v3963, %v4257
        %v4259 = vand.u32 %v4258, 4294901760
        %4260 = vmatmul.mubr.f32.gmra.mrb[0].mxu0 %v4259
        %v4261 = vpop.f32.mrb[0].mxu0
        %v4262 = vadd.f32 %v4188, %v4261
        %v4263 = vpop.f32.mrb[0].mxu0
        %4264 = vdwg.mxu0
        %4265 = vmatprep.subr.mxu0 0.0
        %v4266 = vand.u32 %v3960, 4294901760
        %v4267 = vsub.f32 %v3960, %v4266
        %v4268 = vand.u32 %v4267, 4294901760
        %4269 = vmatpush1.msra.mxu0 %v4268
        %4270 = vmatprep.subr.mxu0 0.0
        %4271 = vmatpush1.msra.mxu0 0.0
        %4272 = vmatprep.subr.mxu0 0.0
        %4273 = vmatpush1.msra.mxu0 0.0
        %4274 = vmatprep.subr.mxu0 0.0
        %4275 = vmatpush1.msra.mxu0 0.0
        %4276 = vmatprep.subr.mxu0 0.0
        %4277 = vmatpush1.msra.mxu0 0.0
        %4278 = vmatprep.subr.mxu0 0.0
        %4279 = vmatpush1.msra.mxu0 0.0
        %4280 = vmatprep.subr.mxu0 0.0
        %4281 = vmatpush1.msra.mxu0 0.0
        %4282 = vmatprep.subr.mxu0 0.0
        %4283 = vmatpush1.msra.mxu0 0.0
        %4284 = vmatprep.subr.mxu0 0.0
        %4285 = vmatpush1.msra.mxu0 0.0
        %4286 = vmatprep.subr.mxu0 0.0
        %4287 = vmatpush1.msra.mxu0 0.0
        %4288 = vmatprep.subr.mxu0 0.0
        %4289 = vmatpush1.msra.mxu0 0.0
        %4290 = vmatprep.subr.mxu0 0.0
        %4291 = vmatpush1.msra.mxu0 0.0
        %4292 = vmatprep.subr.mxu0 0.0
        %4293 = vmatpush1.msra.mxu0 0.0
        %4294 = vmatprep.subr.mxu0 0.0
        %4295 = vmatpush1.msra.mxu0 0.0
        %4296 = vmatprep.subr.mxu0 0.0
        %4297 = vmatpush1.msra.mxu0 0.0
        %4298 = vmatprep.subr.mxu0 0.0
        %4299 = vmatpush1.msra.mxu0 0.0
        %4300 = vmatprep.subr.mxu0 0.0
        %4301 = vmatpush1.msra.mxu0 0.0
        %4302 = vmatprep.subr.mxu0 0.0
        %4303 = vmatpush1.msra.mxu0 0.0
        %4304 = vmatprep.subr.mxu0 0.0
        %4305 = vmatpush1.msra.mxu0 0.0
        %4306 = vmatprep.subr.mxu0 0.0
        %4307 = vmatpush1.msra.mxu0 0.0
        %4308 = vmatprep.subr.mxu0 0.0
        %4309 = vmatpush1.msra.mxu0 0.0
        %4310 = vmatprep.subr.mxu0 0.0
        %4311 = vmatpush1.msra.mxu0 0.0
        %4312 = vmatprep.subr.mxu0 0.0
        %4313 = vmatpush1.msra.mxu0 0.0
        %4314 = vmatprep.subr.mxu0 0.0
        %4315 = vmatpush1.msra.mxu0 0.0
        %4316 = vmatprep.subr.mxu0 0.0
        %4317 = vmatpush1.msra.mxu0 0.0
        %4318 = vmatprep.subr.mxu0 0.0
        %4319 = vmatpush1.msra.mxu0 0.0
        %4320 = vmatprep.subr.mxu0 0.0
        %4321 = vmatpush1.msra.mxu0 0.0
        %4322 = vmatprep.subr.mxu0 0.0
        %4323 = vmatpush1.msra.mxu0 0.0
        %4324 = vmatprep.subr.mxu0 0.0
        %4325 = vmatpush1.msra.mxu0 0.0
        %4326 = vmatprep.subr.mxu0 0.0
        %4327 = vmatpush1.msra.mxu0 0.0
        %4328 = vmatprep.subr.mxu0 0.0
        %4329 = vmatpush1.msra.mxu0 0.0
        %4330 = vmatprep.subr.mxu0 0.0
        %4331 = vmatpush1.msra.mxu0 0.0
        %4332 = vmatprep.mubr.f32.mxu0 0.0
        %v4333 = vand.u32 %v3963, 4294901760
        %4334 = vmatmul.mubr.f32.gmra.mrb[0].mxu0 %v4333
        %v4335 = vpop.f32.mrb[0].mxu0
        %v4336 = vadd.f32 %v4262, %v4335
        %v4337 = vpop.f32.mrb[0].mxu0
        %4338 = vdwg.mxu0
        %4339 = vmatprep.subr.mxu0 0.0
        %v4340 = vand.u32 %v3960, 4294901760
        %4341 = vmatpush1.msra.mxu0 %v4340
        %4342 = vmatprep.subr.mxu0 0.0
        %4343 = vmatpush1.msra.mxu0 0.0
        %4344 = vmatprep.subr.mxu0 0.0
        %4345 = vmatpush1.msra.mxu0 0.0
        %4346 = vmatprep.subr.mxu0 0.0
        %4347 = vmatpush1.msra.mxu0 0.0
        %4348 = vmatprep.subr.mxu0 0.0
        %4349 = vmatpush1.msra.mxu0 0.0
        %4350 = vmatprep.subr.mxu0 0.0
        %4351 = vmatpush1.msra.mxu0 0.0
        %4352 = vmatprep.subr.mxu0 0.0
        %4353 = vmatpush1.msra.mxu0 0.0
        %4354 = vmatprep.subr.mxu0 0.0
        %4355 = vmatpush1.msra.mxu0 0.0
        %4356 = vmatprep.subr.mxu0 0.0
        %4357 = vmatpush1.msra.mxu0 0.0
        %4358 = vmatprep.subr.mxu0 0.0
        %4359 = vmatpush1.msra.mxu0 0.0
        %4360 = vmatprep.subr.mxu0 0.0
        %4361 = vmatpush1.msra.mxu0 0.0
        %4362 = vmatprep.subr.mxu0 0.0
        %4363 = vmatpush1.msra.mxu0 0.0
        %4364 = vmatprep.subr.mxu0 0.0
        %4365 = vmatpush1.msra.mxu0 0.0
        %4366 = vmatprep.subr.mxu0 0.0
        %4367 = vmatpush1.msra.mxu0 0.0
        %4368 = vmatprep.subr.mxu0 0.0
        %4369 = vmatpush1.msra.mxu0 0.0
        %4370 = vmatprep.subr.mxu0 0.0
        %4371 = vmatpush1.msra.mxu0 0.0
        %4372 = vmatprep.subr.mxu0 0.0
        %4373 = vmatpush1.msra.mxu0 0.0
        %4374 = vmatprep.subr.mxu0 0.0
        %4375 = vmatpush1.msra.mxu0 0.0
        %4376 = vmatprep.subr.mxu0 0.0
        %4377 = vmatpush1.msra.mxu0 0.0
        %4378 = vmatprep.subr.mxu0 0.0
        %4379 = vmatpush1.msra.mxu0 0.0
        %4380 = vmatprep.subr.mxu0 0.0
        %4381 = vmatpush1.msra.mxu0 0.0
        %4382 = vmatprep.subr.mxu0 0.0
        %4383 = vmatpush1.msra.mxu0 0.0
        %4384 = vmatprep.subr.mxu0 0.0
        %4385 = vmatpush1.msra.mxu0 0.0
        %4386 = vmatprep.subr.mxu0 0.0
        %4387 = vmatpush1.msra.mxu0 0.0
        %4388 = vmatprep.subr.mxu0 0.0
        %4389 = vmatpush1.msra.mxu0 0.0
        %4390 = vmatprep.subr.mxu0 0.0
        %4391 = vmatpush1.msra.mxu0 0.0
        %4392 = vmatprep.subr.mxu0 0.0
        %4393 = vmatpush1.msra.mxu0 0.0
        %4394 = vmatprep.subr.mxu0 0.0
        %4395 = vmatpush1.msra.mxu0 0.0
        %4396 = vmatprep.subr.mxu0 0.0
        %4397 = vmatpush1.msra.mxu0 0.0
        %4398 = vmatprep.subr.mxu0 0.0
        %4399 = vmatpush1.msra.mxu0 0.0
        %4400 = vmatprep.subr.mxu0 0.0
        %4401 = vmatpush1.msra.mxu0 0.0
        %4402 = vmatprep.subr.mxu0 0.0
        %4403 = vmatpush1.msra.mxu0 0.0
        %4404 = vmatprep.mubr.f32.mxu0 0.0
        %v4405 = vand.u32 %v3963, 4294901760
        %4406 = vmatmul.mubr.f32.gmra.mrb[0].mxu0 %v4405
        %v4407 = vpop.f32.mrb[0].mxu0
        %v4408 = vadd.f32 %v4336, %v4407
        %v4409 = vpop.f32.mrb[0].mxu0
        %4410 = vdwg.mxu0
        %4412 = vrot.lane.b32.xlu0 %v2572, 8
        %v4413 = vpop.permute.xlu0 %4412
        %4416 = vrot.lane.b32.xlu0 %v3490, 16
        %v4417 = vpop.permute.xlu0 %4416
        %4420 = vrot.lane.b32.xlu0 %v4408, 24
        %v4421 = vpop.permute.xlu0 %4420
        %v4423 = vsel %vm736, %v1654, %v4413
        %vm4424 = vcmask 130048
        %v4425 = vsel %vm4424, %v4423, %v4417
        %vm4426 = vcmask 195584
        %v4427 = vsel %vm4426, %v4425, %v4421
        %v4428 = vld [vmem:[%s4] sm:$0xff]
        %v4429 = vld [vmem:[%s4 + $0x8] sm:$0xff]
        %v4430 = vld [vmem:[%s4 + $0x10] sm:$0xff]
        %v4431 = vld [vmem:[%s4 + $0x18] sm:$0xff]
        %v4433 = vsel %vm244, %v4427, 0
        %4435 = vmatprep.subr.mxu0 0.0
        %v4436 = vand.u32 %v4428, 4294901760
        %4437 = vmatpush1.msra.mxu0 %v4436
        %4438 = vmatprep.subr.mxu0 0.0
        %v4439 = vand.u32 %v4429, 4294901760
        %4440 = vmatpush1.msra.mxu0 %v4439
        %4441 = vmatprep.subr.mxu0 0.0
        %v4442 = vand.u32 %v4430, 4294901760
        %4443 = vmatpush1.msra.mxu0 %v4442
        %4444 = vmatprep.subr.mxu0 0.0
        %v4445 = vand.u32 %v4431, 4294901760
        %4446 = vmatpush1.msra.mxu0 %v4445
        %4447 = vmatprep.subr.mxu0 0.0
        %4448 = vmatpush1.msra.mxu0 0.0
        %4449 = vmatprep.subr.mxu0 0.0
        %4450 = vmatpush1.msra.mxu0 0.0
        %4451 = vmatprep.subr.mxu0 0.0
        %4452 = vmatpush1.msra.mxu0 0.0
        %4453 = vmatprep.subr.mxu0 0.0
        %4454 = vmatpush1.msra.mxu0 0.0
        %4455 = vmatprep.subr.mxu0 0.0
        %4456 = vmatpush1.msra.mxu0 0.0
        %4457 = vmatprep.subr.mxu0 0.0
        %4458 = vmatpush1.msra.mxu0 0.0
        %4459 = vmatprep.subr.mxu0 0.0
        %4460 = vmatpush1.msra.mxu0 0.0
        %4461 = vmatprep.subr.mxu0 0.0
        %4462 = vmatpush1.msra.mxu0 0.0
        %4463 = vmatprep.subr.mxu0 0.0
        %4464 = vmatpush1.msra.mxu0 0.0
        %4465 = vmatprep.subr.mxu0 0.0
        %4466 = vmatpush1.msra.mxu0 0.0
        %4467 = vmatprep.subr.mxu0 0.0
        %4468 = vmatpush1.msra.mxu0 0.0
        %4469 = vmatprep.subr.mxu0 0.0
        %4470 = vmatpush1.msra.mxu0 0.0
        %4471 = vmatprep.subr.mxu0 0.0
        %4472 = vmatpush1.msra.mxu0 0.0
        %4473 = vmatprep.subr.mxu0 0.0
        %4474 = vmatpush1.msra.mxu0 0.0
        %4475 = vmatprep.subr.mxu0 0.0
        %4476 = vmatpush1.msra.mxu0 0.0
        %4477 = vmatprep.subr.mxu0 0.0
        %4478 = vmatpush1.msra.mxu0 0.0
        %4479 = vmatprep.subr.mxu0 0.0
        %4480 = vmatpush1.msra.mxu0 0.0
        %4481 = vmatprep.subr.mxu0 0.0
        %4482 = vmatpush1.msra.mxu0 0.0
        %4483 = vmatprep.subr.mxu0 0.0
        %4484 = vmatpush1.msra.mxu0 0.0
        %4485 = vmatprep.subr.mxu0 0.0
        %4486 = vmatpush1.msra.mxu0 0.0
        %4487 = vmatprep.subr.mxu0 0.0
        %4488 = vmatpush1.msra.mxu0 0.0
        %4489 = vmatprep.subr.mxu0 0.0
        %4490 = vmatpush1.msra.mxu0 0.0
        %4491 = vmatprep.subr.mxu0 0.0
        %4492 = vmatpush1.msra.mxu0 0.0
        %4493 = vmatprep.subr.mxu0 0.0
        %4494 = vmatpush1.msra.mxu0 0.0
        %4495 = vmatprep.subr.mxu0 0.0
        %4496 = vmatpush1.msra.mxu0 0.0
        %4497 = vmatprep.subr.mxu0 0.0
        %4498 = vmatpush1.msra.mxu0 0.0
        %4499 = vmatprep.subr.mxu0 0.0
        %4500 = vmatpush1.msra.mxu0 0.0
        %4501 = vmatprep.subr.mxu0 0.0
        %4502 = vmatpush1.msra.mxu0 0.0
        %4503 = vmatprep.mubr.f32.mxu0 0.0
        %v4504 = vand.u32 %v4433, 4294901760
        %v4505 = vsub.f32 %v4433, %v4504
        %v4506 = vand.u32 %v4505, 4294901760
        %v4507 = vsub.f32 %v4505, %v4506
        %v4508 = vand.u32 %v4507, 4294901760
        %4509 = vmatmul.mubr.f32.gmra.mrb[0].mxu0 %v4508
        %v4510 = vpop.f32.mrb[0].mxu0
        %v4511 = vadd.f32 0.0, %v4510
        %v4512 = vpop.f32.mrb[0].mxu0
        %4513 = vdwg.mxu0
        %4514 = vmatprep.subr.mxu0 0.0
        %v4515 = vand.u32 %v4428, 4294901760
        %v4516 = vsub.f32 %v4428, %v4515
        %v4517 = vand.u32 %v4516, 4294901760
        %v4518 = vsub.f32 %v4516, %v4517
        %v4519 = vand.u32 %v4518, 4294901760
        %4520 = vmatpush1.msra.mxu0 %v4519
        %4521 = vmatprep.subr.mxu0 0.0
        %v4522 = vand.u32 %v4429, 4294901760
        %v4523 = vsub.f32 %v4429, %v4522
        %v4524 = vand.u32 %v4523, 4294901760
        %v4525 = vsub.f32 %v4523, %v4524
        %v4526 = vand.u32 %v4525, 4294901760
        %4527 = vmatpush1.msra.mxu0 %v4526
        %4528 = vmatprep.subr.mxu0 0.0
        %v4529 = vand.u32 %v4430, 4294901760
        %v4530 = vsub.f32 %v4430, %v4529
        %v4531 = vand.u32 %v4530, 4294901760
        %v4532 = vsub.f32 %v4530, %v4531
        %v4533 = vand.u32 %v4532, 4294901760
        %4534 = vmatpush1.msra.mxu0 %v4533
        %4535 = vmatprep.subr.mxu0 0.0
        %v4536 = vand.u32 %v4431, 4294901760
        %v4537 = vsub.f32 %v4431, %v4536
        %v4538 = vand.u32 %v4537, 4294901760
        %v4539 = vsub.f32 %v4537, %v4538
        %v4540 = vand.u32 %v4539, 4294901760
        %4541 = vmatpush1.msra.mxu0 %v4540
        %4542 = vmatprep.subr.mxu0 0.0
        %4543 = vmatpush1.msra.mxu0 0.0
        %4544 = vmatprep.subr.mxu0 0.0
        %4545 = vmatpush1.msra.mxu0 0.0
        %4546 = vmatprep.subr.mxu0 0.0
        %4547 = vmatpush1.msra.mxu0 0.0
        %4548 = vmatprep.subr.mxu0 0.0
        %4549 = vmatpush1.msra.mxu0 0.0
        %4550 = vmatprep.subr.mxu0 0.0
        %4551 = vmatpush1.msra.mxu0 0.0
        %4552 = vmatprep.subr.mxu0 0.0
        %4553 = vmatpush1.msra.mxu0 0.0
        %4554 = vmatprep.subr.mxu0 0.0
        %4555 = vmatpush1.msra.mxu0 0.0
        %4556 = vmatprep.subr.mxu0 0.0
        %4557 = vmatpush1.msra.mxu0 0.0
        %4558 = vmatprep.subr.mxu0 0.0
        %4559 = vmatpush1.msra.mxu0 0.0
        %4560 = vmatprep.subr.mxu0 0.0
        %4561 = vmatpush1.msra.mxu0 0.0
        %4562 = vmatprep.subr.mxu0 0.0
        %4563 = vmatpush1.msra.mxu0 0.0
        %4564 = vmatprep.subr.mxu0 0.0
        %4565 = vmatpush1.msra.mxu0 0.0
        %4566 = vmatprep.subr.mxu0 0.0
        %4567 = vmatpush1.msra.mxu0 0.0
        %4568 = vmatprep.subr.mxu0 0.0
        %4569 = vmatpush1.msra.mxu0 0.0
        %4570 = vmatprep.subr.mxu0 0.0
        %4571 = vmatpush1.msra.mxu0 0.0
        %4572 = vmatprep.subr.mxu0 0.0
        %4573 = vmatpush1.msra.mxu0 0.0
        %4574 = vmatprep.subr.mxu0 0.0
        %4575 = vmatpush1.msra.mxu0 0.0
        %4576 = vmatprep.subr.mxu0 0.0
        %4577 = vmatpush1.msra.mxu0 0.0
        %4578 = vmatprep.subr.mxu0 0.0
        %4579 = vmatpush1.msra.mxu0 0.0
        %4580 = vmatprep.subr.mxu0 0.0
        %4581 = vmatpush1.msra.mxu0 0.0
        %4582 = vmatprep.subr.mxu0 0.0
        %4583 = vmatpush1.msra.mxu0 0.0
        %4584 = vmatprep.subr.mxu0 0.0
        %4585 = vmatpush1.msra.mxu0 0.0
        %4586 = vmatprep.subr.mxu0 0.0
        %4587 = vmatpush1.msra.mxu0 0.0
        %4588 = vmatprep.subr.mxu0 0.0
        %4589 = vmatpush1.msra.mxu0 0.0
        %4590 = vmatprep.subr.mxu0 0.0
        %4591 = vmatpush1.msra.mxu0 0.0
        %4592 = vmatprep.subr.mxu0 0.0
        %4593 = vmatpush1.msra.mxu0 0.0
        %4594 = vmatprep.subr.mxu0 0.0
        %4595 = vmatpush1.msra.mxu0 0.0
        %4596 = vmatprep.subr.mxu0 0.0
        %4597 = vmatpush1.msra.mxu0 0.0
        %4598 = vmatprep.mubr.f32.mxu0 0.0
        %v4599 = vand.u32 %v4433, 4294901760
        %4600 = vmatmul.mubr.f32.gmra.mrb[0].mxu0 %v4599
        %v4601 = vpop.f32.mrb[0].mxu0
        %v4602 = vadd.f32 %v4511, %v4601
        %v4603 = vpop.f32.mrb[0].mxu0
        %4604 = vdwg.mxu0
        %4605 = vmatprep.subr.mxu0 0.0
        %v4606 = vand.u32 %v4428, 4294901760
        %v4607 = vsub.f32 %v4428, %v4606
        %4608 = vmatpush1.msra.mxu0 %v4607
        %4609 = vmatprep.subr.mxu0 0.0
        %v4610 = vand.u32 %v4429, 4294901760
        %v4611 = vsub.f32 %v4429, %v4610
        %4612 = vmatpush1.msra.mxu0 %v4611
        %4613 = vmatprep.subr.mxu0 0.0
        %v4614 = vand.u32 %v4430, 4294901760
        %v4615 = vsub.f32 %v4430, %v4614
        %4616 = vmatpush1.msra.mxu0 %v4615
        %4617 = vmatprep.subr.mxu0 0.0
        %v4618 = vand.u32 %v4431, 4294901760
        %v4619 = vsub.f32 %v4431, %v4618
        %4620 = vmatpush1.msra.mxu0 %v4619
        %4621 = vmatprep.subr.mxu0 0.0
        %4622 = vmatpush1.msra.mxu0 0.0
        %4623 = vmatprep.subr.mxu0 0.0
        %4624 = vmatpush1.msra.mxu0 0.0
        %4625 = vmatprep.subr.mxu0 0.0
        %4626 = vmatpush1.msra.mxu0 0.0
        %4627 = vmatprep.subr.mxu0 0.0
        %4628 = vmatpush1.msra.mxu0 0.0
        %4629 = vmatprep.subr.mxu0 0.0
        %4630 = vmatpush1.msra.mxu0 0.0
        %4631 = vmatprep.subr.mxu0 0.0
        %4632 = vmatpush1.msra.mxu0 0.0
        %4633 = vmatprep.subr.mxu0 0.0
        %4634 = vmatpush1.msra.mxu0 0.0
        %4635 = vmatprep.subr.mxu0 0.0
        %4636 = vmatpush1.msra.mxu0 0.0
        %4637 = vmatprep.subr.mxu0 0.0
        %4638 = vmatpush1.msra.mxu0 0.0
        %4639 = vmatprep.subr.mxu0 0.0
        %4640 = vmatpush1.msra.mxu0 0.0
        %4641 = vmatprep.subr.mxu0 0.0
        %4642 = vmatpush1.msra.mxu0 0.0
        %4643 = vmatprep.subr.mxu0 0.0
        %4644 = vmatpush1.msra.mxu0 0.0
        %4645 = vmatprep.subr.mxu0 0.0
        %4646 = vmatpush1.msra.mxu0 0.0
        %4647 = vmatprep.subr.mxu0 0.0
        %4648 = vmatpush1.msra.mxu0 0.0
        %4649 = vmatprep.subr.mxu0 0.0
        %4650 = vmatpush1.msra.mxu0 0.0
        %4651 = vmatprep.subr.mxu0 0.0
        %4652 = vmatpush1.msra.mxu0 0.0
        %4653 = vmatprep.subr.mxu0 0.0
        %4654 = vmatpush1.msra.mxu0 0.0
        %4655 = vmatprep.subr.mxu0 0.0
        %4656 = vmatpush1.msra.mxu0 0.0
        %4657 = vmatprep.subr.mxu0 0.0
        %4658 = vmatpush1.msra.mxu0 0.0
        %4659 = vmatprep.subr.mxu0 0.0
        %4660 = vmatpush1.msra.mxu0 0.0
        %4661 = vmatprep.subr.mxu0 0.0
        %4662 = vmatpush1.msra.mxu0 0.0
        %4663 = vmatprep.subr.mxu0 0.0
        %4664 = vmatpush1.msra.mxu0 0.0
        %4665 = vmatprep.subr.mxu0 0.0
        %4666 = vmatpush1.msra.mxu0 0.0
        %4667 = vmatprep.subr.mxu0 0.0
        %4668 = vmatpush1.msra.mxu0 0.0
        %4669 = vmatprep.subr.mxu0 0.0
        %4670 = vmatpush1.msra.mxu0 0.0
        %4671 = vmatprep.subr.mxu0 0.0
        %4672 = vmatpush1.msra.mxu0 0.0
        %4673 = vmatprep.subr.mxu0 0.0
        %4674 = vmatpush1.msra.mxu0 0.0
        %4675 = vmatprep.subr.mxu0 0.0
        %4676 = vmatpush1.msra.mxu0 0.0
        %4677 = vmatprep.mubr.f32.mxu0 0.0
        %v4678 = vand.u32 %v4433, 4294901760
        %v4679 = vsub.f32 %v4433, %v4678
        %4680 = vmatmul.mubr.f32.gmra.mrb[0].mxu0 %v4679
        %v4681 = vpop.f32.mrb[0].mxu0
        %v4682 = vadd.f32 %v4602, %v4681
        %v4683 = vpop.f32.mrb[0].mxu0
        %4684 = vdwg.mxu0
        %4685 = vmatprep.subr.mxu0 0.0
        %v4686 = vand.u32 %v4428, 4294901760
        %4687 = vmatpush1.msra.mxu0 %v4686
        %4688 = vmatprep.subr.mxu0 0.0
        %v4689 = vand.u32 %v4429, 4294901760
        %4690 = vmatpush1.msra.mxu0 %v4689
        %4691 = vmatprep.subr.mxu0 0.0
        %v4692 = vand.u32 %v4430, 4294901760
        %4693 = vmatpush1.msra.mxu0 %v4692
        %4694 = vmatprep.subr.mxu0 0.0
        %v4695 = vand.u32 %v4431, 4294901760
        %4696 = vmatpush1.msra.mxu0 %v4695
        %4697 = vmatprep.subr.mxu0 0.0
        %4698 = vmatpush1.msra.mxu0 0.0
        %4699 = vmatprep.subr.mxu0 0.0
        %4700 = vmatpush1.msra.mxu0 0.0
        %4701 = vmatprep.subr.mxu0 0.0
        %4702 = vmatpush1.msra.mxu0 0.0
        %4703 = vmatprep.subr.mxu0 0.0
        %4704 = vmatpush1.msra.mxu0 0.0
        %4705 = vmatprep.subr.mxu0 0.0
        %4706 = vmatpush1.msra.mxu0 0.0
        %4707 = vmatprep.subr.mxu0 0.0
        %4708 = vmatpush1.msra.mxu0 0.0
        %4709 = vmatprep.subr.mxu0 0.0
        %4710 = vmatpush1.msra.mxu0 0.0
        %4711 = vmatprep.subr.mxu0 0.0
        %4712 = vmatpush1.msra.mxu0 0.0
        %4713 = vmatprep.subr.mxu0 0.0
        %4714 = vmatpush1.msra.mxu0 0.0
        %4715 = vmatprep.subr.mxu0 0.0
        %4716 = vmatpush1.msra.mxu0 0.0
        %4717 = vmatprep.subr.mxu0 0.0
        %4718 = vmatpush1.msra.mxu0 0.0
        %4719 = vmatprep.subr.mxu0 0.0
        %4720 = vmatpush1.msra.mxu0 0.0
        %4721 = vmatprep.subr.mxu0 0.0
        %4722 = vmatpush1.msra.mxu0 0.0
        %4723 = vmatprep.subr.mxu0 0.0
        %4724 = vmatpush1.msra.mxu0 0.0
        %4725 = vmatprep.subr.mxu0 0.0
        %4726 = vmatpush1.msra.mxu0 0.0
        %4727 = vmatprep.subr.mxu0 0.0
        %4728 = vmatpush1.msra.mxu0 0.0
        %4729 = vmatprep.subr.mxu0 0.0
        %4730 = vmatpush1.msra.mxu0 0.0
        %4731 = vmatprep.subr.mxu0 0.0
        %4732 = vmatpush1.msra.mxu0 0.0
        %4733 = vmatprep.subr.mxu0 0.0
        %4734 = vmatpush1.msra.mxu0 0.0
        %4735 = vmatprep.subr.mxu0 0.0
        %4736 = vmatpush1.msra.mxu0 0.0
        %4737 = vmatprep.subr.mxu0 0.0
        %4738 = vmatpush1.msra.mxu0 0.0
        %4739 = vmatprep.subr.mxu0 0.0
        %4740 = vmatpush1.msra.mxu0 0.0
        %4741 = vmatprep.subr.mxu0 0.0
        %4742 = vmatpush1.msra.mxu0 0.0
        %4743 = vmatprep.subr.mxu0 0.0
        %4744 = vmatpush1.msra.mxu0 0.0
        %4745 = vmatprep.subr.mxu0 0.0
        %4746 = vmatpush1.msra.mxu0 0.0
        %4747 = vmatprep.subr.mxu0 0.0
        %4748 = vmatpush1.msra.mxu0 0.0
        %4749 = vmatprep.subr.mxu0 0.0
        %4750 = vmatpush1.msra.mxu0 0.0
        %4751 = vmatprep.subr.mxu0 0.0
        %4752 = vmatpush1.msra.mxu0 0.0
        %4753 = vmatprep.mubr.f32.mxu0 0.0
        %v4754 = vand.u32 %v4433, 4294901760
        %v4755 = vsub.f32 %v4433, %v4754
        %v4756 = vand.u32 %v4755, 4294901760
        %4757 = vmatmul.mubr.f32.gmra.mrb[0].mxu0 %v4756
        %v4758 = vpop.f32.mrb[0].mxu0
        %v4759 = vadd.f32 %v4682, %v4758
        %v4760 = vpop.f32.mrb[0].mxu0
        %4761 = vdwg.mxu0
        %4762 = vmatprep.subr.mxu0 0.0
        %v4763 = vand.u32 %v4428, 4294901760
        %v4764 = vsub.f32 %v4428, %v4763
        %v4765 = vand.u32 %v4764, 4294901760
        %4766 = vmatpush1.msra.mxu0 %v4765
        %4767 = vmatprep.subr.mxu0 0.0
        %v4768 = vand.u32 %v4429, 4294901760
        %v4769 = vsub.f32 %v4429, %v4768
        %v4770 = vand.u32 %v4769, 4294901760
        %4771 = vmatpush1.msra.mxu0 %v4770
        %4772 = vmatprep.subr.mxu0 0.0
        %v4773 = vand.u32 %v4430, 4294901760
        %v4774 = vsub.f32 %v4430, %v4773
        %v4775 = vand.u32 %v4774, 4294901760
        %4776 = vmatpush1.msra.mxu0 %v4775
        %4777 = vmatprep.subr.mxu0 0.0
        %v4778 = vand.u32 %v4431, 4294901760
        %v4779 = vsub.f32 %v4431, %v4778
        %v4780 = vand.u32 %v4779, 4294901760
        %4781 = vmatpush1.msra.mxu0 %v4780
        %4782 = vmatprep.subr.mxu0 0.0
        %4783 = vmatpush1.msra.mxu0 0.0
        %4784 = vmatprep.subr.mxu0 0.0
        %4785 = vmatpush1.msra.mxu0 0.0
        %4786 = vmatprep.subr.mxu0 0.0
        %4787 = vmatpush1.msra.mxu0 0.0
        %4788 = vmatprep.subr.mxu0 0.0
        %4789 = vmatpush1.msra.mxu0 0.0
        %4790 = vmatprep.subr.mxu0 0.0
        %4791 = vmatpush1.msra.mxu0 0.0
        %4792 = vmatprep.subr.mxu0 0.0
        %4793 = vmatpush1.msra.mxu0 0.0
        %4794 = vmatprep.subr.mxu0 0.0
        %4795 = vmatpush1.msra.mxu0 0.0
        %4796 = vmatprep.subr.mxu0 0.0
        %4797 = vmatpush1.msra.mxu0 0.0
        %4798 = vmatprep.subr.mxu0 0.0
        %4799 = vmatpush1.msra.mxu0 0.0
        %4800 = vmatprep.subr.mxu0 0.0
        %4801 = vmatpush1.msra.mxu0 0.0
        %4802 = vmatprep.subr.mxu0 0.0
        %4803 = vmatpush1.msra.mxu0 0.0
        %4804 = vmatprep.subr.mxu0 0.0
        %4805 = vmatpush1.msra.mxu0 0.0
        %4806 = vmatprep.subr.mxu0 0.0
        %4807 = vmatpush1.msra.mxu0 0.0
        %4808 = vmatprep.subr.mxu0 0.0
        %4809 = vmatpush1.msra.mxu0 0.0
        %4810 = vmatprep.subr.mxu0 0.0
        %4811 = vmatpush1.msra.mxu0 0.0
        %4812 = vmatprep.subr.mxu0 0.0
        %4813 = vmatpush1.msra.mxu0 0.0
        %4814 = vmatprep.subr.mxu0 0.0
        %4815 = vmatpush1.msra.mxu0 0.0
        %4816 = vmatprep.subr.mxu0 0.0
        %4817 = vmatpush1.msra.mxu0 0.0
        %4818 = vmatprep.subr.mxu0 0.0
        %4819 = vmatpush1.msra.mxu0 0.0
        %4820 = vmatprep.subr.mxu0 0.0
        %4821 = vmatpush1.msra.mxu0 0.0
        %4822 = vmatprep.subr.mxu0 0.0
        %4823 = vmatpush1.msra.mxu0 0.0
        %4824 = vmatprep.subr.mxu0 0.0
        %4825 = vmatpush1.msra.mxu0 0.0
        %4826 = vmatprep.subr.mxu0 0.0
        %4827 = vmatpush1.msra.mxu0 0.0
        %4828 = vmatprep.subr.mxu0 0.0
        %4829 = vmatpush1.msra.mxu0 0.0
        %4830 = vmatprep.subr.mxu0 0.0
        %4831 = vmatpush1.msra.mxu0 0.0
        %4832 = vmatprep.subr.mxu0 0.0
        %4833 = vmatpush1.msra.mxu0 0.0
        %4834 = vmatprep.subr.mxu0 0.0
        %4835 = vmatpush1.msra.mxu0 0.0
        %4836 = vmatprep.subr.mxu0 0.0
        %4837 = vmatpush1.msra.mxu0 0.0
        %4838 = vmatprep.mubr.f32.mxu0 0.0
        %v4839 = vand.u32 %v4433, 4294901760
        %4840 = vmatmul.mubr.f32.gmra.mrb[0].mxu0 %v4839
        %v4841 = vpop.f32.mrb[0].mxu0
        %v4842 = vadd.f32 %v4759, %v4841
        %v4843 = vpop.f32.mrb[0].mxu0
        %4844 = vdwg.mxu0
        %4845 = vmatprep.subr.mxu0 0.0
        %v4846 = vand.u32 %v4428, 4294901760
        %4847 = vmatpush1.msra.mxu0 %v4846
        %4848 = vmatprep.subr.mxu0 0.0
        %v4849 = vand.u32 %v4429, 4294901760
        %4850 = vmatpush1.msra.mxu0 %v4849
        %4851 = vmatprep.subr.mxu0 0.0
        %v4852 = vand.u32 %v4430, 4294901760
        %4853 = vmatpush1.msra.mxu0 %v4852
        %4854 = vmatprep.subr.mxu0 0.0
        %v4855 = vand.u32 %v4431, 4294901760
        %4856 = vmatpush1.msra.mxu0 %v4855
        %4857 = vmatprep.subr.mxu0 0.0
        %4858 = vmatpush1.msra.mxu0 0.0
        %4859 = vmatprep.subr.mxu0 0.0
        %4860 = vmatpush1.msra.mxu0 0.0
        %4861 = vmatprep.subr.mxu0 0.0
        %4862 = vmatpush1.msra.mxu0 0.0
        %4863 = vmatprep.subr.mxu0 0.0
        %4864 = vmatpush1.msra.mxu0 0.0
        %4865 = vmatprep.subr.mxu0 0.0
        %4866 = vmatpush1.msra.mxu0 0.0
        %4867 = vmatprep.subr.mxu0 0.0
        %4868 = vmatpush1.msra.mxu0 0.0
        %4869 = vmatprep.subr.mxu0 0.0
        %4870 = vmatpush1.msra.mxu0 0.0
        %4871 = vmatprep.subr.mxu0 0.0
        %4872 = vmatpush1.msra.mxu0 0.0
        %4873 = vmatprep.subr.mxu0 0.0
        %4874 = vmatpush1.msra.mxu0 0.0
        %4875 = vmatprep.subr.mxu0 0.0
        %4876 = vmatpush1.msra.mxu0 0.0
        %4877 = vmatprep.subr.mxu0 0.0
        %4878 = vmatpush1.msra.mxu0 0.0
        %4879 = vmatprep.subr.mxu0 0.0
        %4880 = vmatpush1.msra.mxu0 0.0
        %4881 = vmatprep.subr.mxu0 0.0
        %4882 = vmatpush1.msra.mxu0 0.0
        %4883 = vmatprep.subr.mxu0 0.0
        %4884 = vmatpush1.msra.mxu0 0.0
        %4885 = vmatprep.subr.mxu0 0.0
        %4886 = vmatpush1.msra.mxu0 0.0
        %4887 = vmatprep.subr.mxu0 0.0
        %4888 = vmatpush1.msra.mxu0 0.0
        %4889 = vmatprep.subr.mxu0 0.0
        %4890 = vmatpush1.msra.mxu0 0.0
        %4891 = vmatprep.subr.mxu0 0.0
        %4892 = vmatpush1.msra.mxu0 0.0
        %4893 = vmatprep.subr.mxu0 0.0
        %4894 = vmatpush1.msra.mxu0 0.0
        %4895 = vmatprep.subr.mxu0 0.0
        %4896 = vmatpush1.msra.mxu0 0.0
        %4897 = vmatprep.subr.mxu0 0.0
        %4898 = vmatpush1.msra.mxu0 0.0
        %4899 = vmatprep.subr.mxu0 0.0
        %4900 = vmatpush1.msra.mxu0 0.0
        %4901 = vmatprep.subr.mxu0 0.0
        %4902 = vmatpush1.msra.mxu0 0.0
        %4903 = vmatprep.subr.mxu0 0.0
        %4904 = vmatpush1.msra.mxu0 0.0
        %4905 = vmatprep.subr.mxu0 0.0
        %4906 = vmatpush1.msra.mxu0 0.0
        %4907 = vmatprep.subr.mxu0 0.0
        %4908 = vmatpush1.msra.mxu0 0.0
        %4909 = vmatprep.subr.mxu0 0.0
        %4910 = vmatpush1.msra.mxu0 0.0
        %4911 = vmatprep.subr.mxu0 0.0
        %4912 = vmatpush1.msra.mxu0 0.0
        %4913 = vmatprep.mubr.f32.mxu0 0.0
        %v4914 = vand.u32 %v4433, 4294901760
        %4915 = vmatmul.mubr.f32.gmra.mrb[0].mxu0 %v4914
        %v4916 = vpop.f32.mrb[0].mxu0
        %v4917 = vadd.f32 %v4842, %v4916
        %v4918 = vpop.f32.mrb[0].mxu0
        %4919 = vdwg.mxu0
        %4920 = vst [vmem:[%s226] sm:$0xff] %v4917
        %s4921 = sand.u32 %s142, 1
        %s4922 = scalar_lea.sflag [#allocation3], %s4921
        %s4923 = sand.u32 %s142, 1
        %s4924 = smul.addr %s4923, 8
        %s4925 = scalar_lea.vmem [#allocation2], %s4924
        // Predicated region
        $region41: #{_attention_pallas.1} parent=39 // pred_check
          %p4926 = pneg %p152
        $region42: #{_attention_pallas.1} parent=39 // pred_check_branch
          %4928 = sbr.rel (%p4926) target = $region44
        $region43: #{_attention_pallas.1} parent=39 // pred_region
          %s4930 = ssub.s32 128, 128
          %4931 = vsyncadd %s4922, %s4930
          %s4932 = smul.addr %s19, 128
          %s4933 = scalar_lea.hbm %s5, %s4932
          %s4935 = sshll.u32 %s4925, 4
          %s4936 = int_to_ptr.vmem [resolvable:$true] %s4935
          %4938 = dma.vmem_to_hbm [thread:$0]  %s4936, 128, %s4933, %s4922
        $region44: #{_attention_pallas.1} parent=39 // pred_fallthru
          _
      $region40: #{_attention_pallas.1} parent=5 // pred_fallthru
        _
      %p4939 = scmp.le.s32.totalorder 2, %s14
      // Predicated region
      $region45: #{_attention_pallas.1} parent=5 // pred_check
        %p4940 = pneg %p4939
      $region46: #{_attention_pallas.1} parent=5 // pred_check_branch
        %4942 = sbr.rel (%p4940) target = $region48
      $region47: #{_attention_pallas.1} parent=5 // pred_region
        %s4943 = ssub.s32 %s14, 2
        // Predicated region
        $region49: #{_attention_pallas.1} parent=47 // pred_check
          %p4944 = pneg %p158
        $region50: #{_attention_pallas.1} parent=47 // pred_check_branch
          %4946 = sbr.rel (%p4944) target = $region52
        $region51: #{_attention_pallas.1} parent=47 // pred_region
          %s4947 = sand.u32 %s143, 1
          %s4948 = scalar_lea.sflag [#allocation3], %s4947
          %s4949 = sand.u32 %s143, 1
          %s4950 = smul.addr %s4949, 8
          %s4951 = scalar_lea.vmem [#allocation2], %s4950
          %4952 = dma.done %s4948, 128
        $region52: #{_attention_pallas.1} parent=47 // pred_fallthru
          _
      $region48: #{_attention_pallas.1} parent=5 // pred_fallthru
        _
    $region6: #{_attention_pallas.1} parent=1 // loop_footer
      %s18 = sadd.s32 1, %s14
    $region7: #{_attention_pallas.1} parent=1 // loop_footer_branch
      %13 = sbr.rel target = $region3
    $region8: #{_attention_pallas.1} parent=1 // loop_exit
      _
    %4953 = vsyncpa [#allocation3], 1
    %s4954 = scalar_lea.sflag [#allocation3], 1
    %4955 = vsyncpa %s4954, 1

</llo_original>
